<compile_context>
chip_gen: v5e
topology: v5e:2x2
jax: 0.10.0
libtpu: 0.0.40
codegen_flags: <defaults>
</compile_context>

<pallas_src>
import functools

import jax
import jax.numpy as jnp
from jax.experimental import pallas as pl
from jax.experimental.pallas import tpu as pltpu

EPS = 1e-5
LANE = 128
MAX_TK = 2048                     # single K block up to this size, else tile K
VMEM_LIMIT = 48 * 1024 * 1024     # fits v7x's 64 MiB physical VMEM with headroom


# ----------------------------- small helpers --------------------------------

def _cdiv(a, b):
    return -(-a // b)


def _round_up(a, b):
    return _cdiv(a, b) * b


def _pick_tm(m):
    """Row tile: big enough to amortize grid overhead, with an EVEN (>=2) tile count so
    both v7x TensorCores get work on the 'parallel' M axis."""
    if m <= 8:
        return _round_up(max(m, 1), 8)
    n_tiles = max(2, _cdiv(m, 512))
    if n_tiles % 2:
        n_tiles += 1
    return max(8, _round_up(_cdiv(m, n_tiles), 8))


# ----------------------------- Pallas kernels -------------------------------

def _conv_mm_stats_kernel(a_ref, w_ref, out_ref, stats_ref, *acc_scratch,
                          tm, tk, n_rows, n_k):
    """bf16 matmul (f32 accumulation) + fused per-M-tile BN partial stats.

    grid = (m_tiles, n_k).  All program_id reads stay at the top level of the body
    (program_id inside a pl.when branch does not lower on the interpret fallback).
    """
    mi = pl.program_id(0)
    row0 = mi * tm

    def emit(acc_val):
        out_ref[...] = acc_val.astype(out_ref.dtype)
        # per-channel sum / sum-of-squares over the valid rows of this M tile (f32 VPU/XLU
        # work hidden under MXU slack); ragged last-tile rows are masked with a select
        # (NOT a multiplicative mask -- garbage rows could be non-finite).
        row = jax.lax.broadcasted_iota(jnp.int32, acc_val.shape, 0) + row0
        masked = jnp.where(row < n_rows, acc_val, 0.0)
        s = jnp.sum(masked, axis=0, keepdims=True)
        ss = jnp.sum(masked * masked, axis=0, keepdims=True)
        z = jnp.zeros((stats_ref.shape[0] - 2, acc_val.shape[1]), jnp.float32)
        stats_ref[...] = jnp.concatenate([s, ss, z], axis=0)

    if n_k == 1:
        # single K block: no accumulator scratch, no zero-init, no RMW.
        emit(jnp.dot(a_ref[...], w_ref[...], preferred_element_type=jnp.float32))
        return

    ki = pl.program_id(1)
    # W is a single VMEM-resident block across the whole grid; slice the K chunk in-kernel.
    part = jnp.dot(a_ref[...], w_ref[pl.ds(ki * tk, tk), :],
                   preferred_element_type=jnp.float32)
    acc_ref, = acc_scratch

    @pl.when(ki == 0)
    def _():
        acc_ref[...] = part

    @pl.when(ki > 0)
    def _():
        acc_ref[...] += part

    @pl.when(ki == n_k - 1)
    def _():
        emit(acc_ref[...])


def _direct_conv3x3_kernel(*refs, hh, ww, cin, apply_act):
    """Direct 3x3 / stride-1 / pad-1 conv of ONE image as 9 shifted MXU matmuls over a
    halo'd VMEM scratch.  Optionally fuses a pre-activation affine + ReLU (BN1 folded
    into conv2's operand load).  Emits bf16 output + f32 per-image BN partial stats."""
    if apply_act:
        x_ref, w_ref, sc_ref, sh_ref, y_ref, stats_ref, pad_ref = refs
    else:
        x_ref, w_ref, y_ref, stats_ref, pad_ref = refs

    if apply_act:
        xv = x_ref[0].astype(jnp.float32)
        sc = sc_ref[...].reshape(1, 1, cin)
        sh = sh_ref[...].reshape(1, 1, cin)
        h = jnp.maximum(xv * sc + sh, 0.0)
    else:
        h = x_ref[0]

    # Build the halo'd activation in VMEM (zero ring == conv padding in the *activated*
    # domain, which an XLA-side zero-pad before the in-kernel BN+ReLU could not give us).
    pad_ref[...] = jnp.zeros_like(pad_ref)
    pad_ref[1:hh + 1, 1:ww + 1, :] = h.astype(pad_ref.dtype)

    coutp = w_ref.shape[1]
    acc = jnp.zeros((hh * ww, coutp), jnp.float32)
    for t in range(9):                       # static 9-tap loop -> 9 MXU pushes
        dy, dx = t // 3, t % 3
        a = pad_ref[dy:dy + hh, dx:dx + ww, :].reshape(hh * ww, cin)
        acc = acc + jnp.dot(a, w_ref[t * cin:(t + 1) * cin, :],
                            preferred_element_type=jnp.float32)

    y_ref[0] = acc.reshape(hh, ww, coutp).astype(y_ref.dtype)

    s = jnp.sum(acc, axis=0, keepdims=True)
    ss = jnp.sum(acc * acc, axis=0, keepdims=True)
    z = jnp.zeros((stats_ref.shape[0] - 2, coutp), jnp.float32)
    stats_ref[...] = jnp.concatenate([s, ss, z], axis=0)


def _add_bnproj_relu_kernel(y2_ref, sc2_ref, sh2_ref, ys_ref, scs_ref, shs_ref, o_ref,
                            *, cout):
    # out = relu( bn2(y2) + bn_s(y_shortcut) ), emitting only the real `cout` channels.
    a = y2_ref[...].astype(jnp.float32) * sc2_ref[...] + sh2_ref[...]
    b = ys_ref[...].astype(jnp.float32) * scs_ref[...] + shs_ref[...]
    o_ref[...] = jnp.maximum(a[:, :cout] + b[:, :cout], 0.0)


def _add_identity_relu_kernel(y2_ref, sc2_ref, sh2_ref, x_ref, o_ref, *, cout):
    # out = relu( bn2(y2) + x ), identity shortcut (no padded-x copy, no dead affine math).
    a = y2_ref[...].astype(jnp.float32) * sc2_ref[...] + sh2_ref[...]
    o_ref[...] = jnp.maximum(a[:, :cout] + x_ref[...].astype(jnp.float32), 0.0)


# ------------------------------ pallas_call wrappers -------------------------

def conv_matmul_stats(a, w, n_rows):
    """a: [M, K] bf16 (im2col patches), w: [K, width] bf16 (width % 128 == 0).

    Returns:
      out:   [M, width] bf16         -- a @ w (f32 accumulation, bf16 store)
      stats: [m_tiles*8, width] f32  -- per-M-tile partials (row 0 = sum, row 1 = sum sq)
    """
    m, k = a.shape
    kw, width = w.shape
    assert k == kw and width % LANE == 0

    tm = _pick_tm(m)
    m_tiles = _cdiv(m, tm)

    n_k = _cdiv(k, MAX_TK)
    if n_k > 1:
        # minimal K padding (<= n_k*8 - 1 columns) instead of rounding up to MAX_TK
        tk = _round_up(_cdiv(k, n_k), 8)
        kp = tk * n_k
        if kp != k:
            a = jnp.pad(a, ((0, 0), (0, kp - k)))
            w = jnp.pad(w, ((0, kp - k), (0, 0)))
        k = kp
    else:
        tk = k

    kernel = functools.partial(_conv_mm_stats_kernel, tm=tm, tk=tk,
                               n_rows=n_rows, n_k=n_k)
    scratch = [] if n_k == 1 else [pltpu.VMEM((tm, width), jnp.float32)]

    out, stats = pl.pallas_call(
        kernel,
        out_shape=(jax.ShapeDtypeStruct((m, width), jnp.bfloat16),
                   jax.ShapeDtypeStruct((m_tiles * 8, width), jnp.float32)),
        grid=(m_tiles, n_k),
        in_specs=[
            pl.BlockSpec((tm, tk), lambda i, kk: (i, kk)),
            pl.BlockSpec((k, width), lambda i, kk: (0, 0)),   # W resident across whole grid
        ],
        out_specs=(
            pl.BlockSpec((tm, width), lambda i, kk: (i, 0)),  # resident across K
            pl.BlockSpec((8, width), lambda i, kk: (i, 0)),
        ),
        scratch_shapes=scratch,
        compiler_params=pltpu.CompilerParams(
            dimension_semantics=("parallel", "arbitrary"),
            vmem_limit_bytes=VMEM_LIMIT),
    )(a, w)
    return out, stats


def direct_conv3x3_bn_stats(x, w_mat, scale=None, shift=None):
    """Direct 3x3 / stride-1 / pad-1 conv, one image per grid step.

    x:      [N, H, W, C_total]   -- the conv reads the leading cin = w_mat.shape[0] // 9
                                    channels of the last dim (lets conv2 read only the
                                    conv1 columns of the fused conv1+projection output).
    w_mat:  [9*cin, coutp] bf16, rows ordered (dy, dx, cin); coutp % 128 == 0.
    scale/shift: optional [1, cin] f32 pre-activation affine + ReLU (BN1 fused into the
                 operand load).  None -> raw input (conv1 of an identity block).
    Returns y [N, H, W, coutp] bf16 and per-image BN partial stats [N*8, coutp] f32.
    """
    n, hh, ww, _ = x.shape
    kin, coutp = w_mat.shape
    cin = kin // 9
    apply_act = scale is not None

    kernel = functools.partial(_direct_conv3x3_kernel, hh=hh, ww=ww, cin=cin,
                               apply_act=apply_act)
    in_specs = [
        pl.BlockSpec((1, hh, ww, cin), lambda i: (i, 0, 0, 0)),
        pl.BlockSpec((kin, coutp), lambda i: (0, 0)),
    ]
    args = [x, w_mat]
    if apply_act:
        in_specs += [pl.BlockSpec((1, cin), lambda i: (0, 0)),
                     pl.BlockSpec((1, cin), lambda i: (0, 0))]
        args += [scale, shift]

    y, stats = pl.pallas_call(
        kernel,
        out_shape=(jax.ShapeDtypeStruct((n, hh, ww, coutp), jnp.bfloat16),
                   jax.ShapeDtypeStruct((n * 8, coutp), jnp.float32)),
        grid=(n,),
        in_specs=in_specs,
        out_specs=(pl.BlockSpec((1, hh, ww, coutp), lambda i: (i, 0, 0, 0)),
                   pl.BlockSpec((8, coutp), lambda i: (i, 0))),
        scratch_shapes=[pltpu.VMEM((hh + 2, ww + 2, cin), jnp.bfloat16)],
        compiler_params=pltpu.CompilerParams(
            dimension_semantics=("parallel",), vmem_limit_bytes=VMEM_LIMIT),
    )(*args)
    return y, stats


def add_bn_proj_relu(y2, sc2, sh2, ya, scs, shs, cout):
    """relu( bn2(y2) + bn_s(ya[:, cpad:2*cpad]) ), output only the real cout channels."""
    m, cpad = y2.shape
    tm = _pick_tm(m)
    kernel = functools.partial(_add_bnproj_relu_kernel, cout=cout)
    return pl.pallas_call(
        kernel,
        out_shape=jax.ShapeDtypeStruct((m, cout), jnp.float32),
        grid=(_cdiv(m, tm),),
        in_specs=[
            pl.BlockSpec((tm, cpad), lambda i: (i, 0)),
            pl.BlockSpec((1, cpad), lambda i: (0, 0)),
            pl.BlockSpec((1, cpad), lambda i: (0, 0)),
            pl.BlockSpec((tm, cpad), lambda i: (i, 1)),    # shortcut columns of y_a
            pl.BlockSpec((1, cpad), lambda i: (0, 0)),
            pl.BlockSpec((1, cpad), lambda i: (0, 0)),
        ],
        out_specs=pl.BlockSpec((tm, cout), lambda i: (i, 0)),
        compiler_params=pltpu.CompilerParams(
            dimension_semantics=("parallel",), vmem_limit_bytes=VMEM_LIMIT),
    )(y2, sc2, sh2, ya, scs, shs)


def add_identity_relu(y2, sc2, sh2, xres, cout):
    """relu( bn2(y2) + x ), identity shortcut; x is read directly (no channel padding)."""
    m, cpad = y2.shape
    tm = _pick_tm(m)
    kernel = functools.partial(_add_identity_relu_kernel, cout=cout)
    return pl.pallas_call(
        kernel,
        out_shape=jax.ShapeDtypeStruct((m, cout), jnp.float32),
        grid=(_cdiv(m, tm),),
        in_specs=[
            pl.BlockSpec((tm, cpad), lambda i: (i, 0)),
            pl.BlockSpec((1, cpad), lambda i: (0, 0)),
            pl.BlockSpec((1, cpad), lambda i: (0, 0)),
            pl.BlockSpec((tm, cout), lambda i: (i, 0)),
        ],
        out_specs=pl.BlockSpec((tm, cout), lambda i: (i, 0)),
        compiler_params=pltpu.CompilerParams(
            dimension_semantics=("parallel",), vmem_limit_bytes=VMEM_LIMIT),
    )(y2, sc2, sh2, xres)


# ------------------------------ XLA-side glue --------------------------------

def _im2col(x_nhwc, k, stride, pad, out_dtype):
    """[N,H,W,C] -> patches [N*Ho*Wo, k*k*C]; rows ordered (n,ho,wo), cols (dy,dx,c).
    Only used for the strided downsample conv1 (projection blocks)."""
    x = jnp.pad(x_nhwc, ((0, 0), (pad, pad), (pad, pad), (0, 0)))
    n, hp, wp, c = x.shape
    ho = (hp - k) // stride + 1
    wo = (wp - k) // stride + 1
    patches = []
    for dy in range(k):
        for dx in range(k):
            patches.append(x[:, dy:dy + stride * ho:stride, dx:dx + stride * wo:stride, :])
    cols = jnp.stack(patches, axis=3)                  # [N, Ho, Wo, k*k, C]
    return cols.reshape(n * ho * wo, k * k * c).astype(out_dtype), (n, ho, wo)


def _conv_w_to_mat(w_oihw, cpad):
    """[Cout, Cin, kh, kw] -> [kh*kw*Cin, Cpad] f32, rows ordered (dy, dx, cin)."""
    cout, cin, kh, kw = w_oihw.shape
    mat = jnp.transpose(w_oihw, (2, 3, 1, 0)).reshape(kh * kw * cin, cout)
    return jnp.pad(mat.astype(jnp.float32), ((0, 0), (0, cpad - cout)))


def _conv2_w_to_mat(w_oihw, cpad):
    """conv2 weight with BOTH channel axes padded to cpad -> [9*cpad, cpad] f32."""
    cout, cin, kh, kw = w_oihw.shape
    t = jnp.transpose(w_oihw, (2, 3, 1, 0)).astype(jnp.float32)      # [kh, kw, cin, cout]
    t = jnp.pad(t, ((0, 0), (0, 0), (0, cpad - cin), (0, cpad - cout)))
    return t.reshape(kh * kw * cpad, cpad)


def _pad_vec(v, cpad):
    return jnp.pad(v.astype(jnp.float32), (0, cpad - v.shape[0]))


def _reduce_stats(stats):
    """Per-tile/per-image partial stats -> (per-channel sum, per-channel sum of squares)."""
    s = stats.reshape(-1, 8, stats.shape[1])
    return s[:, 0, :].sum(axis=0), s[:, 1, :].sum(axis=0)


def _fold_bn(ch_sum, ch_sq, count, gamma, beta, eps=EPS):
    """Training-mode BatchNorm (batch stats, biased variance) folded to scale/shift."""
    mean = ch_sum / count
    var = jnp.maximum(ch_sq / count - mean * mean, 0.0)
    scale = gamma / jnp.sqrt(var + eps)                 # padded channels: gamma=0 -> scale=0
    shift = beta - mean * scale
    return scale[None, :], shift[None, :]


# ------------------------------ ResBlock forward -----------------------------

@functools.partial(jax.jit, static_argnums=(2,))
def resblock_forward(x_nchw, params, stride):
    x = jnp.transpose(x_nchw, (0, 2, 3, 1)).astype(jnp.float32)      # NCHW -> NHWC
    n, h, w, cin = x.shape
    cout = params["w1"].shape[0]
    cpad = _round_up(cout, LANE)                                     # lane-dense MXU outputs
    has_proj = (stride != 1) or (cin != cout)

    w2_mat = _conv2_w_to_mat(params["w2"], cpad).astype(jnp.bfloat16)  # [9*cpad, cpad]
    g1p, b1p = _pad_vec(params["g1"], cpad), _pad_vec(params["b1"], cpad)
    g2p, b2p = _pad_vec(params["g2"], cpad), _pad_vec(params["b2"], cpad)

    if has_proj:
        # ---- conv1 (strided) via im2col + one matmul, with the 1x1/stride-s projection
        #      folded in as extra output columns riding on the centre tap --------------
        w1_mat = _conv_w_to_mat(params["w1"], cpad)                  # [9*cin, cpad]
        ws_mat = _conv_w_to_mat(params["ws"], cpad)                  # [cin, cpad]
        ws_full = jnp.zeros((9 * cin, cpad), jnp.float32).at[4 * cin:5 * cin].set(ws_mat)
        w_a = jnp.concatenate([w1_mat, ws_full], axis=1).astype(jnp.bfloat16)
        cols1, (_, ho, wo) = _im2col(x, 3, stride, 1, jnp.bfloat16)
        m = n * ho * wo
        y_a, stats_a = conv_matmul_stats(cols1, w_a, m)              # bf16 [m, 2*cpad]
        sum_a, sq_a = _reduce_stats(stats_a)
        sc1, sh1 = _fold_bn(sum_a[:cpad], sq_a[:cpad], m, g1p, b1p)
        y1_4d = y_a.reshape(n, ho, wo, 2 * cpad)                     # free reshape
    else:
        # ---- conv1 (stride 1, identity block): direct conv, no im2col ----------------
        ho, wo = h, w
        m = n * ho * wo
        w1_mat = _conv_w_to_mat(params["w1"], cpad).astype(jnp.bfloat16)   # [9*cin, cpad]
        y1_4d, stats1 = direct_conv3x3_bn_stats(x, w1_mat)           # bf16 [n,h,w,cpad]
        sum1, sq1 = _reduce_stats(stats1)
        sc1, sh1 = _fold_bn(sum1, sq1, m, g1p, b1p)

    # ---- conv2: direct 3x3 conv with BN1 + ReLU fused into the operand load ----------
    y2, stats2 = direct_conv3x3_bn_stats(y1_4d, w2_mat, sc1, sh1)    # bf16 [n,ho,wo,cpad]
    sum2, sq2 = _reduce_stats(stats2)
    sc2, sh2 = _fold_bn(sum2, sq2, m, g2p, b2p)

    # ---- residual add + BN2 (+ BN_shortcut) + ReLU, emitting only real channels ------
    y2_2d = y2.reshape(m, cpad)                                      # free reshape
    if has_proj:
        scs, shs = _fold_bn(sum_a[cpad:], sq_a[cpad:], m,
                            _pad_vec(params["gs"], cpad), _pad_vec(params["bs"], cpad))
        out2d = add_bn_proj_relu(y2_2d, sc2, sh2, y_a, scs, shs, cout)
    else:
        out2d = add_identity_relu(y2_2d, sc2, sh2, x.reshape(m, cin), cout)

    out = out2d.reshape(n, ho, wo, cout)
    return jnp.transpose(out, (0, 3, 1, 2))                          # NHWC -> NCHW


# ------------------------------ reference (lax conv) -------------------------

def resblock_reference(x_nchw, params, stride):
    def conv(x, w, s, p):
        return jax.lax.conv_general_dilated(
            x, w, (s, s), [(p, p), (p, p)],
            dimension_numbers=("NCHW", "OIHW", "NCHW"))

    def bn(x, g, b):
        mean = jnp.mean(x, axis=(0, 2, 3), keepdims=True)
        var = jnp.mean((x - mean) ** 2, axis=(0, 2, 3), keepdims=True)
        return (g[None, :, None, None] * (x - mean) / jnp.sqrt(var + EPS)
                + b[None, :, None, None])

    out = conv(x_nchw, params["w1"], stride, 1)
    out = jnp.maximum(bn(out, params["g1"], params["b1"]), 0.0)
    out = bn(conv(out, params["w2"], 1, 1), params["g2"], params["b2"])
    cout, cin = params["w1"].shape[0], params["w1"].shape[1]
    if stride != 1 or cin != cout:
        sc = bn(conv(x_nchw, params["ws"], stride, 0), params["gs"], params["bs"])
    else:
        sc = x_nchw
    return jnp.maximum(out + sc, 0.0)


# ------------------------------------ main -----------------------------------

if __name__ == "__main__":
    def make_params(key, cin, cout, has_proj):
        ks = jax.random.split(key, 6)
        p = {
            "w1": jax.random.normal(ks[0], (cout, cin, 3, 3), jnp.float32) * 0.2,
            "g1": 1.0 + 0.1 * jax.random.normal(ks[3], (cout,), jnp.float32),
            "b1": 0.1 * jax.random.normal(ks[4], (cout,), jnp.float32),
            "w2": jax.random.normal(ks[1], (cout, cout, 3, 3), jnp.float32) * 0.2,
            "g2": jnp.ones((cout,), jnp.float32) * 0.9,
            "b2": jnp.ones((cout,), jnp.float32) * 0.05,
        }
        if has_proj:
            p.update({
                "ws": jax.random.normal(ks[2], (cout, cin, 1, 1), jnp.float32) * 0.2,
                "gs": jnp.ones((cout,), jnp.float32) * 1.1,
                "bs": jnp.ones((cout,), jnp.float32) * -0.05,
            })
        return p

    key = jax.random.PRNGKey(0)
    k0, k1, k2, k3 = jax.random.split(key, 4)

    # bf16 MXU operands vs. f32 reference conv -> loose tolerance for the smoke test
    TOL = 5e-2

    # case 1: projection shortcut (stride 2, channel change 4 -> 8)
    x1 = jax.random.normal(k0, (2, 4, 16, 16), jnp.float32)
    p1 = make_params(k1, 4, 8, True)
    out1 = jax.block_until_ready(resblock_forward(x1, p1, 2))
    ref1 = jax.block_until_ready(resblock_reference(x1, p1, 2))
    assert out1.shape == (2, 8, 8, 8), out1.shape
    assert jnp.allclose(out1, ref1, atol=TOL, rtol=TOL), (
        float(jnp.max(jnp.abs(out1 - ref1))))

    # case 2: identity shortcut (stride 1, same channels)
    x2 = jax.random.normal(k2, (2, 8, 16, 16), jnp.float32)
    p2 = make_params(k3, 8, 8, False)
    out2 = jax.block_until_ready(resblock_forward(x2, p2, 1))
    ref2 = jax.block_until_ready(resblock_reference(x2, p2, 1))
    assert out2.shape == (2, 8, 16, 16), out2.shape
    assert jnp.allclose(out2, ref2, atol=TOL, rtol=TOL), (
        float(jnp.max(jnp.abs(out2 - ref2))))

    print("KERNEL_OK")
</pallas_src>

<mosaic_0001>
module attributes {stable_mosaic.version = 11 : i64} {
  func.func @_conv_mm_stats_kernel(%arg0: i32, %arg1: i32, %arg2: memref<64x36xbf16, #tpu.memory_space<vmem>>, %arg3: memref<36x256xbf16, #tpu.memory_space<vmem>>, %arg4: memref<64x256xbf16, #tpu.memory_space<vmem>>, %arg5: memref<8x256xf32, #tpu.memory_space<vmem>>) attributes {dimension_semantics = [#tpu.dimension_semantics<parallel>, #tpu.dimension_semantics<arbitrary>], iteration_bounds = array<i64: 2, 1>, scalar_prefetch = 0 : i64, scratch_operands = 0 : i64, tpu.core_type = #tpu.core_type<tc>, window_params = [{transform_indices = @transform_0, window_bounds = array<i64: 64, 36>}, {pipeline_mode = #tpu.pipeline_mode<synchronous>, transform_indices = @transform_1, window_bounds = array<i64: 36, 256>}, {transform_indices = @transform_2, window_bounds = array<i64: 64, 256>}, {transform_indices = @transform_3, window_bounds = array<i64: 8, 256>}]} {
    %c64_i32 = arith.constant 64 : i32
    %0 = arith.muli %arg0, %c64_i32 : i32
    %c0 = arith.constant 0 : index
    %c0_0 = arith.constant 0 : index
    %1 = vector.load %arg2[%c0, %c0_0] : memref<64x36xbf16, #tpu.memory_space<vmem>>, vector<64x36xbf16>
    %c0_1 = arith.constant 0 : index
    %c0_2 = arith.constant 0 : index
    %2 = vector.load %arg3[%c0_1, %c0_2] : memref<36x256xbf16, #tpu.memory_space<vmem>>, vector<36x256xbf16>
    %cst = arith.constant dense<0.000000e+00> : vector<64x256xf32>
    %3 = tpu.matmul %1, %2, %cst {dimension_numbers = #tpu.dot_dimension_numbers<[1], [0], [0], [1], [0, 0, 1, 1], [], []>} : vector<64x36xbf16>, vector<36x256xbf16>, vector<64x256xf32> -> vector<64x256xf32>
    %4 = arith.truncf %3 : vector<64x256xf32> to vector<64x256xbf16>
    %c0_3 = arith.constant 0 : index
    %c0_4 = arith.constant 0 : index
    %5 = vector.load %arg4[%c0_3, %c0_4] : memref<64x256xbf16, #tpu.memory_space<vmem>>, vector<64x256xbf16>
    tpu.vector_store %arg4[%c0_3, %c0_4], %4 {strides = array<i32>} : memref<64x256xbf16, #tpu.memory_space<vmem>>, vector<64x256xbf16>,
    %6 = tpu.iota {dimensions = array<i32: 0>} : vector<64x256xi32>
    %7 = vector.broadcast %0 : i32 to vector<64x256xi32>
    %8 = arith.addi %6, %7 : vector<64x256xi32>
    %c128_i32 = arith.constant 128 : i32
    %9 = vector.broadcast %c128_i32 : i32 to vector<64x256xi32>
    %10 = arith.cmpi slt, %8, %9 : vector<64x256xi32>
    %cst_5 = arith.constant 0.000000e+00 : f32
    %11 = vector.broadcast %cst_5 : f32 to vector<64x256xf32>
    %12 = arith.select %10, %3, %11 : vector<64x256xi1>, vector<64x256xf32>
    %cst_6 = arith.constant dense<0.000000e+00> : vector<256xf32>
    %13 = vector.multi_reduction <add>, %12, %cst_6 [0] : vector<64x256xf32> to vector<256xf32>
    %14 = vector.shape_cast %13 : vector<256xf32> to vector<1x256xf32>
    %15 = arith.mulf %12, %12 : vector<64x256xf32>
    %cst_7 = arith.constant dense<0.000000e+00> : vector<256xf32>
    %16 = vector.multi_reduction <add>, %15, %cst_7 [0] : vector<64x256xf32> to vector<256xf32>
    %17 = vector.shape_cast %16 : vector<256xf32> to vector<1x256xf32>
    %cst_8 = arith.constant 0.000000e+00 : f32
    %18 = vector.broadcast %cst_8 : f32 to vector<6x256xf32>
    %19 = tpu.concatenate %14, %17, %18 in 0 : vector<1x256xf32>, vector<1x256xf32>, vector<6x256xf32> -> vector<8x256xf32>
    %c0_9 = arith.constant 0 : index
    %c0_10 = arith.constant 0 : index
    %20 = vector.load %arg5[%c0_9, %c0_10] : memref<8x256xf32, #tpu.memory_space<vmem>>, vector<8x256xf32>
    tpu.vector_store %arg5[%c0_9, %c0_10], %19 {strides = array<i32>} : memref<8x256xf32, #tpu.memory_space<vmem>>, vector<8x256xf32>,
    return
  }
  func.func @transform_0(%arg0: i32, %arg1: i32) -> (i32, i32) {
    %c0_i32 = arith.constant 0 : i32
    return %arg0, %arg1 : i32, i32
  }
  func.func @transform_1(%arg0: i32, %arg1: i32) -> (i32, i32) {
    %c0_i32 = arith.constant 0 : i32
    %c0_i32_0 = arith.constant 0 : i32
    %c0_i32_1 = arith.constant 0 : i32
    return %c0_i32, %c0_i32_0 : i32, i32
  }
  func.func @transform_2(%arg0: i32, %arg1: i32) -> (i32, i32) {
    %c0_i32 = arith.constant 0 : i32
    %c0_i32_0 = arith.constant 0 : i32
    return %arg0, %c0_i32 : i32, i32
  }
  func.func @transform_3(%arg0: i32, %arg1: i32) -> (i32, i32) {
    %c0_i32 = arith.constant 0 : i32
    %c0_i32_0 = arith.constant 0 : i32
    return %arg0, %c0_i32 : i32, i32
  }
}

module attributes {stable_mosaic.version = 11 : i64} {
  func.func @_direct_conv3x3_kernel(%arg0: i32, %arg1: memref<1x8x8x128xbf16, #tpu.memory_space<vmem>>, %arg2: memref<1152x128xbf16, #tpu.memory_space<vmem>>, %arg3: memref<1x128xf32, #tpu.memory_space<vmem>>, %arg4: memref<1x128xf32, #tpu.memory_space<vmem>>, %arg5: memref<1x8x8x128xbf16, #tpu.memory_space<vmem>>, %arg6: memref<8x128xf32, #tpu.memory_space<vmem>>, %arg7: memref<10x10x128xbf16, #tpu.memory_space<vmem>>) attributes {dimension_semantics = [#tpu.dimension_semantics<parallel>], iteration_bounds = array<i64: 2>, scalar_prefetch = 0 : i64, scratch_operands = 1 : i64, tpu.core_type = #tpu.core_type<tc>, window_params = [{transform_indices = @transform_0, window_bounds = array<i64: 1, 8, 8, 128>}, {pipeline_mode = #tpu.pipeline_mode<synchronous>, transform_indices = @transform_1, window_bounds = array<i64: 1152, 128>}, {pipeline_mode = #tpu.pipeline_mode<synchronous>, transform_indices = @transform_2, window_bounds = array<i64: 1, 128>}, {pipeline_mode = #tpu.pipeline_mode<synchronous>, transform_indices = @transform_3, window_bounds = array<i64: 1, 128>}, {transform_indices = @transform_4, window_bounds = array<i64: 1, 8, 8, 128>}, {transform_indices = @transform_5, window_bounds = array<i64: 8, 128>}]} {
    %c0 = arith.constant 0 : index
    %c0_0 = arith.constant 0 : index
    %c0_1 = arith.constant 0 : index
    %c0_2 = arith.constant 0 : index
    %0 = vector.load %arg1[%c0, %c0_0, %c0_1, %c0_2] : memref<1x8x8x128xbf16, #tpu.memory_space<vmem>>, vector<1x8x8x128xbf16>
    %1 = vector.shape_cast %0 : vector<1x8x8x128xbf16> to vector<8x8x128xbf16>
    %2 = arith.extf %1 : vector<8x8x128xbf16> to vector<8x8x128xf32>
    %c0_3 = arith.constant 0 : index
    %c0_4 = arith.constant 0 : index
    %3 = vector.load %arg3[%c0_3, %c0_4] : memref<1x128xf32, #tpu.memory_space<vmem>>, vector<1x128xf32>
    %4 = vector.shape_cast %3 : vector<1x128xf32> to vector<1x1x128xf32>
    %c0_5 = arith.constant 0 : index
    %c0_6 = arith.constant 0 : index
    %5 = vector.load %arg4[%c0_5, %c0_6] : memref<1x128xf32, #tpu.memory_space<vmem>>, vector<1x128xf32>
    %6 = vector.shape_cast %5 : vector<1x128xf32> to vector<1x1x128xf32>
    %7 = vector.broadcast %4 : vector<1x1x128xf32> to vector<8x8x128xf32>
    %8 = arith.mulf %2, %7 : vector<8x8x128xf32>
    %9 = vector.broadcast %6 : vector<1x1x128xf32> to vector<8x8x128xf32>
    %10 = arith.addf %8, %9 : vector<8x8x128xf32>
    %cst = arith.constant 0.000000e+00 : f32
    %11 = vector.broadcast %cst : f32 to vector<8x8x128xf32>
    %12 = arith.maximumf %10, %11 : vector<8x8x128xf32>
    %cst_7 = arith.constant 0.000000e+00 : bf16
    %13 = vector.broadcast %cst_7 : bf16 to vector<10x10x128xbf16>
    %c0_8 = arith.constant 0 : index
    %c0_9 = arith.constant 0 : index
    %c0_10 = arith.constant 0 : index
    %14 = vector.load %arg7[%c0_8, %c0_9, %c0_10] : memref<10x10x128xbf16, #tpu.memory_space<vmem>>, vector<10x10x128xbf16>
    tpu.vector_store %arg7[%c0_8, %c0_9, %c0_10], %13 {strides = array<i32>} : memref<10x10x128xbf16, #tpu.memory_space<vmem>>, vector<10x10x128xbf16>,
    %15 = arith.truncf %12 : vector<8x8x128xf32> to vector<8x8x128xbf16>
    %c1 = arith.constant 1 : index
    %c1_11 = arith.constant 1 : index
    %c0_12 = arith.constant 0 : index
    %16 = vector.load %arg7[%c1, %c1_11, %c0_12] : memref<10x10x128xbf16, #tpu.memory_space<vmem>>, vector<8x8x128xbf16>
    tpu.vector_store %arg7[%c1, %c1_11, %c0_12], %15 {strides = array<i32>} : memref<10x10x128xbf16, #tpu.memory_space<vmem>>, vector<8x8x128xbf16>,
    %cst_13 = arith.constant 0.000000e+00 : f32
    %17 = vector.broadcast %cst_13 : f32 to vector<64x128xf32>
    %c0_14 = arith.constant 0 : index
    %c0_15 = arith.constant 0 : index
    %c0_16 = arith.constant 0 : index
    %18 = vector.load %arg7[%c0_14, %c0_15, %c0_16] : memref<10x10x128xbf16, #tpu.memory_space<vmem>>, vector<8x8x128xbf16>
    %19 = vector.shape_cast %18 : vector<8x8x128xbf16> to vector<64x128xbf16>
    %c0_17 = arith.constant 0 : index
    %c0_18 = arith.constant 0 : index
    %20 = vector.load %arg2[%c0_17, %c0_18] : memref<1152x128xbf16, #tpu.memory_space<vmem>>, vector<128x128xbf16>
    %cst_19 = arith.constant dense<0.000000e+00> : vector<64x128xf32>
    %21 = tpu.matmul %19, %20, %cst_19 {dimension_numbers = #tpu.dot_dimension_numbers<[1], [0], [0], [1], [0, 0, 1, 1], [], []>} : vector<64x128xbf16>, vector<128x128xbf16>, vector<64x128xf32> -> vector<64x128xf32>
    %22 = arith.addf %17, %21 : vector<64x128xf32>
    %c0_20 = arith.constant 0 : index
    %c1_21 = arith.constant 1 : index
    %c0_22 = arith.constant 0 : index
    %23 = vector.load %arg7[%c0_20, %c1_21, %c0_22] : memref<10x10x128xbf16, #tpu.memory_space<vmem>>, vector<8x8x128xbf16>
    %24 = vector.shape_cast %23 : vector<8x8x128xbf16> to vector<64x128xbf16>
    %c128 = arith.constant 128 : index
    %c0_23 = arith.constant 0 : index
    %25 = vector.load %arg2[%c128, %c0_23] : memref<1152x128xbf16, #tpu.memory_space<vmem>>, vector<128x128xbf16>
    %cst_24 = arith.constant dense<0.000000e+00> : vector<64x128xf32>
    %26 = tpu.matmul %24, %25, %cst_24 {dimension_numbers = #tpu.dot_dimension_numbers<[1], [0], [0], [1], [0, 0, 1, 1], [], []>} : vector<64x128xbf16>, vector<128x128xbf16>, vector<64x128xf32> -> vector<64x128xf32>
    %27 = arith.addf %22, %26 : vector<64x128xf32>
    %c0_25 = arith.constant 0 : index
    %c2 = arith.constant 2 : index
    %c0_26 = arith.constant 0 : index
    %28 = vector.load %arg7[%c0_25, %c2, %c0_26] : memref<10x10x128xbf16, #tpu.memory_space<vmem>>, vector<8x8x128xbf16>
    %29 = vector.shape_cast %28 : vector<8x8x128xbf16> to vector<64x128xbf16>
    %c256 = arith.constant 256 : index
    %c0_27 = arith.constant 0 : index
    %30 = vector.load %arg2[%c256, %c0_27] : memref<1152x128xbf16, #tpu.memory_space<vmem>>, vector<128x128xbf16>
    %cst_28 = arith.constant dense<0.000000e+00> : vector<64x128xf32>
    %31 = tpu.matmul %29, %30, %cst_28 {dimension_numbers = #tpu.dot_dimension_numbers<[1], [0], [0], [1], [0, 0, 1, 1], [], []>} : vector<64x128xbf16>, vector<128x128xbf16>, vector<64x128xf32> -> vector<64x128xf32>
    %32 = arith.addf %27, %31 : vector<64x128xf32>
    %c1_29 = arith.constant 1 : index
    %c0_30 = arith.constant 0 : index
    %c0_31 = arith.constant 0 : index
    %33 = vector.load %arg7[%c1_29, %c0_30, %c0_31] : memref<10x10x128xbf16, #tpu.memory_space<vmem>>, vector<8x8x128xbf16>
    %34 = vector.shape_cast %33 : vector<8x8x128xbf16> to vector<64x128xbf16>
    %c384 = arith.constant 384 : index
    %c0_32 = arith.constant 0 : index
    %35 = vector.load %arg2[%c384, %c0_32] : memref<1152x128xbf16, #tpu.memory_space<vmem>>, vector<128x128xbf16>
    %cst_33 = arith.constant dense<0.000000e+00> : vector<64x128xf32>
    %36 = tpu.matmul %34, %35, %cst_33 {dimension_numbers = #tpu.dot_dimension_numbers<[1], [0], [0], [1], [0, 0, 1, 1], [], []>} : vector<64x128xbf16>, vector<128x128xbf16>, vector<64x128xf32> -> vector<64x128xf32>
    %37 = arith.addf %32, %36 : vector<64x128xf32>
    %c1_34 = arith.constant 1 : index
    %c1_35 = arith.constant 1 : index
    %c0_36 = arith.constant 0 : index
    %38 = vector.load %arg7[%c1_34, %c1_35, %c0_36] : memref<10x10x128xbf16, #tpu.memory_space<vmem>>, vector<8x8x128xbf16>
    %39 = vector.shape_cast %38 : vector<8x8x128xbf16> to vector<64x128xbf16>
    %c512 = arith.constant 512 : index
    %c0_37 = arith.constant 0 : index
    %40 = vector.load %arg2[%c512, %c0_37] : memref<1152x128xbf16, #tpu.memory_space<vmem>>, vector<128x128xbf16>
    %cst_38 = arith.constant dense<0.000000e+00> : vector<64x128xf32>
    %41 = tpu.matmul %39, %40, %cst_38 {dimension_numbers = #tpu.dot_dimension_numbers<[1], [0], [0], [1], [0, 0, 1, 1], [], []>} : vector<64x128xbf16>, vector<128x128xbf16>, vector<64x128xf32> -> vector<64x128xf32>
    %42 = arith.addf %37, %41 : vector<64x128xf32>
    %c1_39 = arith.constant 1 : index
    %c2_40 = arith.constant 2 : index
    %c0_41 = arith.constant 0 : index
    %43 = vector.load %arg7[%c1_39, %c2_40, %c0_41] : memref<10x10x128xbf16, #tpu.memory_space<vmem>>, vector<8x8x128xbf16>
    %44 = vector.shape_cast %43 : vector<8x8x128xbf16> to vector<64x128xbf16>
    %c640 = arith.constant 640 : index
    %c0_42 = arith.constant 0 : index
    %45 = vector.load %arg2[%c640, %c0_42] : memref<1152x128xbf16, #tpu.memory_space<vmem>>, vector<128x128xbf16>
    %cst_43 = arith.constant dense<0.000000e+00> : vector<64x128xf32>
    %46 = tpu.matmul %44, %45, %cst_43 {dimension_numbers = #tpu.dot_dimension_numbers<[1], [0], [0], [1], [0, 0, 1, 1], [], []>} : vector<64x128xbf16>, vector<128x128xbf16>, vector<64x128xf32> -> vector<64x128xf32>
    %47 = arith.addf %42, %46 : vector<64x128xf32>
    %c2_44 = arith.constant 2 : index
    %c0_45 = arith.constant 0 : index
    %c0_46 = arith.constant 0 : index
    %48 = vector.load %arg7[%c2_44, %c0_45, %c0_46] : memref<10x10x128xbf16, #tpu.memory_space<vmem>>, vector<8x8x128xbf16>
    %49 = vector.shape_cast %48 : vector<8x8x128xbf16> to vector<64x128xbf16>
    %c768 = arith.constant 768 : index
    %c0_47 = arith.constant 0 : index
    %50 = vector.load %arg2[%c768, %c0_47] : memref<1152x128xbf16, #tpu.memory_space<vmem>>, vector<128x128xbf16>
    %cst_48 = arith.constant dense<0.000000e+00> : vector<64x128xf32>
    %51 = tpu.matmul %49, %50, %cst_48 {dimension_numbers = #tpu.dot_dimension_numbers<[1], [0], [0], [1], [0, 0, 1, 1], [], []>} : vector<64x128xbf16>, vector<128x128xbf16>, vector<64x128xf32> -> vector<64x128xf32>
    %52 = arith.addf %47, %51 : vector<64x128xf32>
    %c2_49 = arith.constant 2 : index
    %c1_50 = arith.constant 1 : index
    %c0_51 = arith.constant 0 : index
    %53 = vector.load %arg7[%c2_49, %c1_50, %c0_51] : memref<10x10x128xbf16, #tpu.memory_space<vmem>>, vector<8x8x128xbf16>
    %54 = vector.shape_cast %53 : vector<8x8x128xbf16> to vector<64x128xbf16>
    %c896 = arith.constant 896 : index
    %c0_52 = arith.constant 0 : index
    %55 = vector.load %arg2[%c896, %c0_52] : memref<1152x128xbf16, #tpu.memory_space<vmem>>, vector<128x128xbf16>
    %cst_53 = arith.constant dense<0.000000e+00> : vector<64x128xf32>
    %56 = tpu.matmul %54, %55, %cst_53 {dimension_numbers = #tpu.dot_dimension_numbers<[1], [0], [0], [1], [0, 0, 1, 1], [], []>} : vector<64x128xbf16>, vector<128x128xbf16>, vector<64x128xf32> -> vector<64x128xf32>
    %57 = arith.addf %52, %56 : vector<64x128xf32>
    %c2_54 = arith.constant 2 : index
    %c2_55 = arith.constant 2 : index
    %c0_56 = arith.constant 0 : index
    %58 = vector.load %arg7[%c2_54, %c2_55, %c0_56] : memref<10x10x128xbf16, #tpu.memory_space<vmem>>, vector<8x8x128xbf16>
    %59 = vector.shape_cast %58 : vector<8x8x128xbf16> to vector<64x128xbf16>
    %c1024 = arith.constant 1024 : index
    %c0_57 = arith.constant 0 : index
    %60 = vector.load %arg2[%c1024, %c0_57] : memref<1152x128xbf16, #tpu.memory_space<vmem>>, vector<128x128xbf16>
    %cst_58 = arith.constant dense<0.000000e+00> : vector<64x128xf32>
    %61 = tpu.matmul %59, %60, %cst_58 {dimension_numbers = #tpu.dot_dimension_numbers<[1], [0], [0], [1], [0, 0, 1, 1], [], []>} : vector<64x128xbf16>, vector<128x128xbf16>, vector<64x128xf32> -> vector<64x128xf32>
    %62 = arith.addf %57, %61 : vector<64x128xf32>
    %63 = vector.shape_cast %62 : vector<64x128xf32> to vector<8x8x128xf32>
    %64 = arith.truncf %63 : vector<8x8x128xf32> to vector<8x8x128xbf16>
    %c0_59 = arith.constant 0 : index
    %c0_60 = arith.constant 0 : index
    %c0_61 = arith.constant 0 : index
    %c0_62 = arith.constant 0 : index
    %65 = vector.load %arg5[%c0_59, %c0_60, %c0_61, %c0_62] : memref<1x8x8x128xbf16, #tpu.memory_space<vmem>>, vector<1x8x8x128xbf16>
    %66 = vector.shape_cast %65 : vector<1x8x8x128xbf16> to vector<8x8x128xbf16>
    %67 = vector.shape_cast %64 : vector<8x8x128xbf16> to vector<1x8x8x128xbf16>
    tpu.vector_store %arg5[%c0_59, %c0_60, %c0_61, %c0_62], %67 {strides = array<i32>} : memref<1x8x8x128xbf16, #tpu.memory_space<vmem>>, vector<1x8x8x128xbf16>,
    %cst_63 = arith.constant dense<0.000000e+00> : vector<128xf32>
    %68 = vector.multi_reduction <add>, %62, %cst_63 [0] : vector<64x128xf32> to vector<128xf32>
    %69 = vector.shape_cast %68 : vector<128xf32> to vector<1x128xf32>
    %70 = arith.mulf %62, %62 : vector<64x128xf32>
    %cst_64 = arith.constant dense<0.000000e+00> : vector<128xf32>
    %71 = vector.multi_reduction <add>, %70, %cst_64 [0] : vector<64x128xf32> to vector<128xf32>
    %72 = vector.shape_cast %71 : vector<128xf32> to vector<1x128xf32>
    %cst_65 = arith.constant 0.000000e+00 : f32
    %73 = vector.broadcast %cst_65 : f32 to vector<6x128xf32>
    %74 = tpu.concatenate %69, %72, %73 in 0 : vector<1x128xf32>, vector<1x128xf32>, vector<6x128xf32> -> vector<8x128xf32>
    %c0_66 = arith.constant 0 : index
    %c0_67 = arith.constant 0 : index
    %75 = vector.load %arg6[%c0_66, %c0_67] : memref<8x128xf32, #tpu.memory_space<vmem>>, vector<8x128xf32>
    tpu.vector_store %arg6[%c0_66, %c0_67], %74 {strides = array<i32>} : memref<8x128xf32, #tpu.memory_space<vmem>>, vector<8x128xf32>,
    return
  }
  func.func @transform_0(%arg0: i32) -> (i32, i32, i32, i32) {
    %c0_i32 = arith.constant 0 : i32
    %c0_i32_0 = arith.constant 0 : i32
    %c0_i32_1 = arith.constant 0 : i32
    %c0_i32_2 = arith.constant 0 : i32
    return %arg0, %c0_i32, %c0_i32_0, %c0_i32_1 : i32, i32, i32, i32
  }
  func.func @transform_1(%arg0: i32) -> (i32, i32) {
    %c0_i32 = arith.constant 0 : i32
    %c0_i32_0 = arith.constant 0 : i32
    %c0_i32_1 = arith.constant 0 : i32
    return %c0_i32, %c0_i32_0 : i32, i32
  }
  func.func @transform_2(%arg0: i32) -> (i32, i32) {
    %c0_i32 = arith.constant 0 : i32
    %c0_i32_0 = arith.constant 0 : i32
    %c0_i32_1 = arith.constant 0 : i32
    return %c0_i32, %c0_i32_0 : i32, i32
  }
  func.func @transform_3(%arg0: i32) -> (i32, i32) {
    %c0_i32 = arith.constant 0 : i32
    %c0_i32_0 = arith.constant 0 : i32
    %c0_i32_1 = arith.constant 0 : i32
    return %c0_i32, %c0_i32_0 : i32, i32
  }
  func.func @transform_4(%arg0: i32) -> (i32, i32, i32, i32) {
    %c0_i32 = arith.constant 0 : i32
    %c0_i32_0 = arith.constant 0 : i32
    %c0_i32_1 = arith.constant 0 : i32
    %c0_i32_2 = arith.constant 0 : i32
    return %arg0, %c0_i32, %c0_i32_0, %c0_i32_1 : i32, i32, i32, i32
  }
  func.func @transform_5(%arg0: i32) -> (i32, i32) {
    %c0_i32 = arith.constant 0 : i32
    %c0_i32_0 = arith.constant 0 : i32
    return %arg0, %c0_i32 : i32, i32
  }
}

module attributes {stable_mosaic.version = 11 : i64} {
  func.func @_add_bnproj_relu_kernel(%arg0: i32, %arg1: memref<64x128xbf16, #tpu.memory_space<vmem>>, %arg2: memref<1x128xf32, #tpu.memory_space<vmem>>, %arg3: memref<1x128xf32, #tpu.memory_space<vmem>>, %arg4: memref<64x128xbf16, #tpu.memory_space<vmem>>, %arg5: memref<1x128xf32, #tpu.memory_space<vmem>>, %arg6: memref<1x128xf32, #tpu.memory_space<vmem>>, %arg7: memref<64x8xf32, #tpu.memory_space<vmem>>) attributes {dimension_semantics = [#tpu.dimension_semantics<parallel>], iteration_bounds = array<i64: 2>, scalar_prefetch = 0 : i64, scratch_operands = 0 : i64, tpu.core_type = #tpu.core_type<tc>, window_params = [{transform_indices = @transform_0, window_bounds = array<i64: 64, 128>}, {pipeline_mode = #tpu.pipeline_mode<synchronous>, transform_indices = @transform_1, window_bounds = array<i64: 1, 128>}, {pipeline_mode = #tpu.pipeline_mode<synchronous>, transform_indices = @transform_2, window_bounds = array<i64: 1, 128>}, {transform_indices = @transform_3, window_bounds = array<i64: 64, 128>}, {pipeline_mode = #tpu.pipeline_mode<synchronous>, transform_indices = @transform_4, window_bounds = array<i64: 1, 128>}, {pipeline_mode = #tpu.pipeline_mode<synchronous>, transform_indices = @transform_5, window_bounds = array<i64: 1, 128>}, {transform_indices = @transform_6, window_bounds = array<i64: 64, 8>}]} {
    %c0 = arith.constant 0 : index
    %c0_0 = arith.constant 0 : index
    %0 = vector.load %arg1[%c0, %c0_0] : memref<64x128xbf16, #tpu.memory_space<vmem>>, vector<64x128xbf16>
    %1 = arith.extf %0 : vector<64x128xbf16> to vector<64x128xf32>
    %c0_1 = arith.constant 0 : index
    %c0_2 = arith.constant 0 : index
    %2 = vector.load %arg2[%c0_1, %c0_2] : memref<1x128xf32, #tpu.memory_space<vmem>>, vector<1x128xf32>
    %3 = vector.broadcast %2 : vector<1x128xf32> to vector<64x128xf32>
    %4 = arith.mulf %1, %3 : vector<64x128xf32>
    %c0_3 = arith.constant 0 : index
    %c0_4 = arith.constant 0 : index
    %5 = vector.load %arg3[%c0_3, %c0_4] : memref<1x128xf32, #tpu.memory_space<vmem>>, vector<1x128xf32>
    %6 = vector.broadcast %5 : vector<1x128xf32> to vector<64x128xf32>
    %7 = arith.addf %4, %6 : vector<64x128xf32>
    %c0_5 = arith.constant 0 : index
    %c0_6 = arith.constant 0 : index
    %8 = vector.load %arg4[%c0_5, %c0_6] : memref<64x128xbf16, #tpu.memory_space<vmem>>, vector<64x128xbf16>
    %9 = arith.extf %8 : vector<64x128xbf16> to vector<64x128xf32>
    %c0_7 = arith.constant 0 : index
    %c0_8 = arith.constant 0 : index
    %10 = vector.load %arg5[%c0_7, %c0_8] : memref<1x128xf32, #tpu.memory_space<vmem>>, vector<1x128xf32>
    %11 = vector.broadcast %10 : vector<1x128xf32> to vector<64x128xf32>
    %12 = arith.mulf %9, %11 : vector<64x128xf32>
    %c0_9 = arith.constant 0 : index
    %c0_10 = arith.constant 0 : index
    %13 = vector.load %arg6[%c0_9, %c0_10] : memref<1x128xf32, #tpu.memory_space<vmem>>, vector<1x128xf32>
    %14 = vector.broadcast %13 : vector<1x128xf32> to vector<64x128xf32>
    %15 = arith.addf %12, %14 : vector<64x128xf32>
    %16 = vector.extract_strided_slice %7 {offsets = [0, 0], sizes = [64, 8], strides = [1, 1]} : vector<64x128xf32> to vector<64x8xf32>
    %17 = vector.extract_strided_slice %15 {offsets = [0, 0], sizes = [64, 8], strides = [1, 1]} : vector<64x128xf32> to vector<64x8xf32>
    %18 = arith.addf %16, %17 : vector<64x8xf32>
    %cst = arith.constant 0.000000e+00 : f32
    %19 = vector.broadcast %cst : f32 to vector<64x8xf32>
    %20 = arith.maximumf %18, %19 : vector<64x8xf32>
    %c0_11 = arith.constant 0 : index
    %c0_12 = arith.constant 0 : index
    %21 = vector.load %arg7[%c0_11, %c0_12] : memref<64x8xf32, #tpu.memory_space<vmem>>, vector<64x8xf32>
    tpu.vector_store %arg7[%c0_11, %c0_12], %20 {strides = array<i32>} : memref<64x8xf32, #tpu.memory_space<vmem>>, vector<64x8xf32>,
    return
  }
  func.func @transform_0(%arg0: i32) -> (i32, i32) {
    %c0_i32 = arith.constant 0 : i32
    %c0_i32_0 = arith.constant 0 : i32
    return %arg0, %c0_i32 : i32, i32
  }
  func.func @transform_1(%arg0: i32) -> (i32, i32) {
    %c0_i32 = arith.constant 0 : i32
    %c0_i32_0 = arith.constant 0 : i32
    %c0_i32_1 = arith.constant 0 : i32
    return %c0_i32, %c0_i32_0 : i32, i32
  }
  func.func @transform_2(%arg0: i32) -> (i32, i32) {
    %c0_i32 = arith.constant 0 : i32
    %c0_i32_0 = arith.constant 0 : i32
    %c0_i32_1 = arith.constant 0 : i32
    return %c0_i32, %c0_i32_0 : i32, i32
  }
  func.func @transform_3(%arg0: i32) -> (i32, i32) {
    %c1_i32 = arith.constant 1 : i32
    %c0_i32 = arith.constant 0 : i32
    return %arg0, %c1_i32 : i32, i32
  }
  func.func @transform_4(%arg0: i32) -> (i32, i32) {
    %c0_i32 = arith.constant 0 : i32
    %c0_i32_0 = arith.constant 0 : i32
    %c0_i32_1 = arith.constant 0 : i32
    return %c0_i32, %c0_i32_0 : i32, i32
  }
  func.func @transform_5(%arg0: i32) -> (i32, i32) {
    %c0_i32 = arith.constant 0 : i32
    %c0_i32_0 = arith.constant 0 : i32
    %c0_i32_1 = arith.constant 0 : i32
    return %c0_i32, %c0_i32_0 : i32, i32
  }
  func.func @transform_6(%arg0: i32) -> (i32, i32) {
    %c0_i32 = arith.constant 0 : i32
    %c0_i32_0 = arith.constant 0 : i32
    return %arg0, %c0_i32 : i32, i32
  }
}

</mosaic_0001>

<llo_original>
// kernel: resblock_forward.3
$region0: #{resblock_forward.3}
  #allocation0 [shape = 'u32[]', space=smem, size = 0x4, offset = 0x4, fixed_abs, tag = 'smem constant byte address 0x4 - core index']
  #allocation1 [shape = 'u32[72,128]{1,0:T(1,128)}', space=vmem, size = 0x9000, scoped, tag = 'internal scratch']
  %s0 = inlined_call_operand.vmem [shape: bf16[128,36], index: 0, kind: input, shape index: {}]
  %s1 = inlined_call_operand.vmem [shape: bf16[36,256], index: 1, kind: input, shape index: {}]
  %s2 = inlined_call_operand.vmem [shape: bf16[128,256], index: 2, kind: output, shape index: {0}]
  %s3 = inlined_call_operand.vmem [shape: f32[16,256], index: 3, kind: output, shape index: {1}]
  %4 = xla_tuple %s2, %s3
  %s5 = sld [smem:[#allocation0]]
  $region49: #{resblock_forward.3} parent=0
    _
  %s7 = ssub.s32 1, %s5
  %s8 = scalar_select 0, %s7, %s5
  loop: start=0, step=1, limit=4
  $region2: #{resblock_forward.3} parent=0 // loop_pre_header
    _
  $region3: #{resblock_forward.3} parent=0 // loop_header
    %s10 = sphi 0, %s14
    %p11 = scmp.ge.s32.totalorder %s10, 4
    %s17 = sphi 0, %s29
    %s18 = sphi 0, %s25
    %s19 = sphi 0, %s17
    %s20 = sphi 0, %s18
    %s21 = sphi 0, %s19
    %s22 = sphi 0, %s20
    %s34 = sphi 0, %s36
    %s37 = sphi 0, %s34
    %s38 = sphi 0, %s37
    %s54 = sphi 0, %s38
    %s58 = sphi 0, %s58
    %s60 = sphi 0, %s58
    %s61 = sphi 0, %s60
    %s75 = sphi 0, %s61
    %s81 = sphi 0, %s83
    %s84 = sphi 0, %s81
    %s85 = sphi 0, %s84
    %s101 = sphi 0, %s85
    %s107 = sphi 0, %s109
    %s110 = sphi 0, %s107
    %s111 = sphi 0, %s110
    %s127 = sphi 0, %s111
  $region4: #{resblock_forward.3} parent=0 // loop_header_branch
    %13 = sbr.rel (%p11) target = $region8
  $region5: #{resblock_forward.3} parent=0 // loop_body
    %s15 = ssub.s32 %s10, 1
    %s16 = ssub.s32 %s10, 2
    %s23 = sadd.s32 1, %s18
    %p24 = scmp.ge.s32.totalorder %s23, 1
    %s25 = scalar_select %p24, 0, %s23
    %s26 = sadd.s32 1, %s17
    %s27 = scalar_select %p24, %s26, %s17
    %p28 = scmp.ge.s32.totalorder %s27, 2
    %s29 = scalar_select %p28, 0, %s27
    %s30 = ssub.s32 %s17, %s29
    %s31 = ssub.s32 %s18, %s25
    %s32 = sor.u32 %s30, %s31
    %p33 = scmp.eq.s32.totalorder %s32, 0
    %s35 = sadd.s32 %s34, 1
    %s36 = scalar_select %p33, %s34, %s35
    %p39 = pneg %p33
    %p40 = scmp.eq.s32.totalorder %s10, 1
    %p41 = por %p39, %p40
    %p42 = scmp.ne.s32.totalorder %s34, %s37
    %p43 = scmp.eq.s32.totalorder %s10, 0
    %p44 = por %p42, %p43
    %p45 = scmp.ne.s32.totalorder %s34, %s37
    %p46 = scmp.eq.s32.totalorder %s15, 1
    %p47 = por %p45, %p46
    %p48 = scmp.ne.s32.totalorder %s37, %s38
    %p49 = scmp.eq.s32.totalorder %s15, 0
    %p50 = por %p48, %p49
    %p51 = scmp.ne.s32.totalorder %s37, %s38
    %p52 = scmp.eq.s32.totalorder %s16, 1
    %p53 = por %p51, %p52
    %p55 = scmp.ne.s32.totalorder %s38, %s54
    %p56 = scmp.eq.s32.totalorder %s16, 0
    %p57 = por %p55, %p56
    %s59 = sadd.s32 %s58, 1
    %p62 = scmp.eq.s32.totalorder %s10, 1
    %p63 = scmp.ne.s32.totalorder %s58, %s60
    %p64 = scmp.eq.s32.totalorder %s10, 0
    %p65 = por %p63, %p64
    %p66 = scmp.ne.s32.totalorder %s58, %s60
    %p67 = scmp.eq.s32.totalorder %s15, 1
    %p68 = por %p66, %p67
    %p69 = scmp.ne.s32.totalorder %s60, %s61
    %p70 = scmp.eq.s32.totalorder %s15, 0
    %p71 = por %p69, %p70
    %p72 = scmp.ne.s32.totalorder %s60, %s61
    %p73 = scmp.eq.s32.totalorder %s16, 1
    %p74 = por %p72, %p73
    %p76 = scmp.ne.s32.totalorder %s61, %s75
    %p77 = scmp.eq.s32.totalorder %s16, 0
    %p78 = por %p76, %p77
    %s79 = ssub.s32 %s17, %s29
    %p80 = scmp.eq.s32.totalorder %s79, 0
    %s82 = sadd.s32 %s81, 1
    %s83 = scalar_select %p80, %s81, %s82
    %p86 = pneg %p80
    %p87 = scmp.eq.s32.totalorder %s10, 1
    %p88 = por %p86, %p87
    %p89 = scmp.ne.s32.totalorder %s81, %s84
    %p90 = scmp.eq.s32.totalorder %s10, 0
    %p91 = por %p89, %p90
    %p92 = scmp.ne.s32.totalorder %s81, %s84
    %p93 = scmp.eq.s32.totalorder %s15, 1
    %p94 = por %p92, %p93
    %p95 = scmp.ne.s32.totalorder %s84, %s85
    %p96 = scmp.eq.s32.totalorder %s15, 0
    %p97 = por %p95, %p96
    %p98 = scmp.ne.s32.totalorder %s84, %s85
    %p99 = scmp.eq.s32.totalorder %s16, 1
    %p100 = por %p98, %p99
    %p102 = scmp.ne.s32.totalorder %s85, %s101
    %p103 = scmp.eq.s32.totalorder %s16, 0
    %p104 = por %p102, %p103
    %s105 = ssub.s32 %s17, %s29
    %p106 = scmp.eq.s32.totalorder %s105, 0
    %s108 = sadd.s32 %s107, 1
    %s109 = scalar_select %p106, %s107, %s108
    %p112 = pneg %p106
    %p113 = scmp.eq.s32.totalorder %s10, 1
    %p114 = por %p112, %p113
    %p115 = scmp.ne.s32.totalorder %s107, %s110
    %p116 = scmp.eq.s32.totalorder %s10, 0
    %p117 = por %p115, %p116
    %p118 = scmp.ne.s32.totalorder %s107, %s110
    %p119 = scmp.eq.s32.totalorder %s15, 1
    %p120 = por %p118, %p119
    %p121 = scmp.ne.s32.totalorder %s110, %s111
    %p122 = scmp.eq.s32.totalorder %s15, 0
    %p123 = por %p121, %p122
    %p124 = scmp.ne.s32.totalorder %s110, %s111
    %p125 = scmp.eq.s32.totalorder %s16, 1
    %p126 = por %p124, %p125
    %p128 = scmp.ne.s32.totalorder %s111, %s127
    %p129 = scmp.eq.s32.totalorder %s16, 0
    %p130 = por %p128, %p129
    %p131 = scmp.le.s32.totalorder 1, %s10
    %p132 = scmp.lt.s32.totalorder %s10, 3
    %p133 = pnand %p131, %p132
    %p134 = pneg %p133
    // Predicated region
    $region9: #{resblock_forward.3} parent=5 // pred_check
      _
    $region10: #{resblock_forward.3} parent=5 // pred_check_branch
      %136 = sbr.rel (%p133) target = $region12
    $region11: #{resblock_forward.3} parent=5 // pred_region
      %s137 = ssub.s32 %s10, 1
      // Predicated region
      $region13: #{resblock_forward.3} parent=11 // pred_check
        %p138 = pneg %p71
      $region14: #{resblock_forward.3} parent=11 // pred_check_branch
        %140 = sbr.rel (%p138) target = $region16
      $region15: #{resblock_forward.3} parent=11 // pred_region
        _
      $region16: #{resblock_forward.3} parent=11 // pred_fallthru
        _
    $region12: #{resblock_forward.3} parent=5 // pred_fallthru
      _
    %p141 = scmp.lt.s32.totalorder %s10, 2
    // Predicated region
    $region17: #{resblock_forward.3} parent=5 // pred_check
      %p142 = pneg %p141
    $region18: #{resblock_forward.3} parent=5 // pred_check_branch
      %144 = sbr.rel (%p142) target = $region20
    $region19: #{resblock_forward.3} parent=5 // pred_region
      // Predicated region
      $region21: #{resblock_forward.3} parent=19 // pred_check
        %p145 = pneg %p44
      $region22: #{resblock_forward.3} parent=19 // pred_check_branch
        %147 = sbr.rel (%p145) target = $region24
      $region23: #{resblock_forward.3} parent=19 // pred_region
        %s148 = smul.u32 8, %s17
        %p149 = scmp.lt.s32.totalorder %s148, 15
        %s150 = scalar_select %p149, %s148, 15
        %p151 = scmp.lt.s32.totalorder %s18, 0
        %s152 = scalar_select %p151, %s18, 0
        %s153 = sadd.s32 %s152, %s150
        %s154 = smul.addr %s153, 4
        %s155 = scalar_lea.vmem %s0, %s154
        %s156 = smul.u32 8, %s17
      $region24: #{resblock_forward.3} parent=19 // pred_fallthru
        _
    $region20: #{resblock_forward.3} parent=5 // pred_fallthru
      _
    %p157 = scmp.le.s32.totalorder 1, %s10
    %p158 = scmp.lt.s32.totalorder %s10, 3
    %p159 = pnand %p157, %p158
    %p160 = pneg %p159
    // Predicated region
    $region25: #{resblock_forward.3} parent=5 // pred_check
      _
    $region26: #{resblock_forward.3} parent=5 // pred_check_branch
      %162 = sbr.rel (%p159) target = $region28
    $region27: #{resblock_forward.3} parent=5 // pred_region
      %s163 = ssub.s32 %s10, 1
      %s164 = smul.u32 8, %s19
      %p165 = scmp.lt.s32.totalorder %s164, 15
      %s166 = scalar_select %p165, %s164, 15
      %p167 = scmp.lt.s32.totalorder %s20, 0
      %s168 = scalar_select %p167, %s20, 0
      %s169 = sadd.s32 %s168, %s166
      %s170 = smul.addr %s169, 4
      %s171 = scalar_lea.vmem %s0, %s170
      %p172 = pneg %p50
      %p173 = pneg %p47
      %p174 = pneg %p71
      %p175 = pneg %p68
      %p176 = pneg %p97
      %p177 = pneg %p94
      %s178 = smul.u32 8, %s19
      %p179 = scmp.lt.s32.totalorder %s178, 15
      %s180 = scalar_select %p179, %s178, 15
      %s181 = smul.addr %s180, 2
      %s182 = smul.addr %s181, 4
      %s183 = scalar_lea.vmem %s2, %s182
      %p184 = pneg %p123
      %p185 = pneg %p120
      %p186 = scmp.lt.s32.totalorder %s19, 1
      %s187 = scalar_select %p186, %s19, 1
      %s188 = smul.addr %s187, 2
      %s189 = smul.addr %s188, 8
      %s190 = scalar_lea.vmem %s3, %s189
      %s191 = smul.u32 8, %s19
      %p192 = scmp.lt.s32.totalorder %s191, 15
      %s193 = scalar_select %p192, %s191, 15
      %p194 = scmp.lt.s32.totalorder %s20, 0
      %s195 = scalar_select %p194, %s20, 0
      %s196 = sadd.s32 %s195, %s193
      %s197 = smul.addr %s196, 4
      %s198 = scalar_lea.vmem %s0, %s197
      %s199 = smul.u32 8, %s19
      %s200 = smul.u32 8, %s19
      %p201 = scmp.lt.s32.totalorder %s200, 15
      %s202 = scalar_select %p201, %s200, 15
      %s203 = smul.addr %s202, 2
      %s204 = smul.addr %s203, 4
      %s205 = scalar_lea.vmem %s2, %s204
      %s206 = smul.u32 8, %s19
      %p207 = scmp.lt.s32.totalorder %s19, 1
      %s208 = scalar_select %p207, %s19, 1
      %s209 = smul.addr %s208, 2
      %s210 = smul.addr %s209, 8
      %s211 = scalar_lea.vmem %s3, %s210
      %s213 = smul.u32 %s19, 64
      %v214 = vld [vmem:[%s198] sm:$0xf]
      %v215 = vld [vmem:[%s198 + $0x4] sm:$0xf]
      %v216 = vld [vmem:[%s198 + $0x8] sm:$0xf]
      %v217 = vld [vmem:[%s198 + $0xc] sm:$0xf]
      %v218 = vld [vmem:[%s198 + $0x10] sm:$0xf]
      %v219 = vld [vmem:[%s198 + $0x14] sm:$0xf]
      %v220 = vld [vmem:[%s198 + $0x18] sm:$0xf]
      %v221 = vld [vmem:[%s198 + $0x1c] sm:$0xf]
      %v222 = vld [vmem:[%s1] sm:$0xff]
      %v223 = vld [vmem:[%s1 + $0x8] sm:$0xff]
      %v224 = vld [vmem:[%s1 + $0x10] sm:$0xff]
      %v225 = vld [vmem:[%s1 + $0x18] sm:$0xff]
      %v226 = vld [vmem:[%s1 + $0x20] sm:$0x33]
      %v235 = vunpack.c.l.b16 %v214
      %v236 = vunpack.c.l.b16 %v215
      %v237 = vunpack.c.l.b16 %v216
      %v238 = vunpack.c.l.b16 %v217
      %v239 = vunpack.c.l.b16 %v218
      %v240 = vunpack.c.l.b16 %v219
      %v241 = vunpack.c.l.b16 %v220
      %v242 = vunpack.c.l.b16 %v221
      %v243 = vpack.c.b16 %v236, %v235
      %v244 = vpack.c.b16 %v238, %v237
      %v245 = vpack.c.b16 %v240, %v239
      %v246 = vpack.c.b16 %v242, %v241
      %v252 = vunpack.c.l.b16 %v222
      %v253 = vunpack.c.h.b16 %v222
      %v254 = vunpack.c.l.b16 %v223
      %v255 = vunpack.c.h.b16 %v223
      %v256 = vunpack.c.l.b16 %v224
      %v257 = vunpack.c.h.b16 %v224
      %v258 = vunpack.c.l.b16 %v225
      %v259 = vunpack.c.h.b16 %v225
      %v260 = vunpack.c.l.b16 %v226
      %v261 = vunpack.c.h.b16 %v226
      %v262 = vpack.c.b16 %v254, %v252
      %v263 = vpack.c.b16 %v255, %v253
      %v264 = vpack.c.b16 %v258, %v256
      %v265 = vpack.c.b16 %v259, %v257
      %v266 = vpack.c.b16 %v260, %v260
      %v267 = vpack.c.b16 %v261, %v261
      %vm272 = vcmask 293888
      %v274 = vsel %vm272, %v243, 0
      %v277 = vsel %vm272, %v244, 0
      %v280 = vsel %vm272, %v245, 0
      %v283 = vsel %vm272, %v246, 0
      %vm285 = vcmask 1041408
      %v287 = vsel %vm285, %v266, 0
      %v290 = vsel %vm285, %v267, 0
      %292 = vmatpush.bf16.msra.mxu0 0
      %293 = vmatpush.bf16.msra.mxu0 0
      %294 = vmatpush.bf16.msra.mxu0 0
      %295 = vmatpush.bf16.msra.mxu0 0
      %296 = vmatpush.bf16.msra.mxu0 0
      %297 = vmatpush.bf16.msra.mxu0 %v287
      %298 = vmatpush.bf16.msra.mxu0 %v264
      %299 = vmatpush.bf16.msra.mxu0 %v262
      %300 = vmatmul.bf16.gmra.mxu0 %v274
      %v301 = vpop.f32.mrf.mxu0
      %v302 = vadd.f32 0.0, %v301
      %v303 = vpop.f32.mrf.mxu0
      %v304 = vadd.f32 0.0, %v303
      %305 = vmatmul.bf16.gmra.mxu0 %v277
      %v306 = vpop.f32.mrf.mxu0
      %v307 = vadd.f32 0.0, %v306
      %v308 = vpop.f32.mrf.mxu0
      %v309 = vadd.f32 0.0, %v308
      %310 = vmatmul.bf16.gmra.mxu0 %v280
      %v311 = vpop.f32.mrf.mxu0
      %v312 = vadd.f32 0.0, %v311
      %v313 = vpop.f32.mrf.mxu0
      %v314 = vadd.f32 0.0, %v313
      %315 = vmatmul.bf16.gmra.mxu0 %v283
      %v316 = vpop.f32.mrf.mxu0
      %v317 = vadd.f32 0.0, %v316
      %v318 = vpop.f32.mrf.mxu0
      %v319 = vadd.f32 0.0, %v318
      %320 = vdwg.mxu0
      %321 = vmatpush.bf16.msra.mxu0 0
      %322 = vmatpush.bf16.msra.mxu0 0
      %323 = vmatpush.bf16.msra.mxu0 0
      %324 = vmatpush.bf16.msra.mxu0 0
      %325 = vmatpush.bf16.msra.mxu0 0
      %326 = vmatpush.bf16.msra.mxu0 %v290
      %327 = vmatpush.bf16.msra.mxu0 %v265
      %328 = vmatpush.bf16.msra.mxu0 %v263
      %329 = vmatmul.bf16.gmra.mxu0 %v274
      %v330 = vpop.f32.mrf.mxu0
      %v331 = vadd.f32 0.0, %v330
      %v332 = vpop.f32.mrf.mxu0
      %v333 = vadd.f32 0.0, %v332
      %334 = vmatmul.bf16.gmra.mxu0 %v277
      %v335 = vpop.f32.mrf.mxu0
      %v336 = vadd.f32 0.0, %v335
      %v337 = vpop.f32.mrf.mxu0
      %v338 = vadd.f32 0.0, %v337
      %339 = vmatmul.bf16.gmra.mxu0 %v280
      %v340 = vpop.f32.mrf.mxu0
      %v341 = vadd.f32 0.0, %v340
      %v342 = vpop.f32.mrf.mxu0
      %v343 = vadd.f32 0.0, %v342
      %344 = vmatmul.bf16.gmra.mxu0 %v283
      %v345 = vpop.f32.mrf.mxu0
      %v346 = vadd.f32 0.0, %v345
      %v347 = vpop.f32.mrf.mxu0
      %v348 = vadd.f32 0.0, %v347
      %349 = vdwg.mxu0
      %v350 = vpack.c.bf16 %v331, %v302
      %v351 = vpack.c.bf16 %v333, %v304
      %v352 = vpack.c.bf16 %v336, %v307
      %v353 = vpack.c.bf16 %v338, %v309
      %v354 = vpack.c.bf16 %v341, %v312
      %v355 = vpack.c.bf16 %v343, %v314
      %v356 = vpack.c.bf16 %v346, %v317
      %v357 = vpack.c.bf16 %v348, %v319
      %358 = vst [vmem:[%s205] sm:$0xff] %v350
      %359 = vst [vmem:[%s205 + $0x8] sm:$0xff] %v351
      %360 = vst [vmem:[%s205 + $0x10] sm:$0xff] %v352
      %361 = vst [vmem:[%s205 + $0x18] sm:$0xff] %v353
      %362 = vst [vmem:[%s205 + $0x20] sm:$0xff] %v354
      %363 = vst [vmem:[%s205 + $0x28] sm:$0xff] %v355
      %364 = vst [vmem:[%s205 + $0x30] sm:$0xff] %v356
      %365 = vst [vmem:[%s205 + $0x38] sm:$0xff] %v357
      %v366 = vlaneseq
      %v367 = vshrl.u32 %v366, 7
      %v368 = vadd.s32 %v367, 8
      %v369 = vadd.s32 %v367, 16
      %v370 = vadd.s32 %v367, 24
      %v371 = vadd.s32 %v367, 32
      %v372 = vadd.s32 %v367, 40
      %v373 = vadd.s32 %v367, 48
      %v374 = vadd.s32 %v367, 56
      %v375 = vstv %s213
      %v376 = vadd.s32 %v367, %v375
      %v377 = vadd.s32 %v368, %v375
      %v378 = vadd.s32 %v369, %v375
      %v379 = vadd.s32 %v370, %v375
      %v380 = vadd.s32 %v371, %v375
      %v381 = vadd.s32 %v372, %v375
      %v382 = vadd.s32 %v373, %v375
      %v383 = vadd.s32 %v374, %v375
      %vm384 = vcmp.lt.s32.totalorder %v376, 128
      %vm385 = vcmp.lt.s32.totalorder %v377, 128
      %vm386 = vcmp.lt.s32.totalorder %v378, 128
      %vm387 = vcmp.lt.s32.totalorder %v379, 128
      %vm388 = vcmp.lt.s32.totalorder %v380, 128
      %vm389 = vcmp.lt.s32.totalorder %v381, 128
      %vm390 = vcmp.lt.s32.totalorder %v382, 128
      %vm391 = vcmp.lt.s32.totalorder %v383, 128
      %v392 = vsel %vm384, %v302, 0.0
      %v393 = vsel %vm384, %v331, 0.0
      %v394 = vsel %vm385, %v304, 0.0
      %v395 = vsel %vm385, %v333, 0.0
      %v396 = vsel %vm386, %v307, 0.0
      %v397 = vsel %vm386, %v336, 0.0
      %v398 = vsel %vm387, %v309, 0.0
      %v399 = vsel %vm387, %v338, 0.0
      %v400 = vsel %vm388, %v312, 0.0
      %v401 = vsel %vm388, %v341, 0.0
      %v402 = vsel %vm389, %v314, 0.0
      %v403 = vsel %vm389, %v343, 0.0
      %v404 = vsel %vm390, %v317, 0.0
      %v405 = vsel %vm390, %v346, 0.0
      %v406 = vsel %vm391, %v319, 0.0
      %v407 = vsel %vm391, %v348, 0.0
      %v408 = vadd.f32 %v392, %v394
      %v409 = vadd.f32 %v408, %v396
      %v410 = vadd.f32 %v409, %v398
      %v411 = vadd.f32 %v410, %v400
      %v412 = vadd.f32 %v411, %v402
      %v413 = vadd.f32 %v412, %v404
      %v414 = vadd.f32 %v413, %v406
      %v415 = vrot.slane %v414, 4
      %v416 = vadd.f32 %v414, %v415
      %v417 = vrot.slane %v416, 2
      %v418 = vadd.f32 %v416, %v417
      %v419 = vrot.slane %v418, 1
      %v420 = vadd.f32 %v418, %v419
      %v421 = vadd.f32 %v393, %v395
      %v422 = vadd.f32 %v421, %v397
      %v423 = vadd.f32 %v422, %v399
      %v424 = vadd.f32 %v423, %v401
      %v425 = vadd.f32 %v424, %v403
      %v426 = vadd.f32 %v425, %v405
      %v427 = vadd.f32 %v426, %v407
      %v428 = vrot.slane %v427, 4
      %v429 = vadd.f32 %v427, %v428
      %v430 = vrot.slane %v429, 2
      %v431 = vadd.f32 %v429, %v430
      %v432 = vrot.slane %v431, 1
      %v433 = vadd.f32 %v431, %v432
      %v434 = vmul.f32 %v392, %v392
      %v435 = vmul.f32 %v393, %v393
      %v436 = vmul.f32 %v394, %v394
      %v437 = vmul.f32 %v395, %v395
      %v438 = vmul.f32 %v396, %v396
      %v439 = vmul.f32 %v397, %v397
      %v440 = vmul.f32 %v398, %v398
      %v441 = vmul.f32 %v399, %v399
      %v442 = vmul.f32 %v400, %v400
      %v443 = vmul.f32 %v401, %v401
      %v444 = vmul.f32 %v402, %v402
      %v445 = vmul.f32 %v403, %v403
      %v446 = vmul.f32 %v404, %v404
      %v447 = vmul.f32 %v405, %v405
      %v448 = vmul.f32 %v406, %v406
      %v449 = vmul.f32 %v407, %v407
      %v450 = vadd.f32 %v434, %v436
      %v451 = vadd.f32 %v450, %v438
      %v452 = vadd.f32 %v451, %v440
      %v453 = vadd.f32 %v452, %v442
      %v454 = vadd.f32 %v453, %v444
      %v455 = vadd.f32 %v454, %v446
      %v456 = vadd.f32 %v455, %v448
      %v457 = vrot.slane %v456, 4
      %v458 = vadd.f32 %v456, %v457
      %v459 = vrot.slane %v458, 2
      %v460 = vadd.f32 %v458, %v459
      %v461 = vrot.slane %v460, 1
      %v462 = vadd.f32 %v460, %v461
      %v463 = vadd.f32 %v435, %v437
      %v464 = vadd.f32 %v463, %v439
      %v465 = vadd.f32 %v464, %v441
      %v466 = vadd.f32 %v465, %v443
      %v467 = vadd.f32 %v466, %v445
      %v468 = vadd.f32 %v467, %v447
      %v469 = vadd.f32 %v468, %v449
      %v470 = vrot.slane %v469, 4
      %v471 = vadd.f32 %v469, %v470
      %v472 = vrot.slane %v471, 2
      %v473 = vadd.f32 %v471, %v472
      %v474 = vrot.slane %v473, 1
      %v475 = vadd.f32 %v473, %v474
      %vm476 = vcmask 1040384
      %v477 = vsel %vm476, %v420, %v462
      %v478 = vsel %vm476, %v433, %v475
      %v479 = vsel %vm285, %v477, 0.0
      %v480 = vsel %vm285, %v478, 0.0
      %481 = vst [vmem:[%s211] sm:$0xff] %v479
      %482 = vst [vmem:[%s211 + $0x8] sm:$0xff] %v480
      %s483 = smul.u32 8, %s19
      %p484 = scmp.lt.s32.totalorder %s483, 15
      %s485 = scalar_select %p484, %s483, 15
      %s486 = smul.addr %s485, 2
      %s487 = smul.addr %s486, 4
      %s488 = scalar_lea.vmem %s2, %s487
      %p489 = scmp.lt.s32.totalorder %s19, 1
      %s490 = scalar_select %p489, %s19, 1
      %s491 = smul.addr %s490, 2
      %s492 = smul.addr %s491, 8
      %s493 = scalar_lea.vmem %s3, %s492
      // Predicated region
      $region29: #{resblock_forward.3} parent=27 // pred_check
        %p494 = pneg %p94
      $region30: #{resblock_forward.3} parent=27 // pred_check_branch
        %496 = sbr.rel (%p494) target = $region32
      $region31: #{resblock_forward.3} parent=27 // pred_region
        %s497 = smul.u32 8, %s19
      $region32: #{resblock_forward.3} parent=27 // pred_fallthru
        _
      // Predicated region
      $region33: #{resblock_forward.3} parent=27 // pred_check
        %p498 = pneg %p120
      $region34: #{resblock_forward.3} parent=27 // pred_check_branch
        %500 = sbr.rel (%p498) target = $region36
      $region35: #{resblock_forward.3} parent=27 // pred_region
        _
      $region36: #{resblock_forward.3} parent=27 // pred_fallthru
        _
    $region28: #{resblock_forward.3} parent=5 // pred_fallthru
      _
    %p501 = scmp.le.s32.totalorder 2, %s10
    // Predicated region
    $region37: #{resblock_forward.3} parent=5 // pred_check
      %p502 = pneg %p501
    $region38: #{resblock_forward.3} parent=5 // pred_check_branch
      %504 = sbr.rel (%p502) target = $region40
    $region39: #{resblock_forward.3} parent=5 // pred_region
      %s505 = ssub.s32 %s10, 2
      // Predicated region
      $region41: #{resblock_forward.3} parent=39 // pred_check
        %p506 = pneg %p100
      $region42: #{resblock_forward.3} parent=39 // pred_check_branch
        %508 = sbr.rel (%p506) target = $region44
      $region43: #{resblock_forward.3} parent=39 // pred_region
        %s509 = smul.u32 8, %s21
        %p510 = scmp.lt.s32.totalorder %s509, 15
        %s511 = scalar_select %p510, %s509, 15
        %s512 = smul.addr %s511, 2
        %s513 = smul.addr %s512, 4
        %s514 = scalar_lea.vmem %s2, %s513
      $region44: #{resblock_forward.3} parent=39 // pred_fallthru
        _
      // Predicated region
      $region45: #{resblock_forward.3} parent=39 // pred_check
        %p515 = pneg %p126
      $region46: #{resblock_forward.3} parent=39 // pred_check_branch
        %517 = sbr.rel (%p515) target = $region48
      $region47: #{resblock_forward.3} parent=39 // pred_region
        %p518 = scmp.lt.s32.totalorder %s21, 1
        %s519 = scalar_select %p518, %s21, 1
        %s520 = smul.addr %s519, 2
        %s521 = smul.addr %s520, 8
        %s522 = scalar_lea.vmem %s3, %s521
      $region48: #{resblock_forward.3} parent=39 // pred_fallthru
        _
    $region40: #{resblock_forward.3} parent=5 // pred_fallthru
      _
  $region6: #{resblock_forward.3} parent=0 // loop_footer
    %s14 = sadd.s32 1, %s10
  $region7: #{resblock_forward.3} parent=0 // loop_footer_branch
    %9 = sbr.rel target = $region3
  $region8: #{resblock_forward.3} parent=0 // loop_exit
    _

// kernel: resblock_forward.5
$region0: #{resblock_forward.5}
  #allocation0 [shape = 'u32[]', space=smem, size = 0x4, offset = 0x4, fixed_abs, tag = 'smem constant byte address 0x4 - core index']
  #allocation1 [shape = 'u32[72,128]{1,0:T(1,128)}', space=vmem, size = 0x9000, scoped, tag = 'internal scratch']
  %s0 = inlined_call_operand.vmem [shape: bf16[128,128], index: 0, kind: input, shape index: {}]
  %s1 = inlined_call_operand.vmem [shape: f32[1,128], index: 1, kind: input, shape index: {}]
  %s2 = inlined_call_operand.vmem [shape: f32[1,128], index: 2, kind: input, shape index: {}]
  %s3 = inlined_call_operand.vmem [shape: bf16[128,256], index: 3, kind: input, shape index: {}]
  %s4 = inlined_call_operand.vmem [shape: f32[1,128], index: 4, kind: input, shape index: {}]
  %s5 = inlined_call_operand.vmem [shape: f32[1,128], index: 5, kind: input, shape index: {}]
  %s6 = inlined_call_operand.vmem [shape: f32[128,8], index: 6, kind: output, shape index: {}]
  %s7 = sld [smem:[#allocation0]]
  $region98: #{resblock_forward.5} parent=0
    _
  %s9 = ssub.s32 1, %s7
  %s10 = scalar_select 0, %s9, %s7
  $region1: #{resblock_forward.5} parent=0
    #allocation2 [shape = 'u8[32768]{0}', space=vmem, size = 0x8000, scoped, tag = 'input window, operand 3']
    loop: start=0, step=1, limit=4
    $region2: #{resblock_forward.5} parent=1 // loop_pre_header
      _
    $region3: #{resblock_forward.5} parent=1 // loop_header
      %s12 = sphi 0, %s16
      %p13 = scmp.ge.s32.totalorder %s12, 4
      %s22 = sphi 0, %s24
      %s25 = sphi 0, %s22
      %s26 = sphi 0, %s25
      %s42 = sphi 0, %s26
      %s46 = sphi 0, %s46
      %s48 = sphi 0, %s46
      %s49 = sphi 0, %s48
      %s63 = sphi 0, %s49
      %s67 = sphi 0, %s67
      %s69 = sphi 0, %s67
      %s70 = sphi 0, %s69
      %s84 = sphi 0, %s70
      %s90 = sphi 0, %s92
      %s93 = sphi 0, %s90
      %s94 = sphi 0, %s93
      %s110 = sphi 0, %s94
      %s114 = sphi 0, %s114
      %s116 = sphi 0, %s114
      %s117 = sphi 0, %s116
      %s131 = sphi 0, %s117
      %s135 = sphi 0, %s135
      %s137 = sphi 0, %s135
      %s138 = sphi 0, %s137
      %s152 = sphi 0, %s138
      %s158 = sphi 0, %s160
      %s161 = sphi 0, %s158
      %s162 = sphi 0, %s161
      %s178 = sphi 0, %s162
    $region4: #{resblock_forward.5} parent=1 // loop_header_branch
      %15 = sbr.rel (%p13) target = $region8
    $region5: #{resblock_forward.5} parent=1 // loop_body
      %s17 = ssub.s32 %s12, 1
      %s18 = ssub.s32 %s12, 2
      %s19 = sadd.s32 %s12, 1
      %s20 = ssub.s32 %s12, %s19
      %p21 = scmp.eq.s32.totalorder %s20, 0
      %s23 = sadd.s32 %s22, 1
      %s24 = scalar_select %p21, %s22, %s23
      %p27 = pneg %p21
      %p28 = scmp.eq.s32.totalorder %s12, 1
      %p29 = por %p27, %p28
      %p30 = scmp.ne.s32.totalorder %s22, %s25
      %p31 = scmp.eq.s32.totalorder %s12, 0
      %p32 = por %p30, %p31
      %p33 = scmp.ne.s32.totalorder %s22, %s25
      %p34 = scmp.eq.s32.totalorder %s17, 1
      %p35 = por %p33, %p34
      %p36 = scmp.ne.s32.totalorder %s25, %s26
      %p37 = scmp.eq.s32.totalorder %s17, 0
      %p38 = por %p36, %p37
      %p39 = scmp.ne.s32.totalorder %s25, %s26
      %p40 = scmp.eq.s32.totalorder %s18, 1
      %p41 = por %p39, %p40
      %p43 = scmp.ne.s32.totalorder %s26, %s42
      %p44 = scmp.eq.s32.totalorder %s18, 0
      %p45 = por %p43, %p44
      %s47 = sadd.s32 %s46, 1
      %p50 = scmp.eq.s32.totalorder %s12, 1
      %p51 = scmp.ne.s32.totalorder %s46, %s48
      %p52 = scmp.eq.s32.totalorder %s12, 0
      %p53 = por %p51, %p52
      %p54 = scmp.ne.s32.totalorder %s46, %s48
      %p55 = scmp.eq.s32.totalorder %s17, 1
      %p56 = por %p54, %p55
      %p57 = scmp.ne.s32.totalorder %s48, %s49
      %p58 = scmp.eq.s32.totalorder %s17, 0
      %p59 = por %p57, %p58
      %p60 = scmp.ne.s32.totalorder %s48, %s49
      %p61 = scmp.eq.s32.totalorder %s18, 1
      %p62 = por %p60, %p61
      %p64 = scmp.ne.s32.totalorder %s49, %s63
      %p65 = scmp.eq.s32.totalorder %s18, 0
      %p66 = por %p64, %p65
      %s68 = sadd.s32 %s67, 1
      %p71 = scmp.eq.s32.totalorder %s12, 1
      %p72 = scmp.ne.s32.totalorder %s67, %s69
      %p73 = scmp.eq.s32.totalorder %s12, 0
      %p74 = por %p72, %p73
      %p75 = scmp.ne.s32.totalorder %s67, %s69
      %p76 = scmp.eq.s32.totalorder %s17, 1
      %p77 = por %p75, %p76
      %p78 = scmp.ne.s32.totalorder %s69, %s70
      %p79 = scmp.eq.s32.totalorder %s17, 0
      %p80 = por %p78, %p79
      %p81 = scmp.ne.s32.totalorder %s69, %s70
      %p82 = scmp.eq.s32.totalorder %s18, 1
      %p83 = por %p81, %p82
      %p85 = scmp.ne.s32.totalorder %s70, %s84
      %p86 = scmp.eq.s32.totalorder %s18, 0
      %p87 = por %p85, %p86
      %s88 = ssub.s32 %s12, %s19
      %p89 = scmp.eq.s32.totalorder %s88, 0
      %s91 = sadd.s32 %s90, 1
      %s92 = scalar_select %p89, %s90, %s91
      %p95 = pneg %p89
      %p96 = scmp.eq.s32.totalorder %s12, 1
      %p97 = por %p95, %p96
      %p98 = scmp.ne.s32.totalorder %s90, %s93
      %p99 = scmp.eq.s32.totalorder %s12, 0
      %p100 = por %p98, %p99
      %p101 = scmp.ne.s32.totalorder %s90, %s93
      %p102 = scmp.eq.s32.totalorder %s17, 1
      %p103 = por %p101, %p102
      %p104 = scmp.ne.s32.totalorder %s93, %s94
      %p105 = scmp.eq.s32.totalorder %s17, 0
      %p106 = por %p104, %p105
      %p107 = scmp.ne.s32.totalorder %s93, %s94
      %p108 = scmp.eq.s32.totalorder %s18, 1
      %p109 = por %p107, %p108
      %p111 = scmp.ne.s32.totalorder %s94, %s110
      %p112 = scmp.eq.s32.totalorder %s18, 0
      %p113 = por %p111, %p112
      %s115 = sadd.s32 %s114, 1
      %p118 = scmp.eq.s32.totalorder %s12, 1
      %p119 = scmp.ne.s32.totalorder %s114, %s116
      %p120 = scmp.eq.s32.totalorder %s12, 0
      %p121 = por %p119, %p120
      %p122 = scmp.ne.s32.totalorder %s114, %s116
      %p123 = scmp.eq.s32.totalorder %s17, 1
      %p124 = por %p122, %p123
      %p125 = scmp.ne.s32.totalorder %s116, %s117
      %p126 = scmp.eq.s32.totalorder %s17, 0
      %p127 = por %p125, %p126
      %p128 = scmp.ne.s32.totalorder %s116, %s117
      %p129 = scmp.eq.s32.totalorder %s18, 1
      %p130 = por %p128, %p129
      %p132 = scmp.ne.s32.totalorder %s117, %s131
      %p133 = scmp.eq.s32.totalorder %s18, 0
      %p134 = por %p132, %p133
      %s136 = sadd.s32 %s135, 1
      %p139 = scmp.eq.s32.totalorder %s12, 1
      %p140 = scmp.ne.s32.totalorder %s135, %s137
      %p141 = scmp.eq.s32.totalorder %s12, 0
      %p142 = por %p140, %p141
      %p143 = scmp.ne.s32.totalorder %s135, %s137
      %p144 = scmp.eq.s32.totalorder %s17, 1
      %p145 = por %p143, %p144
      %p146 = scmp.ne.s32.totalorder %s137, %s138
      %p147 = scmp.eq.s32.totalorder %s17, 0
      %p148 = por %p146, %p147
      %p149 = scmp.ne.s32.totalorder %s137, %s138
      %p150 = scmp.eq.s32.totalorder %s18, 1
      %p151 = por %p149, %p150
      %p153 = scmp.ne.s32.totalorder %s138, %s152
      %p154 = scmp.eq.s32.totalorder %s18, 0
      %p155 = por %p153, %p154
      %s156 = ssub.s32 %s12, %s19
      %p157 = scmp.eq.s32.totalorder %s156, 0
      %s159 = sadd.s32 %s158, 1
      %s160 = scalar_select %p157, %s158, %s159
      %p163 = pneg %p157
      %p164 = scmp.eq.s32.totalorder %s12, 1
      %p165 = por %p163, %p164
      %p166 = scmp.ne.s32.totalorder %s158, %s161
      %p167 = scmp.eq.s32.totalorder %s12, 0
      %p168 = por %p166, %p167
      %p169 = scmp.ne.s32.totalorder %s158, %s161
      %p170 = scmp.eq.s32.totalorder %s17, 1
      %p171 = por %p169, %p170
      %p172 = scmp.ne.s32.totalorder %s161, %s162
      %p173 = scmp.eq.s32.totalorder %s17, 0
      %p174 = por %p172, %p173
      %p175 = scmp.ne.s32.totalorder %s161, %s162
      %p176 = scmp.eq.s32.totalorder %s18, 1
      %p177 = por %p175, %p176
      %p179 = scmp.ne.s32.totalorder %s162, %s178
      %p180 = scmp.eq.s32.totalorder %s18, 0
      %p181 = por %p179, %p180
      %p182 = scmp.le.s32.totalorder 1, %s12
      %p183 = scmp.lt.s32.totalorder %s12, 3
      %p184 = pnand %p182, %p183
      %p185 = pneg %p184
      // Predicated region
      $region9: #{resblock_forward.5} parent=5 // pred_check
        _
      $region10: #{resblock_forward.5} parent=5 // pred_check_branch
        %187 = sbr.rel (%p184) target = $region12
      $region11: #{resblock_forward.5} parent=5 // pred_region
        %s188 = ssub.s32 %s12, 1
        // Predicated region
        $region13: #{resblock_forward.5} parent=11 // pred_check
          %p189 = pneg %p59
        $region14: #{resblock_forward.5} parent=11 // pred_check_branch
          %191 = sbr.rel (%p189) target = $region16
        $region15: #{resblock_forward.5} parent=11 // pred_region
          _
        $region16: #{resblock_forward.5} parent=11 // pred_fallthru
          _
        // Predicated region
        $region17: #{resblock_forward.5} parent=11 // pred_check
          %p192 = pneg %p80
        $region18: #{resblock_forward.5} parent=11 // pred_check_branch
          %194 = sbr.rel (%p192) target = $region20
        $region19: #{resblock_forward.5} parent=11 // pred_region
          _
        $region20: #{resblock_forward.5} parent=11 // pred_fallthru
          _
        // Predicated region
        $region21: #{resblock_forward.5} parent=11 // pred_check
          %p195 = pneg %p127
        $region22: #{resblock_forward.5} parent=11 // pred_check_branch
          %197 = sbr.rel (%p195) target = $region24
        $region23: #{resblock_forward.5} parent=11 // pred_region
          _
        $region24: #{resblock_forward.5} parent=11 // pred_fallthru
          _
        // Predicated region
        $region25: #{resblock_forward.5} parent=11 // pred_check
          %p198 = pneg %p148
        $region26: #{resblock_forward.5} parent=11 // pred_check_branch
          %200 = sbr.rel (%p198) target = $region28
        $region27: #{resblock_forward.5} parent=11 // pred_region
          _
        $region28: #{resblock_forward.5} parent=11 // pred_fallthru
          _
      $region12: #{resblock_forward.5} parent=5 // pred_fallthru
        _
      %p201 = scmp.lt.s32.totalorder %s12, 2
      // Predicated region
      $region29: #{resblock_forward.5} parent=5 // pred_check
        %p202 = pneg %p201
      $region30: #{resblock_forward.5} parent=5 // pred_check_branch
        %204 = sbr.rel (%p202) target = $region32
      $region31: #{resblock_forward.5} parent=5 // pred_region
        // Predicated region
        $region33: #{resblock_forward.5} parent=31 // pred_check
          %p205 = pneg %p32
        $region34: #{resblock_forward.5} parent=31 // pred_check_branch
          %207 = sbr.rel (%p205) target = $region36
        $region35: #{resblock_forward.5} parent=31 // pred_region
          %s208 = smul.u32 8, %s12
          %p209 = scmp.lt.s32.totalorder %s208, 15
          %s210 = scalar_select %p209, %s208, 15
          %s211 = smul.addr %s210, 4
          %s212 = scalar_lea.vmem %s0, %s211
          %s213 = smul.u32 8, %s12
        $region36: #{resblock_forward.5} parent=31 // pred_fallthru
          _
        // Predicated region
        $region37: #{resblock_forward.5} parent=31 // pred_check
          %p214 = pneg %p100
        $region38: #{resblock_forward.5} parent=31 // pred_check_branch
          %216 = sbr.rel (%p214) target = $region40
        $region39: #{resblock_forward.5} parent=31 // pred_region
          %s217 = sand.u32 %s90, 1
          %s218 = sand.u32 %s90, 1
          %s219 = smul.addr %s218, 32
          %s220 = scalar_lea.vmem [#allocation2], %s219
          %s221 = smul.u32 8, %s12
          %s222 = smul.addr %s221, 2
          %s223 = sadd.s32 1, %s222
          %s224 = smul.addr %s223, 4
          %s225 = scalar_lea.vmem %s3, %s224
          // Predicated region
          $region41: #{resblock_forward.5} parent=39 // pred_check
            _
          $region42: #{resblock_forward.5} parent=39 // pred_check_branch
            %227 = sbr.rel (0) target = $region44
          $region43: #{resblock_forward.5} parent=39 // pred_region
            // Predicated region
            $region45: #{resblock_forward.5} parent=43 // pred_check
              _
            $region46: #{resblock_forward.5} parent=43 // pred_check_branch
              %229 = sbr.rel target = $region48
            $region47: #{resblock_forward.5} parent=43 // pred_region
              // Predicated region
              $region60: #{resblock_forward.5} parent=47 // pred_check
                _
              $region61: #{resblock_forward.5} parent=47 // pred_check_branch
                %259 = sbr.rel (0) target = $region63
              $region62: #{resblock_forward.5} parent=47 // pred_region
                loop: start=0, step=1, limit=1
                $region64: #{resblock_forward.5} parent=62 // loop_pre_header
                  _
                $region65: #{resblock_forward.5} parent=62 // loop_header
                  %s261 = sphi 0, %s265
                  %p262 = scmp.ge.s32.totalorder %s261, 1
                  %s266 = sphi %s225, %s225
                  %s267 = sphi %s220, %s220
                $region66: #{resblock_forward.5} parent=62 // loop_header_branch
                  %264 = sbr.rel (%p262) target = $region70
                $region67: #{resblock_forward.5} parent=62 // loop_body
                  _
                $region68: #{resblock_forward.5} parent=62 // loop_footer
                  %s265 = sadd.s32 1, %s261
                $region69: #{resblock_forward.5} parent=62 // loop_footer_branch
                  %260 = sbr.rel target = $region65
                $region70: #{resblock_forward.5} parent=62 // loop_exit
                  _
                %s269 = ssub.s32 16, 1
                loop: start=0, step=1, limit=1
                $region71: #{resblock_forward.5} parent=62 // loop_pre_header
                  _
                $region72: #{resblock_forward.5} parent=62 // loop_header
                  %s271 = sphi 0, %s275
                  %p272 = scmp.ge.s32.totalorder %s271, 1
                  %s276 = sphi %s225, %s225
                  %s277 = sphi %s220, %s220
                $region73: #{resblock_forward.5} parent=62 // loop_header_branch
                  %274 = sbr.rel (%p272) target = $region77
                $region74: #{resblock_forward.5} parent=62 // loop_body
                  %v278 = vld [vmem:[%s276] sm:%s269]
                  %279 = vst [vmem:[%s277] sm:%s269] %v278
                  %v280 = vld [vmem:[%s276 + $0x8] sm:%s269]
                  %281 = vst [vmem:[%s277 + $0x4] sm:%s269] %v280
                  %v282 = vld [vmem:[%s276 + $0x10] sm:%s269]
                  %283 = vst [vmem:[%s277 + $0x8] sm:%s269] %v282
                  %v284 = vld [vmem:[%s276 + $0x18] sm:%s269]
                  %285 = vst [vmem:[%s277 + $0xc] sm:%s269] %v284
                  %v286 = vld [vmem:[%s276 + $0x20] sm:%s269]
                  %287 = vst [vmem:[%s277 + $0x10] sm:%s269] %v286
                  %v288 = vld [vmem:[%s276 + $0x28] sm:%s269]
                  %289 = vst [vmem:[%s277 + $0x14] sm:%s269] %v288
                  %v290 = vld [vmem:[%s276 + $0x30] sm:%s269]
                  %291 = vst [vmem:[%s277 + $0x18] sm:%s269] %v290
                  %v292 = vld [vmem:[%s276 + $0x38] sm:%s269]
                  %293 = vst [vmem:[%s277 + $0x1c] sm:%s269] %v292
                $region75: #{resblock_forward.5} parent=62 // loop_footer
                  %s275 = sadd.s32 1, %s271
                $region76: #{resblock_forward.5} parent=62 // loop_footer_branch
                  %270 = sbr.rel target = $region72
                $region77: #{resblock_forward.5} parent=62 // loop_exit
                  _
              $region63: #{resblock_forward.5} parent=47 // pred_fallthru
                _
            $region48: #{resblock_forward.5} parent=43 // pred_fallthru
              _
            // Predicated region
            $region49: #{resblock_forward.5} parent=43 // pred_check
              _
            $region50: #{resblock_forward.5} parent=43 // pred_check_branch
              %231 = sbr.rel (0) target = $region52
            $region51: #{resblock_forward.5} parent=43 // pred_region
              %s233 = ssub.s32 16, 1
              loop: start=0, step=1, limit=1
              $region53: #{resblock_forward.5} parent=51 // loop_pre_header
                _
              $region54: #{resblock_forward.5} parent=51 // loop_header
                %s235 = sphi 0, %s239
                %p236 = scmp.ge.s32.totalorder %s235, 1
                %s240 = sphi %s225, %s225
                %s241 = sphi %s220, %s220
              $region55: #{resblock_forward.5} parent=51 // loop_header_branch
                %238 = sbr.rel (%p236) target = $region59
              $region56: #{resblock_forward.5} parent=51 // loop_body
                %v242 = vld [vmem:[%s240] sm:%s233]
                %243 = vst [vmem:[%s241] sm:%s233] %v242
                %v244 = vld [vmem:[%s240 + $0x8] sm:%s233]
                %245 = vst [vmem:[%s241 + $0x4] sm:%s233] %v244
                %v246 = vld [vmem:[%s240 + $0x10] sm:%s233]
                %247 = vst [vmem:[%s241 + $0x8] sm:%s233] %v246
                %v248 = vld [vmem:[%s240 + $0x18] sm:%s233]
                %249 = vst [vmem:[%s241 + $0xc] sm:%s233] %v248
                %v250 = vld [vmem:[%s240 + $0x20] sm:%s233]
                %251 = vst [vmem:[%s241 + $0x10] sm:%s233] %v250
                %v252 = vld [vmem:[%s240 + $0x28] sm:%s233]
                %253 = vst [vmem:[%s241 + $0x14] sm:%s233] %v252
                %v254 = vld [vmem:[%s240 + $0x30] sm:%s233]
                %255 = vst [vmem:[%s241 + $0x18] sm:%s233] %v254
                %v256 = vld [vmem:[%s240 + $0x38] sm:%s233]
                %257 = vst [vmem:[%s241 + $0x1c] sm:%s233] %v256
              $region57: #{resblock_forward.5} parent=51 // loop_footer
                %s239 = sadd.s32 1, %s235
              $region58: #{resblock_forward.5} parent=51 // loop_footer_branch
                %234 = sbr.rel target = $region54
              $region59: #{resblock_forward.5} parent=51 // loop_exit
                _
            $region52: #{resblock_forward.5} parent=43 // pred_fallthru
              _
          $region44: #{resblock_forward.5} parent=39 // pred_fallthru
            _
          %294 = vnop
        $region40: #{resblock_forward.5} parent=31 // pred_fallthru
          _
      $region32: #{resblock_forward.5} parent=5 // pred_fallthru
        _
      %p295 = scmp.le.s32.totalorder 1, %s12
      %p296 = scmp.lt.s32.totalorder %s12, 3
      %p297 = pnand %p295, %p296
      %p298 = pneg %p297
      // Predicated region
      $region78: #{resblock_forward.5} parent=5 // pred_check
        _
      $region79: #{resblock_forward.5} parent=5 // pred_check_branch
        %300 = sbr.rel (%p297) target = $region81
      $region80: #{resblock_forward.5} parent=5 // pred_region
        %s301 = ssub.s32 %s12, 1
        %s302 = sand.u32 %s93, 1
        %s303 = sand.u32 %s93, 1
        %s304 = smul.addr %s303, 32
        %s305 = scalar_lea.vmem [#allocation2], %s304
        // Predicated region
        $region82: #{resblock_forward.5} parent=80 // pred_check
          %p306 = pneg %p106
        $region83: #{resblock_forward.5} parent=80 // pred_check_branch
          %308 = sbr.rel (%p306) target = $region85
        $region84: #{resblock_forward.5} parent=80 // pred_region
          _
        $region85: #{resblock_forward.5} parent=80 // pred_fallthru
          _
        %s309 = smul.u32 8, %s17
        %p310 = scmp.lt.s32.totalorder %s309, 15
        %s311 = scalar_select %p310, %s309, 15
        %s312 = smul.addr %s311, 4
        %s313 = scalar_lea.vmem %s0, %s312
        %p314 = pneg %p38
        %p315 = pneg %p35
        %p316 = pneg %p59
        %p317 = pneg %p56
        %p318 = pneg %p80
        %p319 = pneg %p77
        %s320 = sand.u32 %s93, 1
        %s321 = sand.u32 %s93, 1
        %s322 = smul.addr %s321, 32
        %s323 = scalar_lea.vmem [#allocation2], %s322
        %p324 = pneg %p106
        %p325 = pneg %p103
        %p326 = pneg %p127
        %p327 = pneg %p124
        %p328 = pneg %p148
        %p329 = pneg %p145
        %p330 = pneg %p174
        %p331 = pneg %p171
        %s332 = smul.u32 8, %s17
        %p333 = scmp.lt.s32.totalorder %s332, 15
        %s334 = scalar_select %p333, %s332, 15
        %s335 = smul.addr %s334, 8
        %s336 = scalar_lea.vmem %s6, %s335
        %s337 = smul.u32 8, %s17
        %p338 = scmp.lt.s32.totalorder %s337, 15
        %s339 = scalar_select %p338, %s337, 15
        %s340 = smul.addr %s339, 4
        %s341 = scalar_lea.vmem %s0, %s340
        %s342 = smul.u32 8, %s17
        %s343 = smul.u32 8, %s17
        %s344 = smul.u32 8, %s17
        %p345 = scmp.lt.s32.totalorder %s344, 15
        %s346 = scalar_select %p345, %s344, 15
        %s347 = smul.addr %s346, 8
        %s348 = scalar_lea.vmem %s6, %s347
        %s349 = smul.u32 8, %s17
        %v350 = vld [vmem:[%s341] sm:$0xf]
        %v351 = vld [vmem:[%s341 + $0x4] sm:$0xf]
        %v352 = vld [vmem:[%s341 + $0x8] sm:$0xf]
        %v353 = vld [vmem:[%s341 + $0xc] sm:$0xf]
        %v354 = vld [vmem:[%s341 + $0x10] sm:$0xf]
        %v355 = vld [vmem:[%s341 + $0x14] sm:$0xf]
        %v356 = vld [vmem:[%s341 + $0x18] sm:$0xf]
        %v357 = vld [vmem:[%s341 + $0x1c] sm:$0xf]
        %v358 = vunpack.c.l.bf16 %v350
        %v359 = vunpack.c.l.bf16 %v351
        %v360 = vunpack.c.l.bf16 %v352
        %v361 = vunpack.c.l.bf16 %v353
        %v362 = vunpack.c.l.bf16 %v354
        %v363 = vunpack.c.l.bf16 %v355
        %v364 = vunpack.c.l.bf16 %v356
        %v365 = vunpack.c.l.bf16 %v357
        %v366 = vld [vmem:[%s1] sm:$0x1]
        %v368 = vperm.slane %v366, 0
        %v370 = vmul.f32 %v358, %v368
        %v371 = vmul.f32 %v359, %v368
        %v372 = vmul.f32 %v360, %v368
        %v373 = vmul.f32 %v361, %v368
        %v374 = vmul.f32 %v362, %v368
        %v375 = vmul.f32 %v363, %v368
        %v376 = vmul.f32 %v364, %v368
        %v377 = vmul.f32 %v365, %v368
        %v378 = vld [vmem:[%s2] sm:$0x1]
        %v380 = vperm.slane %v378, 0
        %v382 = vadd.f32 %v370, %v380
        %v383 = vadd.f32 %v371, %v380
        %v384 = vadd.f32 %v372, %v380
        %v385 = vadd.f32 %v373, %v380
        %v386 = vadd.f32 %v374, %v380
        %v387 = vadd.f32 %v375, %v380
        %v388 = vadd.f32 %v376, %v380
        %v389 = vadd.f32 %v377, %v380
        %v390 = vld [vmem:[%s305] sm:$0xf]
        %v391 = vld [vmem:[%s305 + $0x4] sm:$0xf]
        %v392 = vld [vmem:[%s305 + $0x8] sm:$0xf]
        %v393 = vld [vmem:[%s305 + $0xc] sm:$0xf]
        %v394 = vld [vmem:[%s305 + $0x10] sm:$0xf]
        %v395 = vld [vmem:[%s305 + $0x14] sm:$0xf]
        %v396 = vld [vmem:[%s305 + $0x18] sm:$0xf]
        %v397 = vld [vmem:[%s305 + $0x1c] sm:$0xf]
        %v398 = vunpack.c.l.bf16 %v390
        %v399 = vunpack.c.l.bf16 %v391
        %v400 = vunpack.c.l.bf16 %v392
        %v401 = vunpack.c.l.bf16 %v393
        %v402 = vunpack.c.l.bf16 %v394
        %v403 = vunpack.c.l.bf16 %v395
        %v404 = vunpack.c.l.bf16 %v396
        %v405 = vunpack.c.l.bf16 %v397
        %v406 = vld [vmem:[%s4] sm:$0x1]
        %v408 = vperm.slane %v406, 0
        %v410 = vmul.f32 %v398, %v408
        %v411 = vmul.f32 %v399, %v408
        %v412 = vmul.f32 %v400, %v408
        %v413 = vmul.f32 %v401, %v408
        %v414 = vmul.f32 %v402, %v408
        %v415 = vmul.f32 %v403, %v408
        %v416 = vmul.f32 %v404, %v408
        %v417 = vmul.f32 %v405, %v408
        %v418 = vld [vmem:[%s5] sm:$0x1]
        %v420 = vperm.slane %v418, 0
        %v422 = vadd.f32 %v410, %v420
        %v423 = vadd.f32 %v411, %v420
        %v424 = vadd.f32 %v412, %v420
        %v425 = vadd.f32 %v413, %v420
        %v426 = vadd.f32 %v414, %v420
        %v427 = vadd.f32 %v415, %v420
        %v428 = vadd.f32 %v416, %v420
        %v429 = vadd.f32 %v417, %v420
        %v430 = vadd.f32 %v382, %v422
        %v431 = vadd.f32 %v383, %v423
        %v432 = vadd.f32 %v384, %v424
        %v433 = vadd.f32 %v385, %v425
        %v434 = vadd.f32 %v386, %v426
        %v435 = vadd.f32 %v387, %v427
        %v436 = vadd.f32 %v388, %v428
        %v437 = vadd.f32 %v389, %v429
        %v438 = vmax.f32 %v430, 0.0
        %v439 = vmax.f32 %v431, 0.0
        %v440 = vmax.f32 %v432, 0.0
        %v441 = vmax.f32 %v433, 0.0
        %v442 = vmax.f32 %v434, 0.0
        %v443 = vmax.f32 %v435, 0.0
        %v444 = vmax.f32 %v436, 0.0
        %v445 = vmax.f32 %v437, 0.0
        %vm446 = vcmask 64512
        %447 = vst.msk [vmem:[%s348] sm:$0xff] %vm446, %v438
        %448 = vst.msk [vmem:[%s348 + $0x8] sm:$0xff] %vm446, %v439
        %449 = vst.msk [vmem:[%s348 + $0x10] sm:$0xff] %vm446, %v440
        %450 = vst.msk [vmem:[%s348 + $0x18] sm:$0xff] %vm446, %v441
        %451 = vst.msk [vmem:[%s348 + $0x20] sm:$0xff] %vm446, %v442
        %452 = vst.msk [vmem:[%s348 + $0x28] sm:$0xff] %vm446, %v443
        %453 = vst.msk [vmem:[%s348 + $0x30] sm:$0xff] %vm446, %v444
        %454 = vst.msk [vmem:[%s348 + $0x38] sm:$0xff] %vm446, %v445
        %s455 = smul.u32 8, %s17
        %p456 = scmp.lt.s32.totalorder %s455, 15
        %s457 = scalar_select %p456, %s455, 15
        %s458 = smul.addr %s457, 8
        %s459 = scalar_lea.vmem %s6, %s458
        // Predicated region
        $region86: #{resblock_forward.5} parent=80 // pred_check
          %p460 = pneg %p171
        $region87: #{resblock_forward.5} parent=80 // pred_check_branch
          %462 = sbr.rel (%p460) target = $region89
        $region88: #{resblock_forward.5} parent=80 // pred_region
          %s463 = smul.u32 8, %s17
        $region89: #{resblock_forward.5} parent=80 // pred_fallthru
          _
      $region81: #{resblock_forward.5} parent=5 // pred_fallthru
        _
      %p464 = scmp.le.s32.totalorder 2, %s12
      // Predicated region
      $region90: #{resblock_forward.5} parent=5 // pred_check
        %p465 = pneg %p464
      $region91: #{resblock_forward.5} parent=5 // pred_check_branch
        %467 = sbr.rel (%p465) target = $region93
      $region92: #{resblock_forward.5} parent=5 // pred_region
        %s468 = ssub.s32 %s12, 2
        // Predicated region
        $region94: #{resblock_forward.5} parent=92 // pred_check
          %p469 = pneg %p177
        $region95: #{resblock_forward.5} parent=92 // pred_check_branch
          %471 = sbr.rel (%p469) target = $region97
        $region96: #{resblock_forward.5} parent=92 // pred_region
          %s472 = smul.u32 8, %s18
          %p473 = scmp.lt.s32.totalorder %s472, 15
          %s474 = scalar_select %p473, %s472, 15
          %s475 = smul.addr %s474, 8
          %s476 = scalar_lea.vmem %s6, %s475
        $region97: #{resblock_forward.5} parent=92 // pred_fallthru
          _
      $region93: #{resblock_forward.5} parent=5 // pred_fallthru
        _
    $region6: #{resblock_forward.5} parent=1 // loop_footer
      %s16 = sadd.s32 1, %s12
    $region7: #{resblock_forward.5} parent=1 // loop_footer_branch
      %11 = sbr.rel target = $region3
    $region8: #{resblock_forward.5} parent=1 // loop_exit
      _

// kernel: resblock_forward.4
$region0: #{resblock_forward.4}
  #allocation0 [shape = 'u32[]', space=smem, size = 0x4, offset = 0x4, fixed_abs, tag = 'smem constant byte address 0x4 - core index']
  #allocation1 [shape = 'u32[72,128]{1,0:T(1,128)}', space=vmem, size = 0x9000, scoped, tag = 'internal scratch']
  #allocation2 [shape = 'bf16[10,10,128]{2,1,0:T(8,128)(2,1)}', space=vmem, size = 0xa000, scoped, tag = 'scratch operand']
  %s0 = inlined_call_operand.vmem [shape: bf16[2,8,8,256], index: 0, kind: input, shape index: {}]
  %s1 = inlined_call_operand.vmem [shape: bf16[1152,128], index: 1, kind: input, shape index: {}]
  %s2 = inlined_call_operand.vmem [shape: f32[1,128], index: 2, kind: input, shape index: {}]
  %s3 = inlined_call_operand.vmem [shape: f32[1,128], index: 3, kind: input, shape index: {}]
  %s4 = inlined_call_operand.vmem [shape: bf16[2,8,8,128], index: 4, kind: output, shape index: {0}]
  %s5 = inlined_call_operand.vmem [shape: f32[16,128], index: 5, kind: output, shape index: {1}]
  %6 = xla_tuple %s4, %s5
  %s7 = sld [smem:[#allocation0]]
  $region98: #{resblock_forward.4} parent=0
    _
  %s9 = ssub.s32 1, %s7
  %s10 = scalar_select 0, %s9, %s7
  $region1: #{resblock_forward.4} parent=0
    #allocation3 [shape = 'u8[32768]{0}', space=vmem, size = 0x8000, scoped, tag = 'input window, operand 0']
    loop: start=0, step=1, limit=4
    $region2: #{resblock_forward.4} parent=1 // loop_pre_header
      _
    $region3: #{resblock_forward.4} parent=1 // loop_header
      %s12 = sphi 0, %s16
      %p13 = scmp.ge.s32.totalorder %s12, 4
      %s22 = sphi 0, %s24
      %s25 = sphi 0, %s22
      %s26 = sphi 0, %s25
      %s42 = sphi 0, %s26
      %s46 = sphi 0, %s46
      %s48 = sphi 0, %s46
      %s49 = sphi 0, %s48
      %s63 = sphi 0, %s49
      %s67 = sphi 0, %s67
      %s69 = sphi 0, %s67
      %s70 = sphi 0, %s69
      %s84 = sphi 0, %s70
      %s88 = sphi 0, %s88
      %s90 = sphi 0, %s88
      %s91 = sphi 0, %s90
      %s105 = sphi 0, %s91
      %s111 = sphi 0, %s113
      %s114 = sphi 0, %s111
      %s115 = sphi 0, %s114
      %s131 = sphi 0, %s115
      %s137 = sphi 0, %s139
      %s140 = sphi 0, %s137
      %s141 = sphi 0, %s140
      %s157 = sphi 0, %s141
    $region4: #{resblock_forward.4} parent=1 // loop_header_branch
      %15 = sbr.rel (%p13) target = $region8
    $region5: #{resblock_forward.4} parent=1 // loop_body
      %s17 = ssub.s32 %s12, 1
      %s18 = ssub.s32 %s12, 2
      %s19 = sadd.s32 %s12, 1
      %s20 = ssub.s32 %s12, %s19
      %p21 = scmp.eq.s32.totalorder %s20, 0
      %s23 = sadd.s32 %s22, 1
      %s24 = scalar_select %p21, %s22, %s23
      %p27 = pneg %p21
      %p28 = scmp.eq.s32.totalorder %s12, 1
      %p29 = por %p27, %p28
      %p30 = scmp.ne.s32.totalorder %s22, %s25
      %p31 = scmp.eq.s32.totalorder %s12, 0
      %p32 = por %p30, %p31
      %p33 = scmp.ne.s32.totalorder %s22, %s25
      %p34 = scmp.eq.s32.totalorder %s17, 1
      %p35 = por %p33, %p34
      %p36 = scmp.ne.s32.totalorder %s25, %s26
      %p37 = scmp.eq.s32.totalorder %s17, 0
      %p38 = por %p36, %p37
      %p39 = scmp.ne.s32.totalorder %s25, %s26
      %p40 = scmp.eq.s32.totalorder %s18, 1
      %p41 = por %p39, %p40
      %p43 = scmp.ne.s32.totalorder %s26, %s42
      %p44 = scmp.eq.s32.totalorder %s18, 0
      %p45 = por %p43, %p44
      %s47 = sadd.s32 %s46, 1
      %p50 = scmp.eq.s32.totalorder %s12, 1
      %p51 = scmp.ne.s32.totalorder %s46, %s48
      %p52 = scmp.eq.s32.totalorder %s12, 0
      %p53 = por %p51, %p52
      %p54 = scmp.ne.s32.totalorder %s46, %s48
      %p55 = scmp.eq.s32.totalorder %s17, 1
      %p56 = por %p54, %p55
      %p57 = scmp.ne.s32.totalorder %s48, %s49
      %p58 = scmp.eq.s32.totalorder %s17, 0
      %p59 = por %p57, %p58
      %p60 = scmp.ne.s32.totalorder %s48, %s49
      %p61 = scmp.eq.s32.totalorder %s18, 1
      %p62 = por %p60, %p61
      %p64 = scmp.ne.s32.totalorder %s49, %s63
      %p65 = scmp.eq.s32.totalorder %s18, 0
      %p66 = por %p64, %p65
      %s68 = sadd.s32 %s67, 1
      %p71 = scmp.eq.s32.totalorder %s12, 1
      %p72 = scmp.ne.s32.totalorder %s67, %s69
      %p73 = scmp.eq.s32.totalorder %s12, 0
      %p74 = por %p72, %p73
      %p75 = scmp.ne.s32.totalorder %s67, %s69
      %p76 = scmp.eq.s32.totalorder %s17, 1
      %p77 = por %p75, %p76
      %p78 = scmp.ne.s32.totalorder %s69, %s70
      %p79 = scmp.eq.s32.totalorder %s17, 0
      %p80 = por %p78, %p79
      %p81 = scmp.ne.s32.totalorder %s69, %s70
      %p82 = scmp.eq.s32.totalorder %s18, 1
      %p83 = por %p81, %p82
      %p85 = scmp.ne.s32.totalorder %s70, %s84
      %p86 = scmp.eq.s32.totalorder %s18, 0
      %p87 = por %p85, %p86
      %s89 = sadd.s32 %s88, 1
      %p92 = scmp.eq.s32.totalorder %s12, 1
      %p93 = scmp.ne.s32.totalorder %s88, %s90
      %p94 = scmp.eq.s32.totalorder %s12, 0
      %p95 = por %p93, %p94
      %p96 = scmp.ne.s32.totalorder %s88, %s90
      %p97 = scmp.eq.s32.totalorder %s17, 1
      %p98 = por %p96, %p97
      %p99 = scmp.ne.s32.totalorder %s90, %s91
      %p100 = scmp.eq.s32.totalorder %s17, 0
      %p101 = por %p99, %p100
      %p102 = scmp.ne.s32.totalorder %s90, %s91
      %p103 = scmp.eq.s32.totalorder %s18, 1
      %p104 = por %p102, %p103
      %p106 = scmp.ne.s32.totalorder %s91, %s105
      %p107 = scmp.eq.s32.totalorder %s18, 0
      %p108 = por %p106, %p107
      %s109 = ssub.s32 %s12, %s19
      %p110 = scmp.eq.s32.totalorder %s109, 0
      %s112 = sadd.s32 %s111, 1
      %s113 = scalar_select %p110, %s111, %s112
      %p116 = pneg %p110
      %p117 = scmp.eq.s32.totalorder %s12, 1
      %p118 = por %p116, %p117
      %p119 = scmp.ne.s32.totalorder %s111, %s114
      %p120 = scmp.eq.s32.totalorder %s12, 0
      %p121 = por %p119, %p120
      %p122 = scmp.ne.s32.totalorder %s111, %s114
      %p123 = scmp.eq.s32.totalorder %s17, 1
      %p124 = por %p122, %p123
      %p125 = scmp.ne.s32.totalorder %s114, %s115
      %p126 = scmp.eq.s32.totalorder %s17, 0
      %p127 = por %p125, %p126
      %p128 = scmp.ne.s32.totalorder %s114, %s115
      %p129 = scmp.eq.s32.totalorder %s18, 1
      %p130 = por %p128, %p129
      %p132 = scmp.ne.s32.totalorder %s115, %s131
      %p133 = scmp.eq.s32.totalorder %s18, 0
      %p134 = por %p132, %p133
      %s135 = ssub.s32 %s12, %s19
      %p136 = scmp.eq.s32.totalorder %s135, 0
      %s138 = sadd.s32 %s137, 1
      %s139 = scalar_select %p136, %s137, %s138
      %p142 = pneg %p136
      %p143 = scmp.eq.s32.totalorder %s12, 1
      %p144 = por %p142, %p143
      %p145 = scmp.ne.s32.totalorder %s137, %s140
      %p146 = scmp.eq.s32.totalorder %s12, 0
      %p147 = por %p145, %p146
      %p148 = scmp.ne.s32.totalorder %s137, %s140
      %p149 = scmp.eq.s32.totalorder %s17, 1
      %p150 = por %p148, %p149
      %p151 = scmp.ne.s32.totalorder %s140, %s141
      %p152 = scmp.eq.s32.totalorder %s17, 0
      %p153 = por %p151, %p152
      %p154 = scmp.ne.s32.totalorder %s140, %s141
      %p155 = scmp.eq.s32.totalorder %s18, 1
      %p156 = por %p154, %p155
      %p158 = scmp.ne.s32.totalorder %s141, %s157
      %p159 = scmp.eq.s32.totalorder %s18, 0
      %p160 = por %p158, %p159
      %p161 = scmp.le.s32.totalorder 1, %s12
      %p162 = scmp.lt.s32.totalorder %s12, 3
      %p163 = pnand %p161, %p162
      %p164 = pneg %p163
      // Predicated region
      $region9: #{resblock_forward.4} parent=5 // pred_check
        _
      $region10: #{resblock_forward.4} parent=5 // pred_check_branch
        %166 = sbr.rel (%p163) target = $region12
      $region11: #{resblock_forward.4} parent=5 // pred_region
        %s167 = ssub.s32 %s12, 1
        // Predicated region
        $region13: #{resblock_forward.4} parent=11 // pred_check
          %p168 = pneg %p59
        $region14: #{resblock_forward.4} parent=11 // pred_check_branch
          %170 = sbr.rel (%p168) target = $region16
        $region15: #{resblock_forward.4} parent=11 // pred_region
          _
        $region16: #{resblock_forward.4} parent=11 // pred_fallthru
          _
        // Predicated region
        $region17: #{resblock_forward.4} parent=11 // pred_check
          %p171 = pneg %p80
        $region18: #{resblock_forward.4} parent=11 // pred_check_branch
          %173 = sbr.rel (%p171) target = $region20
        $region19: #{resblock_forward.4} parent=11 // pred_region
          _
        $region20: #{resblock_forward.4} parent=11 // pred_fallthru
          _
        // Predicated region
        $region21: #{resblock_forward.4} parent=11 // pred_check
          %p174 = pneg %p101
        $region22: #{resblock_forward.4} parent=11 // pred_check_branch
          %176 = sbr.rel (%p174) target = $region24
        $region23: #{resblock_forward.4} parent=11 // pred_region
          _
        $region24: #{resblock_forward.4} parent=11 // pred_fallthru
          _
      $region12: #{resblock_forward.4} parent=5 // pred_fallthru
        _
      %p177 = scmp.lt.s32.totalorder %s12, 2
      // Predicated region
      $region25: #{resblock_forward.4} parent=5 // pred_check
        %p178 = pneg %p177
      $region26: #{resblock_forward.4} parent=5 // pred_check_branch
        %180 = sbr.rel (%p178) target = $region28
      $region27: #{resblock_forward.4} parent=5 // pred_region
        // Predicated region
        $region29: #{resblock_forward.4} parent=27 // pred_check
          %p181 = pneg %p32
        $region30: #{resblock_forward.4} parent=27 // pred_check_branch
          %183 = sbr.rel (%p181) target = $region32
        $region31: #{resblock_forward.4} parent=27 // pred_region
          %s184 = sand.u32 %s22, 1
          %s185 = sand.u32 %s22, 1
          %s186 = smul.addr %s185, 32
          %s187 = scalar_lea.vmem [#allocation3], %s186
          %s188 = smul.addr %s12, 16
          %s189 = smul.addr %s188, 4
          %s190 = scalar_lea.vmem %s0, %s189
          // Predicated region
          $region33: #{resblock_forward.4} parent=31 // pred_check
            _
          $region34: #{resblock_forward.4} parent=31 // pred_check_branch
            %192 = sbr.rel (0) target = $region36
          $region35: #{resblock_forward.4} parent=31 // pred_region
            // Predicated region
            $region37: #{resblock_forward.4} parent=35 // pred_check
              _
            $region38: #{resblock_forward.4} parent=35 // pred_check_branch
              %194 = sbr.rel target = $region40
            $region39: #{resblock_forward.4} parent=35 // pred_region
              // Predicated region
              $region52: #{resblock_forward.4} parent=39 // pred_check
                _
              $region53: #{resblock_forward.4} parent=39 // pred_check_branch
                %224 = sbr.rel (0) target = $region55
              $region54: #{resblock_forward.4} parent=39 // pred_region
                loop: start=0, step=1, limit=1
                $region56: #{resblock_forward.4} parent=54 // loop_pre_header
                  _
                $region57: #{resblock_forward.4} parent=54 // loop_header
                  %s226 = sphi 0, %s230
                  %p227 = scmp.ge.s32.totalorder %s226, 1
                  %s231 = sphi %s190, %s190
                  %s232 = sphi %s187, %s187
                $region58: #{resblock_forward.4} parent=54 // loop_header_branch
                  %229 = sbr.rel (%p227) target = $region62
                $region59: #{resblock_forward.4} parent=54 // loop_body
                  _
                $region60: #{resblock_forward.4} parent=54 // loop_footer
                  %s230 = sadd.s32 1, %s226
                $region61: #{resblock_forward.4} parent=54 // loop_footer_branch
                  %225 = sbr.rel target = $region57
                $region62: #{resblock_forward.4} parent=54 // loop_exit
                  _
                %s234 = ssub.s32 16, 1
                loop: start=0, step=1, limit=1
                $region63: #{resblock_forward.4} parent=54 // loop_pre_header
                  _
                $region64: #{resblock_forward.4} parent=54 // loop_header
                  %s236 = sphi 0, %s240
                  %p237 = scmp.ge.s32.totalorder %s236, 1
                  %s241 = sphi %s190, %s190
                  %s242 = sphi %s187, %s187
                $region65: #{resblock_forward.4} parent=54 // loop_header_branch
                  %239 = sbr.rel (%p237) target = $region69
                $region66: #{resblock_forward.4} parent=54 // loop_body
                  %v243 = vld [vmem:[%s241] sm:%s234]
                  %244 = vst [vmem:[%s242] sm:%s234] %v243
                  %v245 = vld [vmem:[%s241 + $0x8] sm:%s234]
                  %246 = vst [vmem:[%s242 + $0x4] sm:%s234] %v245
                  %v247 = vld [vmem:[%s241 + $0x10] sm:%s234]
                  %248 = vst [vmem:[%s242 + $0x8] sm:%s234] %v247
                  %v249 = vld [vmem:[%s241 + $0x18] sm:%s234]
                  %250 = vst [vmem:[%s242 + $0xc] sm:%s234] %v249
                  %v251 = vld [vmem:[%s241 + $0x20] sm:%s234]
                  %252 = vst [vmem:[%s242 + $0x10] sm:%s234] %v251
                  %v253 = vld [vmem:[%s241 + $0x28] sm:%s234]
                  %254 = vst [vmem:[%s242 + $0x14] sm:%s234] %v253
                  %v255 = vld [vmem:[%s241 + $0x30] sm:%s234]
                  %256 = vst [vmem:[%s242 + $0x18] sm:%s234] %v255
                  %v257 = vld [vmem:[%s241 + $0x38] sm:%s234]
                  %258 = vst [vmem:[%s242 + $0x1c] sm:%s234] %v257
                $region67: #{resblock_forward.4} parent=54 // loop_footer
                  %s240 = sadd.s32 1, %s236
                $region68: #{resblock_forward.4} parent=54 // loop_footer_branch
                  %235 = sbr.rel target = $region64
                $region69: #{resblock_forward.4} parent=54 // loop_exit
                  _
              $region55: #{resblock_forward.4} parent=39 // pred_fallthru
                _
            $region40: #{resblock_forward.4} parent=35 // pred_fallthru
              _
            // Predicated region
            $region41: #{resblock_forward.4} parent=35 // pred_check
              _
            $region42: #{resblock_forward.4} parent=35 // pred_check_branch
              %196 = sbr.rel (0) target = $region44
            $region43: #{resblock_forward.4} parent=35 // pred_region
              %s198 = ssub.s32 16, 1
              loop: start=0, step=1, limit=1
              $region45: #{resblock_forward.4} parent=43 // loop_pre_header
                _
              $region46: #{resblock_forward.4} parent=43 // loop_header
                %s200 = sphi 0, %s204
                %p201 = scmp.ge.s32.totalorder %s200, 1
                %s205 = sphi %s190, %s190
                %s206 = sphi %s187, %s187
              $region47: #{resblock_forward.4} parent=43 // loop_header_branch
                %203 = sbr.rel (%p201) target = $region51
              $region48: #{resblock_forward.4} parent=43 // loop_body
                %v207 = vld [vmem:[%s205] sm:%s198]
                %208 = vst [vmem:[%s206] sm:%s198] %v207
                %v209 = vld [vmem:[%s205 + $0x8] sm:%s198]
                %210 = vst [vmem:[%s206 + $0x4] sm:%s198] %v209
                %v211 = vld [vmem:[%s205 + $0x10] sm:%s198]
                %212 = vst [vmem:[%s206 + $0x8] sm:%s198] %v211
                %v213 = vld [vmem:[%s205 + $0x18] sm:%s198]
                %214 = vst [vmem:[%s206 + $0xc] sm:%s198] %v213
                %v215 = vld [vmem:[%s205 + $0x20] sm:%s198]
                %216 = vst [vmem:[%s206 + $0x10] sm:%s198] %v215
                %v217 = vld [vmem:[%s205 + $0x28] sm:%s198]
                %218 = vst [vmem:[%s206 + $0x14] sm:%s198] %v217
                %v219 = vld [vmem:[%s205 + $0x30] sm:%s198]
                %220 = vst [vmem:[%s206 + $0x18] sm:%s198] %v219
                %v221 = vld [vmem:[%s205 + $0x38] sm:%s198]
                %222 = vst [vmem:[%s206 + $0x1c] sm:%s198] %v221
              $region49: #{resblock_forward.4} parent=43 // loop_footer
                %s204 = sadd.s32 1, %s200
              $region50: #{resblock_forward.4} parent=43 // loop_footer_branch
                %199 = sbr.rel target = $region46
              $region51: #{resblock_forward.4} parent=43 // loop_exit
                _
            $region44: #{resblock_forward.4} parent=35 // pred_fallthru
              _
          $region36: #{resblock_forward.4} parent=31 // pred_fallthru
            _
          %259 = vnop
        $region32: #{resblock_forward.4} parent=27 // pred_fallthru
          _
      $region28: #{resblock_forward.4} parent=5 // pred_fallthru
        _
      %p260 = scmp.le.s32.totalorder 1, %s12
      %p261 = scmp.lt.s32.totalorder %s12, 3
      %p262 = pnand %p260, %p261
      %p263 = pneg %p262
      // Predicated region
      $region70: #{resblock_forward.4} parent=5 // pred_check
        _
      $region71: #{resblock_forward.4} parent=5 // pred_check_branch
        %265 = sbr.rel (%p262) target = $region73
      $region72: #{resblock_forward.4} parent=5 // pred_region
        %s266 = ssub.s32 %s12, 1
        %s267 = sand.u32 %s25, 1
        %s268 = sand.u32 %s25, 1
        %s269 = smul.addr %s268, 32
        %s270 = scalar_lea.vmem [#allocation3], %s269
        // Predicated region
        $region74: #{resblock_forward.4} parent=72 // pred_check
          %p271 = pneg %p38
        $region75: #{resblock_forward.4} parent=72 // pred_check_branch
          %273 = sbr.rel (%p271) target = $region77
        $region76: #{resblock_forward.4} parent=72 // pred_region
          _
        $region77: #{resblock_forward.4} parent=72 // pred_fallthru
          _
        %s274 = sand.u32 %s25, 1
        %s275 = sand.u32 %s25, 1
        %s276 = smul.addr %s275, 32
        %s277 = scalar_lea.vmem [#allocation3], %s276
        %p278 = pneg %p38
        %p279 = pneg %p35
        %p280 = pneg %p59
        %p281 = pneg %p56
        %p282 = pneg %p80
        %p283 = pneg %p77
        %p284 = pneg %p101
        %p285 = pneg %p98
        %p286 = pneg %p127
        %p287 = pneg %p124
        %p288 = scmp.lt.s32.totalorder %s17, 1
        %s289 = scalar_select %p288, %s17, 1
        %s290 = smul.addr %s289, 8
        %s291 = smul.addr %s290, 4
        %s292 = scalar_lea.vmem %s4, %s291
        %p293 = pneg %p153
        %p294 = pneg %p150
        %p295 = scmp.lt.s32.totalorder %s17, 1
        %s296 = scalar_select %p295, %s17, 1
        %s297 = smul.addr %s296, 8
        %s298 = scalar_lea.vmem %s5, %s297
        %p299 = scmp.lt.s32.totalorder %s17, 1
        %s300 = scalar_select %p299, %s17, 1
        %s301 = smul.addr %s300, 8
        %s302 = smul.addr %s301, 4
        %s303 = scalar_lea.vmem %s4, %s302
        %p304 = scmp.lt.s32.totalorder %s17, 1
        %s305 = scalar_select %p304, %s17, 1
        %s306 = smul.addr %s305, 8
        %s307 = scalar_lea.vmem %s5, %s306
        %v309 = vld [vmem:[%s270] sm:$0xf]
        %v310 = vld [vmem:[%s270 + $0x4] sm:$0xf]
        %v311 = vld [vmem:[%s270 + $0x8] sm:$0xf]
        %v312 = vld [vmem:[%s270 + $0xc] sm:$0xf]
        %v313 = vld [vmem:[%s270 + $0x10] sm:$0xf]
        %v314 = vld [vmem:[%s270 + $0x14] sm:$0xf]
        %v315 = vld [vmem:[%s270 + $0x18] sm:$0xf]
        %v316 = vld [vmem:[%s270 + $0x1c] sm:$0xf]
        %v317 = vunpack.c.l.bf16 %v309
        %v318 = vunpack.c.l.bf16 %v310
        %v319 = vunpack.c.l.bf16 %v311
        %v320 = vunpack.c.l.bf16 %v312
        %v321 = vunpack.c.l.bf16 %v313
        %v322 = vunpack.c.l.bf16 %v314
        %v323 = vunpack.c.l.bf16 %v315
        %v324 = vunpack.c.l.bf16 %v316
        %v325 = vld [vmem:[%s2] sm:$0x1]
        %v326 = vld [vmem:[%s3] sm:$0x1]
        %v328 = vperm.slane %v325, 0
        %v330 = vmul.f32 %v317, %v328
        %v331 = vmul.f32 %v318, %v328
        %v332 = vmul.f32 %v319, %v328
        %v333 = vmul.f32 %v320, %v328
        %v334 = vmul.f32 %v321, %v328
        %v335 = vmul.f32 %v322, %v328
        %v336 = vmul.f32 %v323, %v328
        %v337 = vmul.f32 %v324, %v328
        %v339 = vperm.slane %v326, 0
        %v341 = vadd.f32 %v330, %v339
        %v342 = vadd.f32 %v331, %v339
        %v343 = vadd.f32 %v332, %v339
        %v344 = vadd.f32 %v333, %v339
        %v345 = vadd.f32 %v334, %v339
        %v346 = vadd.f32 %v335, %v339
        %v347 = vadd.f32 %v336, %v339
        %v348 = vadd.f32 %v337, %v339
        %v349 = vmax.f32 %v341, 0.0
        %v350 = vmax.f32 %v342, 0.0
        %v351 = vmax.f32 %v343, 0.0
        %v352 = vmax.f32 %v344, 0.0
        %v353 = vmax.f32 %v345, 0.0
        %v354 = vmax.f32 %v346, 0.0
        %v355 = vmax.f32 %v347, 0.0
        %v356 = vmax.f32 %v348, 0.0
        %357 = vst [vmem:[#allocation2] sm:$0xf] 0
        %358 = vst [vmem:[#allocation2 + $0x4] sm:$0x1] 0
        %359 = vst [vmem:[#allocation2 + $0x8] sm:$0xf] 0
        %360 = vst [vmem:[#allocation2 + $0xc] sm:$0x1] 0
        %361 = vst [vmem:[#allocation2 + $0x10] sm:$0xf] 0
        %362 = vst [vmem:[#allocation2 + $0x14] sm:$0x1] 0
        %363 = vst [vmem:[#allocation2 + $0x18] sm:$0xf] 0
        %364 = vst [vmem:[#allocation2 + $0x1c] sm:$0x1] 0
        %365 = vst [vmem:[#allocation2 + $0x20] sm:$0xf] 0
        %366 = vst [vmem:[#allocation2 + $0x24] sm:$0x1] 0
        %367 = vst [vmem:[#allocation2 + $0x28] sm:$0xf] 0
        %368 = vst [vmem:[#allocation2 + $0x2c] sm:$0x1] 0
        %369 = vst [vmem:[#allocation2 + $0x30] sm:$0xf] 0
        %370 = vst [vmem:[#allocation2 + $0x34] sm:$0x1] 0
        %371 = vst [vmem:[#allocation2 + $0x38] sm:$0xf] 0
        %372 = vst [vmem:[#allocation2 + $0x3c] sm:$0x1] 0
        %373 = vst [vmem:[#allocation2 + $0x40] sm:$0xf] 0
        %374 = vst [vmem:[#allocation2 + $0x44] sm:$0x1] 0
        %375 = vst [vmem:[#allocation2 + $0x48] sm:$0xf] 0
        %376 = vst [vmem:[#allocation2 + $0x4c] sm:$0x1] 0
        %v377 = vpack.c.bf16 %v349, %v349
        %v378 = vpack.c.bf16 %v350, %v350
        %v379 = vpack.c.bf16 %v351, %v351
        %v380 = vpack.c.bf16 %v352, %v352
        %v381 = vpack.c.bf16 %v353, %v353
        %v382 = vpack.c.bf16 %v354, %v354
        %v383 = vpack.c.bf16 %v355, %v355
        %v384 = vpack.c.bf16 %v356, %v356
        %v386 = vshrl.u32 %v377, 16
        %v388 = vrot.slane %v386, 7
        %v389 = vshll.u32 %v377, 16
        %v391 = vor.u32 %v388, %v389
        %v392 = vrot.slane %v388, 4
        %v394 = vshrl.u32 %v378, 16
        %v396 = vrot.slane %v394, 7
        %v397 = vshll.u32 %v378, 16
        %v399 = vor.u32 %v396, %v397
        %v400 = vrot.slane %v396, 4
        %v402 = vshrl.u32 %v379, 16
        %v404 = vrot.slane %v402, 7
        %v405 = vshll.u32 %v379, 16
        %v407 = vor.u32 %v404, %v405
        %v408 = vrot.slane %v404, 4
        %v410 = vshrl.u32 %v380, 16
        %v412 = vrot.slane %v410, 7
        %v413 = vshll.u32 %v380, 16
        %v415 = vor.u32 %v412, %v413
        %v416 = vrot.slane %v412, 4
        %v418 = vshrl.u32 %v381, 16
        %v420 = vrot.slane %v418, 7
        %v421 = vshll.u32 %v381, 16
        %v423 = vor.u32 %v420, %v421
        %v424 = vrot.slane %v420, 4
        %v426 = vshrl.u32 %v382, 16
        %v428 = vrot.slane %v426, 7
        %v429 = vshll.u32 %v382, 16
        %v431 = vor.u32 %v428, %v429
        %v432 = vrot.slane %v428, 4
        %v434 = vshrl.u32 %v383, 16
        %v436 = vrot.slane %v434, 7
        %v437 = vshll.u32 %v383, 16
        %v439 = vor.u32 %v436, %v437
        %v440 = vrot.slane %v436, 4
        %v442 = vshrl.u32 %v384, 16
        %v444 = vrot.slane %v442, 7
        %v445 = vshll.u32 %v384, 16
        %v447 = vor.u32 %v444, %v445
        %v448 = vrot.slane %v444, 4
        %s465 = scalar_lea.vmem [#allocation2], 8
        %vm466 = vcmask 1043456
        %vm467 = vsmask.f32 7938
        %vm468 = vmand %vm466, %vm467
        %v469 = vld [vmem:[%s465] sm:$0xf]
        %v470 = vsel %vm468, %v391, %v469
        %471 = vst [vmem:[%s465] sm:$0xf] %v470
        %vm472 = vcmask 1040384
        %vm473 = vsmask.f32 256
        %vm474 = vmand %vm472, %vm473
        %v475 = vld [vmem:[%s465 + $0x4] sm:$0x1]
        %v476 = vsel %vm474, %v392, %v475
        %477 = vst [vmem:[%s465 + $0x4] sm:$0x1] %v476
        %v478 = vld [vmem:[%s465 + $0x8] sm:$0xf]
        %v479 = vsel %vm468, %v399, %v478
        %480 = vst [vmem:[%s465 + $0x8] sm:$0xf] %v479
        %v481 = vld [vmem:[%s465 + $0xc] sm:$0x1]
        %v482 = vsel %vm474, %v400, %v481
        %483 = vst [vmem:[%s465 + $0xc] sm:$0x1] %v482
        %v484 = vld [vmem:[%s465 + $0x10] sm:$0xf]
        %v485 = vsel %vm468, %v407, %v484
        %486 = vst [vmem:[%s465 + $0x10] sm:$0xf] %v485
        %v487 = vld [vmem:[%s465 + $0x14] sm:$0x1]
        %v488 = vsel %vm474, %v408, %v487
        %489 = vst [vmem:[%s465 + $0x14] sm:$0x1] %v488
        %v490 = vld [vmem:[%s465 + $0x18] sm:$0xf]
        %v491 = vsel %vm468, %v415, %v490
        %492 = vst [vmem:[%s465 + $0x18] sm:$0xf] %v491
        %v493 = vld [vmem:[%s465 + $0x1c] sm:$0x1]
        %v494 = vsel %vm474, %v416, %v493
        %495 = vst [vmem:[%s465 + $0x1c] sm:$0x1] %v494
        %v496 = vld [vmem:[%s465 + $0x20] sm:$0xf]
        %v497 = vsel %vm468, %v423, %v496
        %498 = vst [vmem:[%s465 + $0x20] sm:$0xf] %v497
        %v499 = vld [vmem:[%s465 + $0x24] sm:$0x1]
        %v500 = vsel %vm474, %v424, %v499
        %501 = vst [vmem:[%s465 + $0x24] sm:$0x1] %v500
        %v502 = vld [vmem:[%s465 + $0x28] sm:$0xf]
        %v503 = vsel %vm468, %v431, %v502
        %504 = vst [vmem:[%s465 + $0x28] sm:$0xf] %v503
        %v505 = vld [vmem:[%s465 + $0x2c] sm:$0x1]
        %v506 = vsel %vm474, %v432, %v505
        %507 = vst [vmem:[%s465 + $0x2c] sm:$0x1] %v506
        %v508 = vld [vmem:[%s465 + $0x30] sm:$0xf]
        %v509 = vsel %vm468, %v439, %v508
        %510 = vst [vmem:[%s465 + $0x30] sm:$0xf] %v509
        %v511 = vld [vmem:[%s465 + $0x34] sm:$0x1]
        %v512 = vsel %vm474, %v440, %v511
        %513 = vst [vmem:[%s465 + $0x34] sm:$0x1] %v512
        %v514 = vld [vmem:[%s465 + $0x38] sm:$0xf]
        %v515 = vsel %vm468, %v447, %v514
        %516 = vst [vmem:[%s465 + $0x38] sm:$0xf] %v515
        %v517 = vld [vmem:[%s465 + $0x3c] sm:$0x1]
        %v518 = vsel %vm474, %v448, %v517
        %519 = vst [vmem:[%s465 + $0x3c] sm:$0x1] %v518
        %v520 = vld [vmem:[#allocation2] sm:$0xf]
        %v521 = vld [vmem:[#allocation2 + $0x8] sm:$0xf]
        %v522 = vld [vmem:[#allocation2 + $0x10] sm:$0xf]
        %v523 = vld [vmem:[#allocation2 + $0x18] sm:$0xf]
        %v524 = vld [vmem:[#allocation2 + $0x20] sm:$0xf]
        %v525 = vld [vmem:[#allocation2 + $0x28] sm:$0xf]
        %v526 = vld [vmem:[#allocation2 + $0x30] sm:$0xf]
        %v527 = vld [vmem:[#allocation2 + $0x38] sm:$0xf]
        %v528 = vld [vmem:[%s1] sm:$0xf]
        %v529 = vld [vmem:[%s1 + $0x4] sm:$0xf]
        %v530 = vld [vmem:[%s1 + $0x8] sm:$0xf]
        %v531 = vld [vmem:[%s1 + $0xc] sm:$0xf]
        %v532 = vld [vmem:[%s1 + $0x10] sm:$0xf]
        %v533 = vld [vmem:[%s1 + $0x14] sm:$0xf]
        %v534 = vld [vmem:[%s1 + $0x18] sm:$0xf]
        %v535 = vld [vmem:[%s1 + $0x1c] sm:$0xf]
        %v536 = vld [vmem:[%s1 + $0x20] sm:$0xf]
        %v537 = vld [vmem:[%s1 + $0x24] sm:$0xf]
        %v538 = vld [vmem:[%s1 + $0x28] sm:$0xf]
        %v539 = vld [vmem:[%s1 + $0x2c] sm:$0xf]
        %v540 = vld [vmem:[%s1 + $0x30] sm:$0xf]
        %v541 = vld [vmem:[%s1 + $0x34] sm:$0xf]
        %v542 = vld [vmem:[%s1 + $0x38] sm:$0xf]
        %v543 = vld [vmem:[%s1 + $0x3c] sm:$0xf]
        %v544 = vld [vmem:[#allocation2 + $0x4] sm:$0x1]
        %v545 = vld [vmem:[#allocation2 + $0xc] sm:$0x1]
        %v546 = vld [vmem:[#allocation2 + $0x14] sm:$0x1]
        %v547 = vld [vmem:[#allocation2 + $0x1c] sm:$0x1]
        %v548 = vld [vmem:[#allocation2 + $0x24] sm:$0x1]
        %v549 = vld [vmem:[#allocation2 + $0x2c] sm:$0x1]
        %v550 = vld [vmem:[#allocation2 + $0x34] sm:$0x1]
        %v551 = vld [vmem:[#allocation2 + $0x3c] sm:$0x1]
        %vm552 = vsmask.f32 3328
        %vm553 = vsmask.f32 7440
        %vm554 = vmor %vm552, %vm553
        %v556 = vshrl.u32 %v520, 16
        %v558 = vrot.slane %v556, 4
        %v559 = vshll.u32 %v520, 16
        %v561 = vrot.slane %v559, 5
        %v562 = vor.u32 %v558, %v561
        %v563 = vrot.slane %v562, 4
        %v565 = vshll.u32 %v544, 16
        %v567 = vrot.slane %v565, 5
        %v568 = vsel %vm554, %v563, %v567
        %v570 = vshrl.u32 %v521, 16
        %v572 = vrot.slane %v570, 4
        %v573 = vshll.u32 %v521, 16
        %v575 = vrot.slane %v573, 5
        %v576 = vor.u32 %v572, %v575
        %v577 = vrot.slane %v576, 4
        %v579 = vshll.u32 %v545, 16
        %v581 = vrot.slane %v579, 5
        %v582 = vsel %vm554, %v577, %v581
        %v584 = vshrl.u32 %v522, 16
        %v586 = vrot.slane %v584, 4
        %v587 = vshll.u32 %v522, 16
        %v589 = vrot.slane %v587, 5
        %v590 = vor.u32 %v586, %v589
        %v591 = vrot.slane %v590, 4
        %v593 = vshll.u32 %v546, 16
        %v595 = vrot.slane %v593, 5
        %v596 = vsel %vm554, %v591, %v595
        %v598 = vshrl.u32 %v523, 16
        %v600 = vrot.slane %v598, 4
        %v601 = vshll.u32 %v523, 16
        %v603 = vrot.slane %v601, 5
        %v604 = vor.u32 %v600, %v603
        %v605 = vrot.slane %v604, 4
        %v607 = vshll.u32 %v547, 16
        %v609 = vrot.slane %v607, 5
        %v610 = vsel %vm554, %v605, %v609
        %v612 = vshrl.u32 %v524, 16
        %v614 = vrot.slane %v612, 4
        %v615 = vshll.u32 %v524, 16
        %v617 = vrot.slane %v615, 5
        %v618 = vor.u32 %v614, %v617
        %v619 = vrot.slane %v618, 4
        %v621 = vshll.u32 %v548, 16
        %v623 = vrot.slane %v621, 5
        %v624 = vsel %vm554, %v619, %v623
        %v626 = vshrl.u32 %v525, 16
        %v628 = vrot.slane %v626, 4
        %v629 = vshll.u32 %v525, 16
        %v631 = vrot.slane %v629, 5
        %v632 = vor.u32 %v628, %v631
        %v633 = vrot.slane %v632, 4
        %v635 = vshll.u32 %v549, 16
        %v637 = vrot.slane %v635, 5
        %v638 = vsel %vm554, %v633, %v637
        %v640 = vshrl.u32 %v526, 16
        %v642 = vrot.slane %v640, 4
        %v643 = vshll.u32 %v526, 16
        %v645 = vrot.slane %v643, 5
        %v646 = vor.u32 %v642, %v645
        %v647 = vrot.slane %v646, 4
        %v649 = vshll.u32 %v550, 16
        %v651 = vrot.slane %v649, 5
        %v652 = vsel %vm554, %v647, %v651
        %v654 = vshrl.u32 %v527, 16
        %v656 = vrot.slane %v654, 4
        %v657 = vshll.u32 %v527, 16
        %v659 = vrot.slane %v657, 5
        %v660 = vor.u32 %v656, %v659
        %v661 = vrot.slane %v660, 4
        %v663 = vshll.u32 %v551, 16
        %v665 = vrot.slane %v663, 5
        %v666 = vsel %vm554, %v661, %v665
        %v667 = vld [vmem:[%s1 + $0x40] sm:$0xf]
        %v668 = vld [vmem:[%s1 + $0x44] sm:$0xf]
        %v669 = vld [vmem:[%s1 + $0x48] sm:$0xf]
        %v670 = vld [vmem:[%s1 + $0x4c] sm:$0xf]
        %v671 = vld [vmem:[%s1 + $0x50] sm:$0xf]
        %v672 = vld [vmem:[%s1 + $0x54] sm:$0xf]
        %v673 = vld [vmem:[%s1 + $0x58] sm:$0xf]
        %v674 = vld [vmem:[%s1 + $0x5c] sm:$0xf]
        %v675 = vld [vmem:[%s1 + $0x60] sm:$0xf]
        %v676 = vld [vmem:[%s1 + $0x64] sm:$0xf]
        %v677 = vld [vmem:[%s1 + $0x68] sm:$0xf]
        %v678 = vld [vmem:[%s1 + $0x6c] sm:$0xf]
        %v679 = vld [vmem:[%s1 + $0x70] sm:$0xf]
        %v680 = vld [vmem:[%s1 + $0x74] sm:$0xf]
        %v681 = vld [vmem:[%s1 + $0x78] sm:$0xf]
        %v682 = vld [vmem:[%s1 + $0x7c] sm:$0xf]
        %v683 = vunpack.c.l.b16 %v568
        %v684 = vunpack.c.l.b16 %v582
        %v685 = vunpack.c.l.b16 %v596
        %v686 = vunpack.c.l.b16 %v610
        %v687 = vunpack.c.l.b16 %v624
        %v688 = vunpack.c.l.b16 %v638
        %v689 = vunpack.c.l.b16 %v652
        %v690 = vunpack.c.l.b16 %v666
        %v691 = vpack.c.b16 %v684, %v683
        %v692 = vpack.c.b16 %v686, %v685
        %v693 = vpack.c.b16 %v688, %v687
        %v694 = vpack.c.b16 %v690, %v689
        %v715 = vunpack.c.l.b16 %v667
        %v716 = vunpack.c.l.b16 %v668
        %v717 = vunpack.c.l.b16 %v669
        %v718 = vunpack.c.l.b16 %v670
        %v719 = vunpack.c.l.b16 %v671
        %v720 = vunpack.c.l.b16 %v672
        %v721 = vunpack.c.l.b16 %v673
        %v722 = vunpack.c.l.b16 %v674
        %v723 = vunpack.c.l.b16 %v675
        %v724 = vunpack.c.l.b16 %v676
        %v725 = vunpack.c.l.b16 %v677
        %v726 = vunpack.c.l.b16 %v678
        %v727 = vunpack.c.l.b16 %v679
        %v728 = vunpack.c.l.b16 %v680
        %v729 = vunpack.c.l.b16 %v681
        %v730 = vunpack.c.l.b16 %v682
        %v731 = vpack.c.b16 %v716, %v715
        %v732 = vpack.c.b16 %v718, %v717
        %v733 = vpack.c.b16 %v720, %v719
        %v734 = vpack.c.b16 %v722, %v721
        %v735 = vpack.c.b16 %v724, %v723
        %v736 = vpack.c.b16 %v726, %v725
        %v737 = vpack.c.b16 %v728, %v727
        %v738 = vpack.c.b16 %v730, %v729
        %747 = vmatpush.bf16.msra.mxu0 %v738
        %748 = vmatpush.bf16.msra.mxu0 %v737
        %749 = vmatpush.bf16.msra.mxu0 %v736
        %750 = vmatpush.bf16.msra.mxu0 %v735
        %751 = vmatpush.bf16.msra.mxu0 %v734
        %752 = vmatpush.bf16.msra.mxu0 %v733
        %753 = vmatpush.bf16.msra.mxu0 %v732
        %754 = vmatpush.bf16.msra.mxu0 %v731
        %755 = vmatmul.bf16.gmra.mxu0 %v691
        %v756 = vpop.f32.mrf.mxu0
        %v757 = vadd.f32 0.0, %v756
        %v758 = vpop.f32.mrf.mxu0
        %v759 = vadd.f32 0.0, %v758
        %760 = vmatmul.bf16.gmra.mxu0 %v692
        %v761 = vpop.f32.mrf.mxu0
        %v762 = vadd.f32 0.0, %v761
        %v763 = vpop.f32.mrf.mxu0
        %v764 = vadd.f32 0.0, %v763
        %765 = vmatmul.bf16.gmra.mxu0 %v693
        %v766 = vpop.f32.mrf.mxu0
        %v767 = vadd.f32 0.0, %v766
        %v768 = vpop.f32.mrf.mxu0
        %v769 = vadd.f32 0.0, %v768
        %770 = vmatmul.bf16.gmra.mxu0 %v694
        %v771 = vpop.f32.mrf.mxu0
        %v772 = vadd.f32 0.0, %v771
        %v773 = vpop.f32.mrf.mxu0
        %v774 = vadd.f32 0.0, %v773
        %775 = vdwg.mxu0
        %v784 = vunpack.c.l.b16 %v520
        %v785 = vunpack.c.l.b16 %v521
        %v786 = vunpack.c.l.b16 %v522
        %v787 = vunpack.c.l.b16 %v523
        %v788 = vunpack.c.l.b16 %v524
        %v789 = vunpack.c.l.b16 %v525
        %v790 = vunpack.c.l.b16 %v526
        %v791 = vunpack.c.l.b16 %v527
        %v792 = vpack.c.b16 %v785, %v784
        %v793 = vpack.c.b16 %v787, %v786
        %v794 = vpack.c.b16 %v789, %v788
        %v795 = vpack.c.b16 %v791, %v790
        %v816 = vunpack.c.l.b16 %v528
        %v817 = vunpack.c.l.b16 %v529
        %v818 = vunpack.c.l.b16 %v530
        %v819 = vunpack.c.l.b16 %v531
        %v820 = vunpack.c.l.b16 %v532
        %v821 = vunpack.c.l.b16 %v533
        %v822 = vunpack.c.l.b16 %v534
        %v823 = vunpack.c.l.b16 %v535
        %v824 = vunpack.c.l.b16 %v536
        %v825 = vunpack.c.l.b16 %v537
        %v826 = vunpack.c.l.b16 %v538
        %v827 = vunpack.c.l.b16 %v539
        %v828 = vunpack.c.l.b16 %v540
        %v829 = vunpack.c.l.b16 %v541
        %v830 = vunpack.c.l.b16 %v542
        %v831 = vunpack.c.l.b16 %v543
        %v832 = vpack.c.b16 %v817, %v816
        %v833 = vpack.c.b16 %v819, %v818
        %v834 = vpack.c.b16 %v821, %v820
        %v835 = vpack.c.b16 %v823, %v822
        %v836 = vpack.c.b16 %v825, %v824
        %v837 = vpack.c.b16 %v827, %v826
        %v838 = vpack.c.b16 %v829, %v828
        %v839 = vpack.c.b16 %v831, %v830
        %848 = vmatpush.bf16.msra.mxu0 %v839
        %849 = vmatpush.bf16.msra.mxu0 %v838
        %850 = vmatpush.bf16.msra.mxu0 %v837
        %851 = vmatpush.bf16.msra.mxu0 %v836
        %852 = vmatpush.bf16.msra.mxu0 %v835
        %853 = vmatpush.bf16.msra.mxu0 %v834
        %854 = vmatpush.bf16.msra.mxu0 %v833
        %855 = vmatpush.bf16.msra.mxu0 %v832
        %856 = vmatmul.bf16.gmra.mxu0 %v792
        %v857 = vpop.f32.mrf.mxu0
        %v858 = vadd.f32 %v757, %v857
        %v859 = vpop.f32.mrf.mxu0
        %v860 = vadd.f32 %v759, %v859
        %861 = vmatmul.bf16.gmra.mxu0 %v793
        %v862 = vpop.f32.mrf.mxu0
        %v863 = vadd.f32 %v762, %v862
        %v864 = vpop.f32.mrf.mxu0
        %v865 = vadd.f32 %v764, %v864
        %866 = vmatmul.bf16.gmra.mxu0 %v794
        %v867 = vpop.f32.mrf.mxu0
        %v868 = vadd.f32 %v767, %v867
        %v869 = vpop.f32.mrf.mxu0
        %v870 = vadd.f32 %v769, %v869
        %871 = vmatmul.bf16.gmra.mxu0 %v795
        %v872 = vpop.f32.mrf.mxu0
        %v873 = vadd.f32 %v772, %v872
        %v874 = vpop.f32.mrf.mxu0
        %v875 = vadd.f32 %v774, %v874
        %876 = vdwg.mxu0
        %v877 = vld [vmem:[#allocation2] sm:$0xe]
        %v878 = vld [vmem:[#allocation2 + $0x8] sm:$0xe]
        %v879 = vld [vmem:[#allocation2 + $0x10] sm:$0xe]
        %v880 = vld [vmem:[#allocation2 + $0x18] sm:$0xe]
        %v881 = vld [vmem:[#allocation2 + $0x20] sm:$0xe]
        %v882 = vld [vmem:[#allocation2 + $0x28] sm:$0xe]
        %v883 = vld [vmem:[#allocation2 + $0x30] sm:$0xe]
        %v884 = vld [vmem:[#allocation2 + $0x38] sm:$0xe]
        %vm901 = vcmask 1042432
        %vm902 = vcmask 1046532
        %vm903 = vmor %vm901, %vm902
        %v904 = vrot.slane %v877, 5
        %v905 = vrot.slane %v904, 4
        %v906 = vrot.slane %v544, 5
        %v907 = vsel %vm903, %v905, %v906
        %v908 = vrot.slane %v878, 5
        %v909 = vrot.slane %v908, 4
        %v910 = vrot.slane %v545, 5
        %v911 = vsel %vm903, %v909, %v910
        %v912 = vrot.slane %v879, 5
        %v913 = vrot.slane %v912, 4
        %v914 = vrot.slane %v546, 5
        %v915 = vsel %vm903, %v913, %v914
        %v916 = vrot.slane %v880, 5
        %v917 = vrot.slane %v916, 4
        %v918 = vrot.slane %v547, 5
        %v919 = vsel %vm903, %v917, %v918
        %v920 = vrot.slane %v881, 5
        %v921 = vrot.slane %v920, 4
        %v922 = vrot.slane %v548, 5
        %v923 = vsel %vm903, %v921, %v922
        %v924 = vrot.slane %v882, 5
        %v925 = vrot.slane %v924, 4
        %v926 = vrot.slane %v549, 5
        %v927 = vsel %vm903, %v925, %v926
        %v928 = vrot.slane %v883, 5
        %v929 = vrot.slane %v928, 4
        %v930 = vrot.slane %v550, 5
        %v931 = vsel %vm903, %v929, %v930
        %v932 = vrot.slane %v884, 5
        %v933 = vrot.slane %v932, 4
        %v934 = vrot.slane %v551, 5
        %v935 = vsel %vm903, %v933, %v934
        %v936 = vld [vmem:[%s1 + $0x80] sm:$0xf]
        %v937 = vld [vmem:[%s1 + $0x84] sm:$0xf]
        %v938 = vld [vmem:[%s1 + $0x88] sm:$0xf]
        %v939 = vld [vmem:[%s1 + $0x8c] sm:$0xf]
        %v940 = vld [vmem:[%s1 + $0x90] sm:$0xf]
        %v941 = vld [vmem:[%s1 + $0x94] sm:$0xf]
        %v942 = vld [vmem:[%s1 + $0x98] sm:$0xf]
        %v943 = vld [vmem:[%s1 + $0x9c] sm:$0xf]
        %v944 = vld [vmem:[%s1 + $0xa0] sm:$0xf]
        %v945 = vld [vmem:[%s1 + $0xa4] sm:$0xf]
        %v946 = vld [vmem:[%s1 + $0xa8] sm:$0xf]
        %v947 = vld [vmem:[%s1 + $0xac] sm:$0xf]
        %v948 = vld [vmem:[%s1 + $0xb0] sm:$0xf]
        %v949 = vld [vmem:[%s1 + $0xb4] sm:$0xf]
        %v950 = vld [vmem:[%s1 + $0xb8] sm:$0xf]
        %v951 = vld [vmem:[%s1 + $0xbc] sm:$0xf]
        %v952 = vunpack.c.l.b16 %v907
        %v953 = vunpack.c.l.b16 %v911
        %v954 = vunpack.c.l.b16 %v915
        %v955 = vunpack.c.l.b16 %v919
        %v956 = vunpack.c.l.b16 %v923
        %v957 = vunpack.c.l.b16 %v927
        %v958 = vunpack.c.l.b16 %v931
        %v959 = vunpack.c.l.b16 %v935
        %v960 = vpack.c.b16 %v953, %v952
        %v961 = vpack.c.b16 %v955, %v954
        %v962 = vpack.c.b16 %v957, %v956
        %v963 = vpack.c.b16 %v959, %v958
        %v984 = vunpack.c.l.b16 %v936
        %v985 = vunpack.c.l.b16 %v937
        %v986 = vunpack.c.l.b16 %v938
        %v987 = vunpack.c.l.b16 %v939
        %v988 = vunpack.c.l.b16 %v940
        %v989 = vunpack.c.l.b16 %v941
        %v990 = vunpack.c.l.b16 %v942
        %v991 = vunpack.c.l.b16 %v943
        %v992 = vunpack.c.l.b16 %v944
        %v993 = vunpack.c.l.b16 %v945
        %v994 = vunpack.c.l.b16 %v946
        %v995 = vunpack.c.l.b16 %v947
        %v996 = vunpack.c.l.b16 %v948
        %v997 = vunpack.c.l.b16 %v949
        %v998 = vunpack.c.l.b16 %v950
        %v999 = vunpack.c.l.b16 %v951
        %v1000 = vpack.c.b16 %v985, %v984
        %v1001 = vpack.c.b16 %v987, %v986
        %v1002 = vpack.c.b16 %v989, %v988
        %v1003 = vpack.c.b16 %v991, %v990
        %v1004 = vpack.c.b16 %v993, %v992
        %v1005 = vpack.c.b16 %v995, %v994
        %v1006 = vpack.c.b16 %v997, %v996
        %v1007 = vpack.c.b16 %v999, %v998
        %1016 = vmatpush.bf16.msra.mxu0 %v1007
        %1017 = vmatpush.bf16.msra.mxu0 %v1006
        %1018 = vmatpush.bf16.msra.mxu0 %v1005
        %1019 = vmatpush.bf16.msra.mxu0 %v1004
        %1020 = vmatpush.bf16.msra.mxu0 %v1003
        %1021 = vmatpush.bf16.msra.mxu0 %v1002
        %1022 = vmatpush.bf16.msra.mxu0 %v1001
        %1023 = vmatpush.bf16.msra.mxu0 %v1000
        %1024 = vmatmul.bf16.gmra.mxu0 %v960
        %v1025 = vpop.f32.mrf.mxu0
        %v1026 = vadd.f32 0.0, %v1025
        %v1027 = vpop.f32.mrf.mxu0
        %v1028 = vadd.f32 0.0, %v1027
        %1029 = vmatmul.bf16.gmra.mxu0 %v961
        %v1030 = vpop.f32.mrf.mxu0
        %v1031 = vadd.f32 0.0, %v1030
        %v1032 = vpop.f32.mrf.mxu0
        %v1033 = vadd.f32 0.0, %v1032
        %1034 = vmatmul.bf16.gmra.mxu0 %v962
        %v1035 = vpop.f32.mrf.mxu0
        %v1036 = vadd.f32 0.0, %v1035
        %v1037 = vpop.f32.mrf.mxu0
        %v1038 = vadd.f32 0.0, %v1037
        %1039 = vmatmul.bf16.gmra.mxu0 %v963
        %v1040 = vpop.f32.mrf.mxu0
        %v1041 = vadd.f32 0.0, %v1040
        %v1042 = vpop.f32.mrf.mxu0
        %v1043 = vadd.f32 0.0, %v1042
        %1044 = vdwg.mxu0
        %v1045 = vadd.f32 %v858, %v1026
        %v1046 = vadd.f32 %v860, %v1028
        %v1047 = vadd.f32 %v863, %v1031
        %v1048 = vadd.f32 %v865, %v1033
        %v1049 = vadd.f32 %v868, %v1036
        %v1050 = vadd.f32 %v870, %v1038
        %v1051 = vadd.f32 %v873, %v1041
        %v1052 = vadd.f32 %v875, %v1043
        %v1053 = vld [vmem:[%s465] sm:$0xf]
        %v1054 = vld [vmem:[%s465 + $0x8] sm:$0xf]
        %v1055 = vld [vmem:[%s465 + $0x10] sm:$0xf]
        %v1056 = vld [vmem:[%s465 + $0x18] sm:$0xf]
        %v1057 = vld [vmem:[%s465 + $0x20] sm:$0xf]
        %v1058 = vld [vmem:[%s465 + $0x28] sm:$0xf]
        %v1059 = vld [vmem:[%s465 + $0x30] sm:$0xf]
        %v1060 = vld [vmem:[%s465 + $0x38] sm:$0xf]
        %v1061 = vld [vmem:[%s1 + $0xc0] sm:$0xf]
        %v1062 = vld [vmem:[%s1 + $0xc4] sm:$0xf]
        %v1063 = vld [vmem:[%s1 + $0xc8] sm:$0xf]
        %v1064 = vld [vmem:[%s1 + $0xcc] sm:$0xf]
        %v1065 = vld [vmem:[%s1 + $0xd0] sm:$0xf]
        %v1066 = vld [vmem:[%s1 + $0xd4] sm:$0xf]
        %v1067 = vld [vmem:[%s1 + $0xd8] sm:$0xf]
        %v1068 = vld [vmem:[%s1 + $0xdc] sm:$0xf]
        %v1069 = vld [vmem:[%s1 + $0xe0] sm:$0xf]
        %v1070 = vld [vmem:[%s1 + $0xe4] sm:$0xf]
        %v1071 = vld [vmem:[%s1 + $0xe8] sm:$0xf]
        %v1072 = vld [vmem:[%s1 + $0xec] sm:$0xf]
        %v1073 = vld [vmem:[%s1 + $0xf0] sm:$0xf]
        %v1074 = vld [vmem:[%s1 + $0xf4] sm:$0xf]
        %v1075 = vld [vmem:[%s1 + $0xf8] sm:$0xf]
        %v1076 = vld [vmem:[%s1 + $0xfc] sm:$0xf]
        %v1085 = vunpack.c.l.b16 %v1053
        %v1086 = vunpack.c.l.b16 %v1054
        %v1087 = vunpack.c.l.b16 %v1055
        %v1088 = vunpack.c.l.b16 %v1056
        %v1089 = vunpack.c.l.b16 %v1057
        %v1090 = vunpack.c.l.b16 %v1058
        %v1091 = vunpack.c.l.b16 %v1059
        %v1092 = vunpack.c.l.b16 %v1060
        %v1093 = vpack.c.b16 %v1086, %v1085
        %v1094 = vpack.c.b16 %v1088, %v1087
        %v1095 = vpack.c.b16 %v1090, %v1089
        %v1096 = vpack.c.b16 %v1092, %v1091
        %v1117 = vunpack.c.l.b16 %v1061
        %v1118 = vunpack.c.l.b16 %v1062
        %v1119 = vunpack.c.l.b16 %v1063
        %v1120 = vunpack.c.l.b16 %v1064
        %v1121 = vunpack.c.l.b16 %v1065
        %v1122 = vunpack.c.l.b16 %v1066
        %v1123 = vunpack.c.l.b16 %v1067
        %v1124 = vunpack.c.l.b16 %v1068
        %v1125 = vunpack.c.l.b16 %v1069
        %v1126 = vunpack.c.l.b16 %v1070
        %v1127 = vunpack.c.l.b16 %v1071
        %v1128 = vunpack.c.l.b16 %v1072
        %v1129 = vunpack.c.l.b16 %v1073
        %v1130 = vunpack.c.l.b16 %v1074
        %v1131 = vunpack.c.l.b16 %v1075
        %v1132 = vunpack.c.l.b16 %v1076
        %v1133 = vpack.c.b16 %v1118, %v1117
        %v1134 = vpack.c.b16 %v1120, %v1119
        %v1135 = vpack.c.b16 %v1122, %v1121
        %v1136 = vpack.c.b16 %v1124, %v1123
        %v1137 = vpack.c.b16 %v1126, %v1125
        %v1138 = vpack.c.b16 %v1128, %v1127
        %v1139 = vpack.c.b16 %v1130, %v1129
        %v1140 = vpack.c.b16 %v1132, %v1131
        %1149 = vmatpush.bf16.msra.mxu0 %v1140
        %1150 = vmatpush.bf16.msra.mxu0 %v1139
        %1151 = vmatpush.bf16.msra.mxu0 %v1138
        %1152 = vmatpush.bf16.msra.mxu0 %v1137
        %1153 = vmatpush.bf16.msra.mxu0 %v1136
        %1154 = vmatpush.bf16.msra.mxu0 %v1135
        %1155 = vmatpush.bf16.msra.mxu0 %v1134
        %1156 = vmatpush.bf16.msra.mxu0 %v1133
        %1157 = vmatmul.bf16.gmra.mxu0 %v1093
        %v1158 = vpop.f32.mrf.mxu0
        %v1159 = vadd.f32 0.0, %v1158
        %v1160 = vpop.f32.mrf.mxu0
        %v1161 = vadd.f32 0.0, %v1160
        %1162 = vmatmul.bf16.gmra.mxu0 %v1094
        %v1163 = vpop.f32.mrf.mxu0
        %v1164 = vadd.f32 0.0, %v1163
        %v1165 = vpop.f32.mrf.mxu0
        %v1166 = vadd.f32 0.0, %v1165
        %1167 = vmatmul.bf16.gmra.mxu0 %v1095
        %v1168 = vpop.f32.mrf.mxu0
        %v1169 = vadd.f32 0.0, %v1168
        %v1170 = vpop.f32.mrf.mxu0
        %v1171 = vadd.f32 0.0, %v1170
        %1172 = vmatmul.bf16.gmra.mxu0 %v1096
        %v1173 = vpop.f32.mrf.mxu0
        %v1174 = vadd.f32 0.0, %v1173
        %v1175 = vpop.f32.mrf.mxu0
        %v1176 = vadd.f32 0.0, %v1175
        %1177 = vdwg.mxu0
        %v1178 = vadd.f32 %v1045, %v1159
        %v1179 = vadd.f32 %v1046, %v1161
        %v1180 = vadd.f32 %v1047, %v1164
        %v1181 = vadd.f32 %v1048, %v1166
        %v1182 = vadd.f32 %v1049, %v1169
        %v1183 = vadd.f32 %v1050, %v1171
        %v1184 = vadd.f32 %v1051, %v1174
        %v1185 = vadd.f32 %v1052, %v1176
        %v1186 = vld [vmem:[%s465] sm:$0xf]
        %v1187 = vld [vmem:[%s465 + $0x4] sm:$0x1]
        %v1188 = vld [vmem:[%s465 + $0x8] sm:$0xf]
        %v1189 = vld [vmem:[%s465 + $0xc] sm:$0x1]
        %v1190 = vld [vmem:[%s465 + $0x10] sm:$0xf]
        %v1191 = vld [vmem:[%s465 + $0x14] sm:$0x1]
        %v1192 = vld [vmem:[%s465 + $0x18] sm:$0xf]
        %v1193 = vld [vmem:[%s465 + $0x1c] sm:$0x1]
        %v1194 = vld [vmem:[%s465 + $0x20] sm:$0xf]
        %v1195 = vld [vmem:[%s465 + $0x24] sm:$0x1]
        %v1196 = vld [vmem:[%s465 + $0x28] sm:$0xf]
        %v1197 = vld [vmem:[%s465 + $0x2c] sm:$0x1]
        %v1198 = vld [vmem:[%s465 + $0x30] sm:$0xf]
        %v1199 = vld [vmem:[%s465 + $0x34] sm:$0x1]
        %v1200 = vld [vmem:[%s465 + $0x38] sm:$0xf]
        %v1201 = vld [vmem:[%s465 + $0x3c] sm:$0x1]
        %v1203 = vshrl.u32 %v1186, 16
        %v1205 = vrot.slane %v1203, 4
        %v1206 = vshll.u32 %v1186, 16
        %v1208 = vrot.slane %v1206, 5
        %v1209 = vor.u32 %v1205, %v1208
        %v1210 = vrot.slane %v1209, 4
        %v1212 = vshll.u32 %v1187, 16
        %v1214 = vrot.slane %v1212, 5
        %v1215 = vsel %vm554, %v1210, %v1214
        %v1217 = vshrl.u32 %v1188, 16
        %v1219 = vrot.slane %v1217, 4
        %v1220 = vshll.u32 %v1188, 16
        %v1222 = vrot.slane %v1220, 5
        %v1223 = vor.u32 %v1219, %v1222
        %v1224 = vrot.slane %v1223, 4
        %v1226 = vshll.u32 %v1189, 16
        %v1228 = vrot.slane %v1226, 5
        %v1229 = vsel %vm554, %v1224, %v1228
        %v1231 = vshrl.u32 %v1190, 16
        %v1233 = vrot.slane %v1231, 4
        %v1234 = vshll.u32 %v1190, 16
        %v1236 = vrot.slane %v1234, 5
        %v1237 = vor.u32 %v1233, %v1236
        %v1238 = vrot.slane %v1237, 4
        %v1240 = vshll.u32 %v1191, 16
        %v1242 = vrot.slane %v1240, 5
        %v1243 = vsel %vm554, %v1238, %v1242
        %v1245 = vshrl.u32 %v1192, 16
        %v1247 = vrot.slane %v1245, 4
        %v1248 = vshll.u32 %v1192, 16
        %v1250 = vrot.slane %v1248, 5
        %v1251 = vor.u32 %v1247, %v1250
        %v1252 = vrot.slane %v1251, 4
        %v1254 = vshll.u32 %v1193, 16
        %v1256 = vrot.slane %v1254, 5
        %v1257 = vsel %vm554, %v1252, %v1256
        %v1259 = vshrl.u32 %v1194, 16
        %v1261 = vrot.slane %v1259, 4
        %v1262 = vshll.u32 %v1194, 16
        %v1264 = vrot.slane %v1262, 5
        %v1265 = vor.u32 %v1261, %v1264
        %v1266 = vrot.slane %v1265, 4
        %v1268 = vshll.u32 %v1195, 16
        %v1270 = vrot.slane %v1268, 5
        %v1271 = vsel %vm554, %v1266, %v1270
        %v1273 = vshrl.u32 %v1196, 16
        %v1275 = vrot.slane %v1273, 4
        %v1276 = vshll.u32 %v1196, 16
        %v1278 = vrot.slane %v1276, 5
        %v1279 = vor.u32 %v1275, %v1278
        %v1280 = vrot.slane %v1279, 4
        %v1282 = vshll.u32 %v1197, 16
        %v1284 = vrot.slane %v1282, 5
        %v1285 = vsel %vm554, %v1280, %v1284
        %v1287 = vshrl.u32 %v1198, 16
        %v1289 = vrot.slane %v1287, 4
        %v1290 = vshll.u32 %v1198, 16
        %v1292 = vrot.slane %v1290, 5
        %v1293 = vor.u32 %v1289, %v1292
        %v1294 = vrot.slane %v1293, 4
        %v1296 = vshll.u32 %v1199, 16
        %v1298 = vrot.slane %v1296, 5
        %v1299 = vsel %vm554, %v1294, %v1298
        %v1301 = vshrl.u32 %v1200, 16
        %v1303 = vrot.slane %v1301, 4
        %v1304 = vshll.u32 %v1200, 16
        %v1306 = vrot.slane %v1304, 5
        %v1307 = vor.u32 %v1303, %v1306
        %v1308 = vrot.slane %v1307, 4
        %v1310 = vshll.u32 %v1201, 16
        %v1312 = vrot.slane %v1310, 5
        %v1313 = vsel %vm554, %v1308, %v1312
        %v1314 = vld [vmem:[%s1 + $0x100] sm:$0xf]
        %v1315 = vld [vmem:[%s1 + $0x104] sm:$0xf]
        %v1316 = vld [vmem:[%s1 + $0x108] sm:$0xf]
        %v1317 = vld [vmem:[%s1 + $0x10c] sm:$0xf]
        %v1318 = vld [vmem:[%s1 + $0x110] sm:$0xf]
        %v1319 = vld [vmem:[%s1 + $0x114] sm:$0xf]
        %v1320 = vld [vmem:[%s1 + $0x118] sm:$0xf]
        %v1321 = vld [vmem:[%s1 + $0x11c] sm:$0xf]
        %v1322 = vld [vmem:[%s1 + $0x120] sm:$0xf]
        %v1323 = vld [vmem:[%s1 + $0x124] sm:$0xf]
        %v1324 = vld [vmem:[%s1 + $0x128] sm:$0xf]
        %v1325 = vld [vmem:[%s1 + $0x12c] sm:$0xf]
        %v1326 = vld [vmem:[%s1 + $0x130] sm:$0xf]
        %v1327 = vld [vmem:[%s1 + $0x134] sm:$0xf]
        %v1328 = vld [vmem:[%s1 + $0x138] sm:$0xf]
        %v1329 = vld [vmem:[%s1 + $0x13c] sm:$0xf]
        %v1330 = vunpack.c.l.b16 %v1215
        %v1331 = vunpack.c.l.b16 %v1229
        %v1332 = vunpack.c.l.b16 %v1243
        %v1333 = vunpack.c.l.b16 %v1257
        %v1334 = vunpack.c.l.b16 %v1271
        %v1335 = vunpack.c.l.b16 %v1285
        %v1336 = vunpack.c.l.b16 %v1299
        %v1337 = vunpack.c.l.b16 %v1313
        %v1338 = vpack.c.b16 %v1331, %v1330
        %v1339 = vpack.c.b16 %v1333, %v1332
        %v1340 = vpack.c.b16 %v1335, %v1334
        %v1341 = vpack.c.b16 %v1337, %v1336
        %v1362 = vunpack.c.l.b16 %v1314
        %v1363 = vunpack.c.l.b16 %v1315
        %v1364 = vunpack.c.l.b16 %v1316
        %v1365 = vunpack.c.l.b16 %v1317
        %v1366 = vunpack.c.l.b16 %v1318
        %v1367 = vunpack.c.l.b16 %v1319
        %v1368 = vunpack.c.l.b16 %v1320
        %v1369 = vunpack.c.l.b16 %v1321
        %v1370 = vunpack.c.l.b16 %v1322
        %v1371 = vunpack.c.l.b16 %v1323
        %v1372 = vunpack.c.l.b16 %v1324
        %v1373 = vunpack.c.l.b16 %v1325
        %v1374 = vunpack.c.l.b16 %v1326
        %v1375 = vunpack.c.l.b16 %v1327
        %v1376 = vunpack.c.l.b16 %v1328
        %v1377 = vunpack.c.l.b16 %v1329
        %v1378 = vpack.c.b16 %v1363, %v1362
        %v1379 = vpack.c.b16 %v1365, %v1364
        %v1380 = vpack.c.b16 %v1367, %v1366
        %v1381 = vpack.c.b16 %v1369, %v1368
        %v1382 = vpack.c.b16 %v1371, %v1370
        %v1383 = vpack.c.b16 %v1373, %v1372
        %v1384 = vpack.c.b16 %v1375, %v1374
        %v1385 = vpack.c.b16 %v1377, %v1376
        %1394 = vmatpush.bf16.msra.mxu0 %v1385
        %1395 = vmatpush.bf16.msra.mxu0 %v1384
        %1396 = vmatpush.bf16.msra.mxu0 %v1383
        %1397 = vmatpush.bf16.msra.mxu0 %v1382
        %1398 = vmatpush.bf16.msra.mxu0 %v1381
        %1399 = vmatpush.bf16.msra.mxu0 %v1380
        %1400 = vmatpush.bf16.msra.mxu0 %v1379
        %1401 = vmatpush.bf16.msra.mxu0 %v1378
        %1402 = vmatmul.bf16.gmra.mxu0 %v1338
        %v1403 = vpop.f32.mrf.mxu0
        %v1404 = vadd.f32 0.0, %v1403
        %v1405 = vpop.f32.mrf.mxu0
        %v1406 = vadd.f32 0.0, %v1405
        %1407 = vmatmul.bf16.gmra.mxu0 %v1339
        %v1408 = vpop.f32.mrf.mxu0
        %v1409 = vadd.f32 0.0, %v1408
        %v1410 = vpop.f32.mrf.mxu0
        %v1411 = vadd.f32 0.0, %v1410
        %1412 = vmatmul.bf16.gmra.mxu0 %v1340
        %v1413 = vpop.f32.mrf.mxu0
        %v1414 = vadd.f32 0.0, %v1413
        %v1415 = vpop.f32.mrf.mxu0
        %v1416 = vadd.f32 0.0, %v1415
        %1417 = vmatmul.bf16.gmra.mxu0 %v1341
        %v1418 = vpop.f32.mrf.mxu0
        %v1419 = vadd.f32 0.0, %v1418
        %v1420 = vpop.f32.mrf.mxu0
        %v1421 = vadd.f32 0.0, %v1420
        %1422 = vdwg.mxu0
        %v1423 = vadd.f32 %v1178, %v1404
        %v1424 = vadd.f32 %v1179, %v1406
        %v1425 = vadd.f32 %v1180, %v1409
        %v1426 = vadd.f32 %v1181, %v1411
        %v1427 = vadd.f32 %v1182, %v1414
        %v1428 = vadd.f32 %v1183, %v1416
        %v1429 = vadd.f32 %v1184, %v1419
        %v1430 = vadd.f32 %v1185, %v1421
        %v1431 = vld [vmem:[%s465] sm:$0xe]
        %v1432 = vld [vmem:[%s465 + $0x8] sm:$0xe]
        %v1433 = vld [vmem:[%s465 + $0x10] sm:$0xe]
        %v1434 = vld [vmem:[%s465 + $0x18] sm:$0xe]
        %v1435 = vld [vmem:[%s465 + $0x20] sm:$0xe]
        %v1436 = vld [vmem:[%s465 + $0x28] sm:$0xe]
        %v1437 = vld [vmem:[%s465 + $0x30] sm:$0xe]
        %v1438 = vld [vmem:[%s465 + $0x38] sm:$0xe]
        %v1455 = vrot.slane %v1431, 5
        %v1456 = vrot.slane %v1455, 4
        %v1457 = vrot.slane %v1187, 5
        %v1458 = vsel %vm903, %v1456, %v1457
        %v1459 = vrot.slane %v1432, 5
        %v1460 = vrot.slane %v1459, 4
        %v1461 = vrot.slane %v1189, 5
        %v1462 = vsel %vm903, %v1460, %v1461
        %v1463 = vrot.slane %v1433, 5
        %v1464 = vrot.slane %v1463, 4
        %v1465 = vrot.slane %v1191, 5
        %v1466 = vsel %vm903, %v1464, %v1465
        %v1467 = vrot.slane %v1434, 5
        %v1468 = vrot.slane %v1467, 4
        %v1469 = vrot.slane %v1193, 5
        %v1470 = vsel %vm903, %v1468, %v1469
        %v1471 = vrot.slane %v1435, 5
        %v1472 = vrot.slane %v1471, 4
        %v1473 = vrot.slane %v1195, 5
        %v1474 = vsel %vm903, %v1472, %v1473
        %v1475 = vrot.slane %v1436, 5
        %v1476 = vrot.slane %v1475, 4
        %v1477 = vrot.slane %v1197, 5
        %v1478 = vsel %vm903, %v1476, %v1477
        %v1479 = vrot.slane %v1437, 5
        %v1480 = vrot.slane %v1479, 4
        %v1481 = vrot.slane %v1199, 5
        %v1482 = vsel %vm903, %v1480, %v1481
        %v1483 = vrot.slane %v1438, 5
        %v1484 = vrot.slane %v1483, 4
        %v1485 = vrot.slane %v1201, 5
        %v1486 = vsel %vm903, %v1484, %v1485
        %v1487 = vld [vmem:[%s1 + $0x140] sm:$0xf]
        %v1488 = vld [vmem:[%s1 + $0x144] sm:$0xf]
        %v1489 = vld [vmem:[%s1 + $0x148] sm:$0xf]
        %v1490 = vld [vmem:[%s1 + $0x14c] sm:$0xf]
        %v1491 = vld [vmem:[%s1 + $0x150] sm:$0xf]
        %v1492 = vld [vmem:[%s1 + $0x154] sm:$0xf]
        %v1493 = vld [vmem:[%s1 + $0x158] sm:$0xf]
        %v1494 = vld [vmem:[%s1 + $0x15c] sm:$0xf]
        %v1495 = vld [vmem:[%s1 + $0x160] sm:$0xf]
        %v1496 = vld [vmem:[%s1 + $0x164] sm:$0xf]
        %v1497 = vld [vmem:[%s1 + $0x168] sm:$0xf]
        %v1498 = vld [vmem:[%s1 + $0x16c] sm:$0xf]
        %v1499 = vld [vmem:[%s1 + $0x170] sm:$0xf]
        %v1500 = vld [vmem:[%s1 + $0x174] sm:$0xf]
        %v1501 = vld [vmem:[%s1 + $0x178] sm:$0xf]
        %v1502 = vld [vmem:[%s1 + $0x17c] sm:$0xf]
        %v1503 = vunpack.c.l.b16 %v1458
        %v1504 = vunpack.c.l.b16 %v1462
        %v1505 = vunpack.c.l.b16 %v1466
        %v1506 = vunpack.c.l.b16 %v1470
        %v1507 = vunpack.c.l.b16 %v1474
        %v1508 = vunpack.c.l.b16 %v1478
        %v1509 = vunpack.c.l.b16 %v1482
        %v1510 = vunpack.c.l.b16 %v1486
        %v1511 = vpack.c.b16 %v1504, %v1503
        %v1512 = vpack.c.b16 %v1506, %v1505
        %v1513 = vpack.c.b16 %v1508, %v1507
        %v1514 = vpack.c.b16 %v1510, %v1509
        %v1535 = vunpack.c.l.b16 %v1487
        %v1536 = vunpack.c.l.b16 %v1488
        %v1537 = vunpack.c.l.b16 %v1489
        %v1538 = vunpack.c.l.b16 %v1490
        %v1539 = vunpack.c.l.b16 %v1491
        %v1540 = vunpack.c.l.b16 %v1492
        %v1541 = vunpack.c.l.b16 %v1493
        %v1542 = vunpack.c.l.b16 %v1494
        %v1543 = vunpack.c.l.b16 %v1495
        %v1544 = vunpack.c.l.b16 %v1496
        %v1545 = vunpack.c.l.b16 %v1497
        %v1546 = vunpack.c.l.b16 %v1498
        %v1547 = vunpack.c.l.b16 %v1499
        %v1548 = vunpack.c.l.b16 %v1500
        %v1549 = vunpack.c.l.b16 %v1501
        %v1550 = vunpack.c.l.b16 %v1502
        %v1551 = vpack.c.b16 %v1536, %v1535
        %v1552 = vpack.c.b16 %v1538, %v1537
        %v1553 = vpack.c.b16 %v1540, %v1539
        %v1554 = vpack.c.b16 %v1542, %v1541
        %v1555 = vpack.c.b16 %v1544, %v1543
        %v1556 = vpack.c.b16 %v1546, %v1545
        %v1557 = vpack.c.b16 %v1548, %v1547
        %v1558 = vpack.c.b16 %v1550, %v1549
        %1567 = vmatpush.bf16.msra.mxu0 %v1558
        %1568 = vmatpush.bf16.msra.mxu0 %v1557
        %1569 = vmatpush.bf16.msra.mxu0 %v1556
        %1570 = vmatpush.bf16.msra.mxu0 %v1555
        %1571 = vmatpush.bf16.msra.mxu0 %v1554
        %1572 = vmatpush.bf16.msra.mxu0 %v1553
        %1573 = vmatpush.bf16.msra.mxu0 %v1552
        %1574 = vmatpush.bf16.msra.mxu0 %v1551
        %1575 = vmatmul.bf16.gmra.mxu0 %v1511
        %v1576 = vpop.f32.mrf.mxu0
        %v1577 = vadd.f32 0.0, %v1576
        %v1578 = vpop.f32.mrf.mxu0
        %v1579 = vadd.f32 0.0, %v1578
        %1580 = vmatmul.bf16.gmra.mxu0 %v1512
        %v1581 = vpop.f32.mrf.mxu0
        %v1582 = vadd.f32 0.0, %v1581
        %v1583 = vpop.f32.mrf.mxu0
        %v1584 = vadd.f32 0.0, %v1583
        %1585 = vmatmul.bf16.gmra.mxu0 %v1513
        %v1586 = vpop.f32.mrf.mxu0
        %v1587 = vadd.f32 0.0, %v1586
        %v1588 = vpop.f32.mrf.mxu0
        %v1589 = vadd.f32 0.0, %v1588
        %1590 = vmatmul.bf16.gmra.mxu0 %v1514
        %v1591 = vpop.f32.mrf.mxu0
        %v1592 = vadd.f32 0.0, %v1591
        %v1593 = vpop.f32.mrf.mxu0
        %v1594 = vadd.f32 0.0, %v1593
        %1595 = vdwg.mxu0
        %v1596 = vadd.f32 %v1423, %v1577
        %v1597 = vadd.f32 %v1424, %v1579
        %v1598 = vadd.f32 %v1425, %v1582
        %v1599 = vadd.f32 %v1426, %v1584
        %v1600 = vadd.f32 %v1427, %v1587
        %v1601 = vadd.f32 %v1428, %v1589
        %v1602 = vadd.f32 %v1429, %v1592
        %v1603 = vadd.f32 %v1430, %v1594
        %s1604 = scalar_lea.vmem [#allocation2], 16
        %v1605 = vld [vmem:[%s1604] sm:$0xf]
        %v1606 = vld [vmem:[%s1604 + $0x8] sm:$0xf]
        %v1607 = vld [vmem:[%s1604 + $0x10] sm:$0xf]
        %v1608 = vld [vmem:[%s1604 + $0x18] sm:$0xf]
        %v1609 = vld [vmem:[%s1604 + $0x20] sm:$0xf]
        %v1610 = vld [vmem:[%s1604 + $0x28] sm:$0xf]
        %v1611 = vld [vmem:[%s1604 + $0x30] sm:$0xf]
        %v1612 = vld [vmem:[%s1604 + $0x38] sm:$0xf]
        %v1613 = vld [vmem:[%s1 + $0x180] sm:$0xf]
        %v1614 = vld [vmem:[%s1 + $0x184] sm:$0xf]
        %v1615 = vld [vmem:[%s1 + $0x188] sm:$0xf]
        %v1616 = vld [vmem:[%s1 + $0x18c] sm:$0xf]
        %v1617 = vld [vmem:[%s1 + $0x190] sm:$0xf]
        %v1618 = vld [vmem:[%s1 + $0x194] sm:$0xf]
        %v1619 = vld [vmem:[%s1 + $0x198] sm:$0xf]
        %v1620 = vld [vmem:[%s1 + $0x19c] sm:$0xf]
        %v1621 = vld [vmem:[%s1 + $0x1a0] sm:$0xf]
        %v1622 = vld [vmem:[%s1 + $0x1a4] sm:$0xf]
        %v1623 = vld [vmem:[%s1 + $0x1a8] sm:$0xf]
        %v1624 = vld [vmem:[%s1 + $0x1ac] sm:$0xf]
        %v1625 = vld [vmem:[%s1 + $0x1b0] sm:$0xf]
        %v1626 = vld [vmem:[%s1 + $0x1b4] sm:$0xf]
        %v1627 = vld [vmem:[%s1 + $0x1b8] sm:$0xf]
        %v1628 = vld [vmem:[%s1 + $0x1bc] sm:$0xf]
        %v1637 = vunpack.c.l.b16 %v1605
        %v1638 = vunpack.c.l.b16 %v1606
        %v1639 = vunpack.c.l.b16 %v1607
        %v1640 = vunpack.c.l.b16 %v1608
        %v1641 = vunpack.c.l.b16 %v1609
        %v1642 = vunpack.c.l.b16 %v1610
        %v1643 = vunpack.c.l.b16 %v1611
        %v1644 = vunpack.c.l.b16 %v1612
        %v1645 = vpack.c.b16 %v1638, %v1637
        %v1646 = vpack.c.b16 %v1640, %v1639
        %v1647 = vpack.c.b16 %v1642, %v1641
        %v1648 = vpack.c.b16 %v1644, %v1643
        %v1669 = vunpack.c.l.b16 %v1613
        %v1670 = vunpack.c.l.b16 %v1614
        %v1671 = vunpack.c.l.b16 %v1615
        %v1672 = vunpack.c.l.b16 %v1616
        %v1673 = vunpack.c.l.b16 %v1617
        %v1674 = vunpack.c.l.b16 %v1618
        %v1675 = vunpack.c.l.b16 %v1619
        %v1676 = vunpack.c.l.b16 %v1620
        %v1677 = vunpack.c.l.b16 %v1621
        %v1678 = vunpack.c.l.b16 %v1622
        %v1679 = vunpack.c.l.b16 %v1623
        %v1680 = vunpack.c.l.b16 %v1624
        %v1681 = vunpack.c.l.b16 %v1625
        %v1682 = vunpack.c.l.b16 %v1626
        %v1683 = vunpack.c.l.b16 %v1627
        %v1684 = vunpack.c.l.b16 %v1628
        %v1685 = vpack.c.b16 %v1670, %v1669
        %v1686 = vpack.c.b16 %v1672, %v1671
        %v1687 = vpack.c.b16 %v1674, %v1673
        %v1688 = vpack.c.b16 %v1676, %v1675
        %v1689 = vpack.c.b16 %v1678, %v1677
        %v1690 = vpack.c.b16 %v1680, %v1679
        %v1691 = vpack.c.b16 %v1682, %v1681
        %v1692 = vpack.c.b16 %v1684, %v1683
        %1701 = vmatpush.bf16.msra.mxu0 %v1692
        %1702 = vmatpush.bf16.msra.mxu0 %v1691
        %1703 = vmatpush.bf16.msra.mxu0 %v1690
        %1704 = vmatpush.bf16.msra.mxu0 %v1689
        %1705 = vmatpush.bf16.msra.mxu0 %v1688
        %1706 = vmatpush.bf16.msra.mxu0 %v1687
        %1707 = vmatpush.bf16.msra.mxu0 %v1686
        %1708 = vmatpush.bf16.msra.mxu0 %v1685
        %1709 = vmatmul.bf16.gmra.mxu0 %v1645
        %v1710 = vpop.f32.mrf.mxu0
        %v1711 = vadd.f32 0.0, %v1710
        %v1712 = vpop.f32.mrf.mxu0
        %v1713 = vadd.f32 0.0, %v1712
        %1714 = vmatmul.bf16.gmra.mxu0 %v1646
        %v1715 = vpop.f32.mrf.mxu0
        %v1716 = vadd.f32 0.0, %v1715
        %v1717 = vpop.f32.mrf.mxu0
        %v1718 = vadd.f32 0.0, %v1717
        %1719 = vmatmul.bf16.gmra.mxu0 %v1647
        %v1720 = vpop.f32.mrf.mxu0
        %v1721 = vadd.f32 0.0, %v1720
        %v1722 = vpop.f32.mrf.mxu0
        %v1723 = vadd.f32 0.0, %v1722
        %1724 = vmatmul.bf16.gmra.mxu0 %v1648
        %v1725 = vpop.f32.mrf.mxu0
        %v1726 = vadd.f32 0.0, %v1725
        %v1727 = vpop.f32.mrf.mxu0
        %v1728 = vadd.f32 0.0, %v1727
        %1729 = vdwg.mxu0
        %v1730 = vadd.f32 %v1596, %v1711
        %v1731 = vadd.f32 %v1597, %v1713
        %v1732 = vadd.f32 %v1598, %v1716
        %v1733 = vadd.f32 %v1599, %v1718
        %v1734 = vadd.f32 %v1600, %v1721
        %v1735 = vadd.f32 %v1601, %v1723
        %v1736 = vadd.f32 %v1602, %v1726
        %v1737 = vadd.f32 %v1603, %v1728
        %v1738 = vld [vmem:[%s1604] sm:$0xf]
        %v1739 = vld [vmem:[%s1604 + $0x4] sm:$0x1]
        %v1740 = vld [vmem:[%s1604 + $0x8] sm:$0xf]
        %v1741 = vld [vmem:[%s1604 + $0xc] sm:$0x1]
        %v1742 = vld [vmem:[%s1604 + $0x10] sm:$0xf]
        %v1743 = vld [vmem:[%s1604 + $0x14] sm:$0x1]
        %v1744 = vld [vmem:[%s1604 + $0x18] sm:$0xf]
        %v1745 = vld [vmem:[%s1604 + $0x1c] sm:$0x1]
        %v1746 = vld [vmem:[%s1604 + $0x20] sm:$0xf]
        %v1747 = vld [vmem:[%s1604 + $0x24] sm:$0x1]
        %v1748 = vld [vmem:[%s1604 + $0x28] sm:$0xf]
        %v1749 = vld [vmem:[%s1604 + $0x2c] sm:$0x1]
        %v1750 = vld [vmem:[%s1604 + $0x30] sm:$0xf]
        %v1751 = vld [vmem:[%s1604 + $0x34] sm:$0x1]
        %v1752 = vld [vmem:[%s1604 + $0x38] sm:$0xf]
        %v1753 = vld [vmem:[%s1604 + $0x3c] sm:$0x1]
        %v1755 = vshrl.u32 %v1738, 16
        %v1757 = vrot.slane %v1755, 4
        %v1758 = vshll.u32 %v1738, 16
        %v1760 = vrot.slane %v1758, 5
        %v1761 = vor.u32 %v1757, %v1760
        %v1762 = vrot.slane %v1761, 4
        %v1764 = vshll.u32 %v1739, 16
        %v1766 = vrot.slane %v1764, 5
        %v1767 = vsel %vm554, %v1762, %v1766
        %v1769 = vshrl.u32 %v1740, 16
        %v1771 = vrot.slane %v1769, 4
        %v1772 = vshll.u32 %v1740, 16
        %v1774 = vrot.slane %v1772, 5
        %v1775 = vor.u32 %v1771, %v1774
        %v1776 = vrot.slane %v1775, 4
        %v1778 = vshll.u32 %v1741, 16
        %v1780 = vrot.slane %v1778, 5
        %v1781 = vsel %vm554, %v1776, %v1780
        %v1783 = vshrl.u32 %v1742, 16
        %v1785 = vrot.slane %v1783, 4
        %v1786 = vshll.u32 %v1742, 16
        %v1788 = vrot.slane %v1786, 5
        %v1789 = vor.u32 %v1785, %v1788
        %v1790 = vrot.slane %v1789, 4
        %v1792 = vshll.u32 %v1743, 16
        %v1794 = vrot.slane %v1792, 5
        %v1795 = vsel %vm554, %v1790, %v1794
        %v1797 = vshrl.u32 %v1744, 16
        %v1799 = vrot.slane %v1797, 4
        %v1800 = vshll.u32 %v1744, 16
        %v1802 = vrot.slane %v1800, 5
        %v1803 = vor.u32 %v1799, %v1802
        %v1804 = vrot.slane %v1803, 4
        %v1806 = vshll.u32 %v1745, 16
        %v1808 = vrot.slane %v1806, 5
        %v1809 = vsel %vm554, %v1804, %v1808
        %v1811 = vshrl.u32 %v1746, 16
        %v1813 = vrot.slane %v1811, 4
        %v1814 = vshll.u32 %v1746, 16
        %v1816 = vrot.slane %v1814, 5
        %v1817 = vor.u32 %v1813, %v1816
        %v1818 = vrot.slane %v1817, 4
        %v1820 = vshll.u32 %v1747, 16
        %v1822 = vrot.slane %v1820, 5
        %v1823 = vsel %vm554, %v1818, %v1822
        %v1825 = vshrl.u32 %v1748, 16
        %v1827 = vrot.slane %v1825, 4
        %v1828 = vshll.u32 %v1748, 16
        %v1830 = vrot.slane %v1828, 5
        %v1831 = vor.u32 %v1827, %v1830
        %v1832 = vrot.slane %v1831, 4
        %v1834 = vshll.u32 %v1749, 16
        %v1836 = vrot.slane %v1834, 5
        %v1837 = vsel %vm554, %v1832, %v1836
        %v1839 = vshrl.u32 %v1750, 16
        %v1841 = vrot.slane %v1839, 4
        %v1842 = vshll.u32 %v1750, 16
        %v1844 = vrot.slane %v1842, 5
        %v1845 = vor.u32 %v1841, %v1844
        %v1846 = vrot.slane %v1845, 4
        %v1848 = vshll.u32 %v1751, 16
        %v1850 = vrot.slane %v1848, 5
        %v1851 = vsel %vm554, %v1846, %v1850
        %v1853 = vshrl.u32 %v1752, 16
        %v1855 = vrot.slane %v1853, 4
        %v1856 = vshll.u32 %v1752, 16
        %v1858 = vrot.slane %v1856, 5
        %v1859 = vor.u32 %v1855, %v1858
        %v1860 = vrot.slane %v1859, 4
        %v1862 = vshll.u32 %v1753, 16
        %v1864 = vrot.slane %v1862, 5
        %v1865 = vsel %vm554, %v1860, %v1864
        %v1866 = vld [vmem:[%s1 + $0x1c0] sm:$0xf]
        %v1867 = vld [vmem:[%s1 + $0x1c4] sm:$0xf]
        %v1868 = vld [vmem:[%s1 + $0x1c8] sm:$0xf]
        %v1869 = vld [vmem:[%s1 + $0x1cc] sm:$0xf]
        %v1870 = vld [vmem:[%s1 + $0x1d0] sm:$0xf]
        %v1871 = vld [vmem:[%s1 + $0x1d4] sm:$0xf]
        %v1872 = vld [vmem:[%s1 + $0x1d8] sm:$0xf]
        %v1873 = vld [vmem:[%s1 + $0x1dc] sm:$0xf]
        %v1874 = vld [vmem:[%s1 + $0x1e0] sm:$0xf]
        %v1875 = vld [vmem:[%s1 + $0x1e4] sm:$0xf]
        %v1876 = vld [vmem:[%s1 + $0x1e8] sm:$0xf]
        %v1877 = vld [vmem:[%s1 + $0x1ec] sm:$0xf]
        %v1878 = vld [vmem:[%s1 + $0x1f0] sm:$0xf]
        %v1879 = vld [vmem:[%s1 + $0x1f4] sm:$0xf]
        %v1880 = vld [vmem:[%s1 + $0x1f8] sm:$0xf]
        %v1881 = vld [vmem:[%s1 + $0x1fc] sm:$0xf]
        %v1882 = vunpack.c.l.b16 %v1767
        %v1883 = vunpack.c.l.b16 %v1781
        %v1884 = vunpack.c.l.b16 %v1795
        %v1885 = vunpack.c.l.b16 %v1809
        %v1886 = vunpack.c.l.b16 %v1823
        %v1887 = vunpack.c.l.b16 %v1837
        %v1888 = vunpack.c.l.b16 %v1851
        %v1889 = vunpack.c.l.b16 %v1865
        %v1890 = vpack.c.b16 %v1883, %v1882
        %v1891 = vpack.c.b16 %v1885, %v1884
        %v1892 = vpack.c.b16 %v1887, %v1886
        %v1893 = vpack.c.b16 %v1889, %v1888
        %v1914 = vunpack.c.l.b16 %v1866
        %v1915 = vunpack.c.l.b16 %v1867
        %v1916 = vunpack.c.l.b16 %v1868
        %v1917 = vunpack.c.l.b16 %v1869
        %v1918 = vunpack.c.l.b16 %v1870
        %v1919 = vunpack.c.l.b16 %v1871
        %v1920 = vunpack.c.l.b16 %v1872
        %v1921 = vunpack.c.l.b16 %v1873
        %v1922 = vunpack.c.l.b16 %v1874
        %v1923 = vunpack.c.l.b16 %v1875
        %v1924 = vunpack.c.l.b16 %v1876
        %v1925 = vunpack.c.l.b16 %v1877
        %v1926 = vunpack.c.l.b16 %v1878
        %v1927 = vunpack.c.l.b16 %v1879
        %v1928 = vunpack.c.l.b16 %v1880
        %v1929 = vunpack.c.l.b16 %v1881
        %v1930 = vpack.c.b16 %v1915, %v1914
        %v1931 = vpack.c.b16 %v1917, %v1916
        %v1932 = vpack.c.b16 %v1919, %v1918
        %v1933 = vpack.c.b16 %v1921, %v1920
        %v1934 = vpack.c.b16 %v1923, %v1922
        %v1935 = vpack.c.b16 %v1925, %v1924
        %v1936 = vpack.c.b16 %v1927, %v1926
        %v1937 = vpack.c.b16 %v1929, %v1928
        %1946 = vmatpush.bf16.msra.mxu0 %v1937
        %1947 = vmatpush.bf16.msra.mxu0 %v1936
        %1948 = vmatpush.bf16.msra.mxu0 %v1935
        %1949 = vmatpush.bf16.msra.mxu0 %v1934
        %1950 = vmatpush.bf16.msra.mxu0 %v1933
        %1951 = vmatpush.bf16.msra.mxu0 %v1932
        %1952 = vmatpush.bf16.msra.mxu0 %v1931
        %1953 = vmatpush.bf16.msra.mxu0 %v1930
        %1954 = vmatmul.bf16.gmra.mxu0 %v1890
        %v1955 = vpop.f32.mrf.mxu0
        %v1956 = vadd.f32 0.0, %v1955
        %v1957 = vpop.f32.mrf.mxu0
        %v1958 = vadd.f32 0.0, %v1957
        %1959 = vmatmul.bf16.gmra.mxu0 %v1891
        %v1960 = vpop.f32.mrf.mxu0
        %v1961 = vadd.f32 0.0, %v1960
        %v1962 = vpop.f32.mrf.mxu0
        %v1963 = vadd.f32 0.0, %v1962
        %1964 = vmatmul.bf16.gmra.mxu0 %v1892
        %v1965 = vpop.f32.mrf.mxu0
        %v1966 = vadd.f32 0.0, %v1965
        %v1967 = vpop.f32.mrf.mxu0
        %v1968 = vadd.f32 0.0, %v1967
        %1969 = vmatmul.bf16.gmra.mxu0 %v1893
        %v1970 = vpop.f32.mrf.mxu0
        %v1971 = vadd.f32 0.0, %v1970
        %v1972 = vpop.f32.mrf.mxu0
        %v1973 = vadd.f32 0.0, %v1972
        %1974 = vdwg.mxu0
        %v1975 = vadd.f32 %v1730, %v1956
        %v1976 = vadd.f32 %v1731, %v1958
        %v1977 = vadd.f32 %v1732, %v1961
        %v1978 = vadd.f32 %v1733, %v1963
        %v1979 = vadd.f32 %v1734, %v1966
        %v1980 = vadd.f32 %v1735, %v1968
        %v1981 = vadd.f32 %v1736, %v1971
        %v1982 = vadd.f32 %v1737, %v1973
        %v1983 = vld [vmem:[%s1604] sm:$0xe]
        %v1984 = vld [vmem:[%s1604 + $0x8] sm:$0xe]
        %v1985 = vld [vmem:[%s1604 + $0x10] sm:$0xe]
        %v1986 = vld [vmem:[%s1604 + $0x18] sm:$0xe]
        %v1987 = vld [vmem:[%s1604 + $0x20] sm:$0xe]
        %v1988 = vld [vmem:[%s1604 + $0x28] sm:$0xe]
        %v1989 = vld [vmem:[%s1604 + $0x30] sm:$0xe]
        %v1990 = vld [vmem:[%s1604 + $0x38] sm:$0xe]
        %v2007 = vrot.slane %v1983, 5
        %v2008 = vrot.slane %v2007, 4
        %v2009 = vrot.slane %v1739, 5
        %v2010 = vsel %vm903, %v2008, %v2009
        %v2011 = vrot.slane %v1984, 5
        %v2012 = vrot.slane %v2011, 4
        %v2013 = vrot.slane %v1741, 5
        %v2014 = vsel %vm903, %v2012, %v2013
        %v2015 = vrot.slane %v1985, 5
        %v2016 = vrot.slane %v2015, 4
        %v2017 = vrot.slane %v1743, 5
        %v2018 = vsel %vm903, %v2016, %v2017
        %v2019 = vrot.slane %v1986, 5
        %v2020 = vrot.slane %v2019, 4
        %v2021 = vrot.slane %v1745, 5
        %v2022 = vsel %vm903, %v2020, %v2021
        %v2023 = vrot.slane %v1987, 5
        %v2024 = vrot.slane %v2023, 4
        %v2025 = vrot.slane %v1747, 5
        %v2026 = vsel %vm903, %v2024, %v2025
        %v2027 = vrot.slane %v1988, 5
        %v2028 = vrot.slane %v2027, 4
        %v2029 = vrot.slane %v1749, 5
        %v2030 = vsel %vm903, %v2028, %v2029
        %v2031 = vrot.slane %v1989, 5
        %v2032 = vrot.slane %v2031, 4
        %v2033 = vrot.slane %v1751, 5
        %v2034 = vsel %vm903, %v2032, %v2033
        %v2035 = vrot.slane %v1990, 5
        %v2036 = vrot.slane %v2035, 4
        %v2037 = vrot.slane %v1753, 5
        %v2038 = vsel %vm903, %v2036, %v2037
        %v2039 = vld [vmem:[%s1 + $0x200] sm:$0xf]
        %v2040 = vld [vmem:[%s1 + $0x204] sm:$0xf]
        %v2041 = vld [vmem:[%s1 + $0x208] sm:$0xf]
        %v2042 = vld [vmem:[%s1 + $0x20c] sm:$0xf]
        %v2043 = vld [vmem:[%s1 + $0x210] sm:$0xf]
        %v2044 = vld [vmem:[%s1 + $0x214] sm:$0xf]
        %v2045 = vld [vmem:[%s1 + $0x218] sm:$0xf]
        %v2046 = vld [vmem:[%s1 + $0x21c] sm:$0xf]
        %v2047 = vld [vmem:[%s1 + $0x220] sm:$0xf]
        %v2048 = vld [vmem:[%s1 + $0x224] sm:$0xf]
        %v2049 = vld [vmem:[%s1 + $0x228] sm:$0xf]
        %v2050 = vld [vmem:[%s1 + $0x22c] sm:$0xf]
        %v2051 = vld [vmem:[%s1 + $0x230] sm:$0xf]
        %v2052 = vld [vmem:[%s1 + $0x234] sm:$0xf]
        %v2053 = vld [vmem:[%s1 + $0x238] sm:$0xf]
        %v2054 = vld [vmem:[%s1 + $0x23c] sm:$0xf]
        %v2055 = vunpack.c.l.b16 %v2010
        %v2056 = vunpack.c.l.b16 %v2014
        %v2057 = vunpack.c.l.b16 %v2018
        %v2058 = vunpack.c.l.b16 %v2022
        %v2059 = vunpack.c.l.b16 %v2026
        %v2060 = vunpack.c.l.b16 %v2030
        %v2061 = vunpack.c.l.b16 %v2034
        %v2062 = vunpack.c.l.b16 %v2038
        %v2063 = vpack.c.b16 %v2056, %v2055
        %v2064 = vpack.c.b16 %v2058, %v2057
        %v2065 = vpack.c.b16 %v2060, %v2059
        %v2066 = vpack.c.b16 %v2062, %v2061
        %v2087 = vunpack.c.l.b16 %v2039
        %v2088 = vunpack.c.l.b16 %v2040
        %v2089 = vunpack.c.l.b16 %v2041
        %v2090 = vunpack.c.l.b16 %v2042
        %v2091 = vunpack.c.l.b16 %v2043
        %v2092 = vunpack.c.l.b16 %v2044
        %v2093 = vunpack.c.l.b16 %v2045
        %v2094 = vunpack.c.l.b16 %v2046
        %v2095 = vunpack.c.l.b16 %v2047
        %v2096 = vunpack.c.l.b16 %v2048
        %v2097 = vunpack.c.l.b16 %v2049
        %v2098 = vunpack.c.l.b16 %v2050
        %v2099 = vunpack.c.l.b16 %v2051
        %v2100 = vunpack.c.l.b16 %v2052
        %v2101 = vunpack.c.l.b16 %v2053
        %v2102 = vunpack.c.l.b16 %v2054
        %v2103 = vpack.c.b16 %v2088, %v2087
        %v2104 = vpack.c.b16 %v2090, %v2089
        %v2105 = vpack.c.b16 %v2092, %v2091
        %v2106 = vpack.c.b16 %v2094, %v2093
        %v2107 = vpack.c.b16 %v2096, %v2095
        %v2108 = vpack.c.b16 %v2098, %v2097
        %v2109 = vpack.c.b16 %v2100, %v2099
        %v2110 = vpack.c.b16 %v2102, %v2101
        %2119 = vmatpush.bf16.msra.mxu0 %v2110
        %2120 = vmatpush.bf16.msra.mxu0 %v2109
        %2121 = vmatpush.bf16.msra.mxu0 %v2108
        %2122 = vmatpush.bf16.msra.mxu0 %v2107
        %2123 = vmatpush.bf16.msra.mxu0 %v2106
        %2124 = vmatpush.bf16.msra.mxu0 %v2105
        %2125 = vmatpush.bf16.msra.mxu0 %v2104
        %2126 = vmatpush.bf16.msra.mxu0 %v2103
        %2127 = vmatmul.bf16.gmra.mxu0 %v2063
        %v2128 = vpop.f32.mrf.mxu0
        %v2129 = vadd.f32 0.0, %v2128
        %v2130 = vpop.f32.mrf.mxu0
        %v2131 = vadd.f32 0.0, %v2130
        %2132 = vmatmul.bf16.gmra.mxu0 %v2064
        %v2133 = vpop.f32.mrf.mxu0
        %v2134 = vadd.f32 0.0, %v2133
        %v2135 = vpop.f32.mrf.mxu0
        %v2136 = vadd.f32 0.0, %v2135
        %2137 = vmatmul.bf16.gmra.mxu0 %v2065
        %v2138 = vpop.f32.mrf.mxu0
        %v2139 = vadd.f32 0.0, %v2138
        %v2140 = vpop.f32.mrf.mxu0
        %v2141 = vadd.f32 0.0, %v2140
        %2142 = vmatmul.bf16.gmra.mxu0 %v2066
        %v2143 = vpop.f32.mrf.mxu0
        %v2144 = vadd.f32 0.0, %v2143
        %v2145 = vpop.f32.mrf.mxu0
        %v2146 = vadd.f32 0.0, %v2145
        %2147 = vdwg.mxu0
        %v2148 = vadd.f32 %v1975, %v2129
        %v2149 = vadd.f32 %v1976, %v2131
        %v2150 = vadd.f32 %v1977, %v2134
        %v2151 = vadd.f32 %v1978, %v2136
        %v2152 = vadd.f32 %v1979, %v2139
        %v2153 = vadd.f32 %v1980, %v2141
        %v2154 = vadd.f32 %v1981, %v2144
        %v2155 = vadd.f32 %v1982, %v2146
        %v2156 = vpack.c.bf16 %v2148, %v2148
        %v2157 = vpack.c.bf16 %v2149, %v2149
        %v2158 = vpack.c.bf16 %v2150, %v2150
        %v2159 = vpack.c.bf16 %v2151, %v2151
        %v2160 = vpack.c.bf16 %v2152, %v2152
        %v2161 = vpack.c.bf16 %v2153, %v2153
        %v2162 = vpack.c.bf16 %v2154, %v2154
        %v2163 = vpack.c.bf16 %v2155, %v2155
        %2164 = vst [vmem:[%s303] sm:$0xf] %v2156
        %2165 = vst [vmem:[%s303 + $0x4] sm:$0xf] %v2157
        %2166 = vst [vmem:[%s303 + $0x8] sm:$0xf] %v2158
        %2167 = vst [vmem:[%s303 + $0xc] sm:$0xf] %v2159
        %2168 = vst [vmem:[%s303 + $0x10] sm:$0xf] %v2160
        %2169 = vst [vmem:[%s303 + $0x14] sm:$0xf] %v2161
        %2170 = vst [vmem:[%s303 + $0x18] sm:$0xf] %v2162
        %2171 = vst [vmem:[%s303 + $0x1c] sm:$0xf] %v2163
        %v2172 = vadd.f32 %v2148, %v2149
        %v2173 = vadd.f32 %v2172, %v2150
        %v2174 = vadd.f32 %v2173, %v2151
        %v2175 = vadd.f32 %v2174, %v2152
        %v2176 = vadd.f32 %v2175, %v2153
        %v2177 = vadd.f32 %v2176, %v2154
        %v2178 = vadd.f32 %v2177, %v2155
        %v2179 = vrot.slane %v2178, 4
        %v2180 = vadd.f32 %v2178, %v2179
        %v2181 = vrot.slane %v2180, 2
        %v2182 = vadd.f32 %v2180, %v2181
        %v2183 = vrot.slane %v2182, 1
        %v2184 = vadd.f32 %v2182, %v2183
        %v2185 = vmul.f32 %v2148, %v2148
        %v2186 = vmul.f32 %v2149, %v2149
        %v2187 = vmul.f32 %v2150, %v2150
        %v2188 = vmul.f32 %v2151, %v2151
        %v2189 = vmul.f32 %v2152, %v2152
        %v2190 = vmul.f32 %v2153, %v2153
        %v2191 = vmul.f32 %v2154, %v2154
        %v2192 = vmul.f32 %v2155, %v2155
        %v2193 = vadd.f32 %v2185, %v2186
        %v2194 = vadd.f32 %v2193, %v2187
        %v2195 = vadd.f32 %v2194, %v2188
        %v2196 = vadd.f32 %v2195, %v2189
        %v2197 = vadd.f32 %v2196, %v2190
        %v2198 = vadd.f32 %v2197, %v2191
        %v2199 = vadd.f32 %v2198, %v2192
        %v2200 = vrot.slane %v2199, 4
        %v2201 = vadd.f32 %v2199, %v2200
        %v2202 = vrot.slane %v2201, 2
        %v2203 = vadd.f32 %v2201, %v2202
        %v2204 = vrot.slane %v2203, 1
        %v2205 = vadd.f32 %v2203, %v2204
        %vm2206 = vcmask 1040384
        %v2207 = vsel %vm2206, %v2184, %v2205
        %vm2208 = vcmask 1041408
        %v2209 = vsel %vm2208, %v2207, 0.0
        %2210 = vst [vmem:[%s307] sm:$0xff] %v2209
        %p2211 = scmp.lt.s32.totalorder %s17, 1
        %s2212 = scalar_select %p2211, %s17, 1
        %s2213 = smul.addr %s2212, 8
        %s2214 = smul.addr %s2213, 4
        %s2215 = scalar_lea.vmem %s4, %s2214
        %p2216 = scmp.lt.s32.totalorder %s17, 1
        %s2217 = scalar_select %p2216, %s17, 1
        %s2218 = smul.addr %s2217, 8
        %s2219 = scalar_lea.vmem %s5, %s2218
        // Predicated region
        $region78: #{resblock_forward.4} parent=72 // pred_check
          %p2220 = pneg %p124
        $region79: #{resblock_forward.4} parent=72 // pred_check_branch
          %2222 = sbr.rel (%p2220) target = $region81
        $region80: #{resblock_forward.4} parent=72 // pred_region
          _
        $region81: #{resblock_forward.4} parent=72 // pred_fallthru
          _
        // Predicated region
        $region82: #{resblock_forward.4} parent=72 // pred_check
          %p2223 = pneg %p150
        $region83: #{resblock_forward.4} parent=72 // pred_check_branch
          %2225 = sbr.rel (%p2223) target = $region85
        $region84: #{resblock_forward.4} parent=72 // pred_region
          _
        $region85: #{resblock_forward.4} parent=72 // pred_fallthru
          _
      $region73: #{resblock_forward.4} parent=5 // pred_fallthru
        _
      %p2226 = scmp.le.s32.totalorder 2, %s12
      // Predicated region
      $region86: #{resblock_forward.4} parent=5 // pred_check
        %p2227 = pneg %p2226
      $region87: #{resblock_forward.4} parent=5 // pred_check_branch
        %2229 = sbr.rel (%p2227) target = $region89
      $region88: #{resblock_forward.4} parent=5 // pred_region
        %s2230 = ssub.s32 %s12, 2
        // Predicated region
        $region90: #{resblock_forward.4} parent=88 // pred_check
          %p2231 = pneg %p130
        $region91: #{resblock_forward.4} parent=88 // pred_check_branch
          %2233 = sbr.rel (%p2231) target = $region93
        $region92: #{resblock_forward.4} parent=88 // pred_region
          %p2234 = scmp.lt.s32.totalorder %s18, 1
          %s2235 = scalar_select %p2234, %s18, 1
          %s2236 = smul.addr %s2235, 8
          %s2237 = smul.addr %s2236, 4
          %s2238 = scalar_lea.vmem %s4, %s2237
        $region93: #{resblock_forward.4} parent=88 // pred_fallthru
          _
        // Predicated region
        $region94: #{resblock_forward.4} parent=88 // pred_check
          %p2239 = pneg %p156
        $region95: #{resblock_forward.4} parent=88 // pred_check_branch
          %2241 = sbr.rel (%p2239) target = $region97
        $region96: #{resblock_forward.4} parent=88 // pred_region
          %p2242 = scmp.lt.s32.totalorder %s18, 1
          %s2243 = scalar_select %p2242, %s18, 1
          %s2244 = smul.addr %s2243, 8
          %s2245 = scalar_lea.vmem %s5, %s2244
        $region97: #{resblock_forward.4} parent=88 // pred_fallthru
          _
      $region89: #{resblock_forward.4} parent=5 // pred_fallthru
        _
    $region6: #{resblock_forward.4} parent=1 // loop_footer
      %s16 = sadd.s32 1, %s12
    $region7: #{resblock_forward.4} parent=1 // loop_footer_branch
      %11 = sbr.rel target = $region3
    $region8: #{resblock_forward.4} parent=1 // loop_exit
      _

</llo_original>
